<compile_context>
chip_gen: v7x
topology: tpu7x:2x2x1
jax: 0.10.0
libtpu: 0.0.40
codegen_flags: <defaults>
</compile_context>

<pallas_src>
import numpy as np
import jax
import jax.numpy as jnp
from jax.experimental import pallas as pl
from jax.experimental.pallas import tpu as pltpu

N_PAD = 8      # max objects per image (sublane aligned)
K_PAD = 128    # RoI points per object (lane aligned)

# packed attribute plane lanes (per object row):
#   0:4  bbox xyxy   4 depth   5:7 offset   7:10 dims(w,h,l)
#   10   valid-instance mask   11 real-point count
#   12   fu           13 cu            14 tx          (replicated on all rows)


def _wdm3d_loss_kernel(pts_ref, attr_ref, out_ref):
    px = pts_ref[0]                     # (N_PAD, K_PAD) lidar x
    py = pts_ref[1]                     # (N_PAD, K_PAD) lidar y
    pz = pts_ref[2]                     # (N_PAD, K_PAD) lidar z (depth)
    attr = attr_ref[...]                # (N_PAD, K_PAD) packed per-object attrs

    bbox_x1 = attr[:, 0:1]
    bbox_x2 = attr[:, 2:3]
    depth = attr[:, 4:5]
    off_x = attr[:, 5:6]
    dim_w = attr[:, 7:8]
    dim_l = attr[:, 9:10]
    omask = attr[:, 10:11]
    kcnt = attr[:, 11:12]
    fu = attr[:, 12:13]
    cu = attr[:, 13:14]
    tx = attr[:, 14:15]

    eps = 1e-6
    lane = jax.lax.broadcasted_iota(jnp.int32, (N_PAD, K_PAD), 1).astype(jnp.float32)
    km = (lane < kcnt).astype(jnp.float32)                                # point mask

    npts = jnp.maximum(jnp.sum(km, axis=-1, keepdims=True), 1.0)          # (N,1)
    inv_npts = pl.reciprocal(npts, approx=True)

    # ---- batch_lidar_density: inverse local BEV point density -------------
    # Fold the point mask into the coordinates (masked points pushed 10 km
    # away) so the (K,K) stage is a single fused expression, then reduce.
    pxm = px + (1.0 - km) * 1e4
    d2 = ((pxm[:, :, None] - pxm[:, None, :]) ** 2 +
          (pz[:, :, None] - pz[:, None, :]) ** 2)
    cnt = jnp.maximum(jnp.sum((d2 < 0.25).astype(jnp.float32), axis=-1), 1.0)
    dens_raw = km * pl.reciprocal(cnt, approx=True)                       # (N,K)
    dens = dens_raw * pl.reciprocal(
        jnp.maximum(jnp.sum(dens_raw, axis=-1, keepdims=True), eps), approx=True)

    # ---- batch_lidar_y_center ----------------------------------------------
    y_center = jnp.sum(py * km, axis=-1, keepdims=True) * inv_npts        # (N,1)

    # ---- batch_lidar_orient: BEV principal direction (weighted LSQ fit) ----
    mean_x = jnp.sum(px * km, axis=-1, keepdims=True) * inv_npts
    mean_z = jnp.sum(pz * km, axis=-1, keepdims=True) * inv_npts
    dxc = px - mean_x
    dzc = pz - mean_z
    cxz = jnp.sum(dxc * dzc * km, axis=-1, keepdims=True) * inv_npts
    vxx = jnp.sum(dxc * dxc * km, axis=-1, keepdims=True) * inv_npts
    slope = cxz * pl.reciprocal(vxx + eps, approx=True)
    inv_norm = jax.lax.rsqrt(1.0 + slope * slope)
    cos_t = inv_norm                                                      # (N,1)
    sin_t = slope * inv_norm

    # ---- predicted 3D location from (depth, offset) + bbox2d + P2 ----------
    inv_fu = pl.reciprocal(fu, approx=True)
    u = (bbox_x1 + bbox_x2) * 0.5 + off_x                                 # (N,1)
    z3d = depth
    x3d = (u * z3d - cu * z3d - tx) * inv_fu                              # back-project

    # ---- geometric alignment: point-to-box-surface distance in BEV ---------
    half_w = dim_w * 0.5
    half_l = dim_l * 0.5
    dxp = px - x3d
    dzp = pz - z3d
    rx = cos_t * dxp + sin_t * dzp                                        # object frame
    rz = cos_t * dzp - sin_t * dxp
    qx = jnp.abs(rx) - half_l
    qz = jnp.abs(rz) - half_w
    outside = jnp.sqrt(jnp.maximum(qx, 0.0) ** 2 + jnp.maximum(qz, 0.0) ** 2 + 1e-12)
    inside = jnp.minimum(jnp.maximum(qx, qz), 0.0)
    surf_loss = jnp.sum(dens * jnp.abs(outside + inside) * km,
                        axis=-1, keepdims=True)                           # (N,1)

    # ---- density-weighted BEV centroid alignment ---------------------------
    cent_x = jnp.sum(dens * px, axis=-1, keepdims=True)
    cent_z = jnp.sum(dens * pz, axis=-1, keepdims=True)
    center_loss = jnp.abs(cent_x - x3d) + jnp.abs(cent_z - z3d)

    _ = y_center  # predicted y is taken directly from the lidar y-center

    per_obj = (surf_loss + center_loss) * omask                           # (N,1)
    inv_valid = pl.reciprocal(
        jnp.maximum(jnp.sum(omask, axis=0, keepdims=True), 1.0), approx=True)
    img_loss = jnp.sum(per_obj, axis=0, keepdims=True) * inv_valid        # (1,1)

    # one image's loss -> exactly one unmasked (8,128) vreg store
    out_ref[...] = jnp.broadcast_to(img_loss, out_ref.shape).astype(jnp.float32)


def _batched_image_loss(pts, attr):
    """pts: (B, 3, N_PAD, K_PAD) f32; attr: (B, N_PAD, K_PAD) f32 -> (B,) f32."""
    B = pts.shape[0]
    out = pl.pallas_call(
        _wdm3d_loss_kernel,
        out_shape=jax.ShapeDtypeStruct((B, N_PAD, K_PAD), jnp.float32),
        grid=(B,),
        in_specs=[
            pl.BlockSpec((None, 3, N_PAD, K_PAD), lambda b: (b, 0, 0, 0)),
            pl.BlockSpec((None, N_PAD, K_PAD), lambda b: (b, 0, 0)),
        ],
        out_specs=pl.BlockSpec((None, N_PAD, K_PAD), lambda b: (b, 0, 0)),
        compiler_params=pltpu.CompilerParams(dimension_semantics=("parallel",)),
    )(pts, attr)
    return out[:, 0, 0]


@jax.jit
def _batched_loss_jit(pts, attr, w0):
    per_img = _batched_image_loss(pts, attr)                 # (B,)
    # matches original: each image's loss * 100, summed, abs, then weight[0]
    loss_3d = jnp.abs(jnp.sum(per_img) * 100.0).reshape(1)
    total_loss = loss_3d * w0
    return total_loss, loss_3d


def wdm3d_depth_off_loss(roi_points, bbox2d_pred, pred3d, bbox2d_gt, calibs,
                         sample_roi_points=100,
                         dim_prior=((0.8, 1.8, 0.8), (0.6, 1.8, 1.8), (1.6, 1.8, 4.0)),
                         loss_weights=(1.0, 0.9, 0.9)):
    batch_size = len(roi_points)
    dim_prior_np = np.asarray(dim_prior, np.float32)

    # mirror the PyTorch bookkeeping on bbox2d_gt (image-index relabel + cat)
    obj_cnt_each_img = []
    relabelled = []
    for i, g in enumerate(bbox2d_gt):
        g = jnp.asarray(g)
        relabelled.append(g.at[:, 0].set(float(i)))
        obj_cnt_each_img.append(int(g.shape[0]))
    _bbox2d_gt_cat = jnp.concatenate(relabelled, axis=0)  # noqa: F841 (kept for fidelity)

    K = int(min(sample_roi_points, K_PAD))

    # static-shape NumPy packing: one (B,3,8,128) point stack + one (B,8,128)
    # packed attribute plane; object counts / validity become masks.
    pts_all = np.zeros((batch_size, 3, N_PAD, K_PAD), np.float32)
    attr_all = np.zeros((batch_size, N_PAD, K_PAD), np.float32)

    for i in range(batch_size):
        p2 = np.asarray(calibs[i].P, np.float32)
        attr_all[i, :, 12] = p2[0, 0]    # fu (all rows -> no 1/0 on padded rows)
        attr_all[i, :, 13] = p2[0, 2]    # cu
        attr_all[i, :, 14] = p2[0, 3]    # tx

        mn = min(int(np.asarray(bbox2d_pred[i]).shape[0]), obj_cnt_each_img[i])
        if mn == 0:
            continue                     # no gt or no detections -> contributes 0
        assert mn <= N_PAD

        pts_i = np.asarray(roi_points[i], np.float32)
        kk = min(pts_i.shape[1], K)
        pts_i = pts_i[:mn, :kk]                                    # (mn, kk, 3)
        bbox = np.asarray(bbox2d_pred[i], np.float32)[:mn]         # (mn, 6)
        depth = np.asarray(pred3d[0][i], np.float32)[:mn].reshape(mn, -1)
        off = np.asarray(pred3d[1][i], np.float32)[:mn].reshape(mn, -1)
        cls_idx = np.clip(bbox[:, 5].astype(np.int32), 0, dim_prior_np.shape[0] - 1)
        dims = dim_prior_np[cls_idx]                               # (mn, 3)
        # valid_instance_mask equivalent: enough lidar points with positive depth
        valid = ((pts_i[:, :, 2] > 0.0).sum(-1) >= 10).astype(np.float32)

        pts_all[i, 0, :mn, :kk] = pts_i[:, :, 0]
        pts_all[i, 1, :mn, :kk] = pts_i[:, :, 1]
        pts_all[i, 2, :mn, :kk] = pts_i[:, :, 2]

        attr_all[i, :mn, 0:4] = bbox[:, :4]
        attr_all[i, :mn, 4] = depth[:, 0]
        oc = min(off.shape[1], 2)
        attr_all[i, :mn, 5:5 + oc] = off[:, :oc]
        attr_all[i, :mn, 7:10] = dims
        attr_all[i, :mn, 10] = valid
        attr_all[i, :mn, 11] = float(kk)

    # NOTE: matching the reference forward, only loss_weights[0] is applied here
    # (depth / 2d-bbox terms are handled outside this forward).
    return _batched_loss_jit(jnp.asarray(pts_all), jnp.asarray(attr_all),
                             jnp.asarray(loss_weights[0], jnp.float32))


if __name__ == "__main__":
    key = jax.random.PRNGKey(0)
    batch_size = 2
    K = 100                      # sample_roi_points
    n_pred = [3, 2]
    n_gt = [4, 2]
    max_pred = max(n_pred)

    class Calib:
        def __init__(self, P):
            self.P = P

    calibs = [
        Calib(np.array([[700.0, 0.0, 600.0, 44.8],
                        [0.0, 700.0, 180.0, 0.2],
                        [0.0, 0.0, 1.0, 0.003]], dtype=np.float32))
        for _ in range(batch_size)
    ]

    keys = jax.random.split(key, 16)
    kidx = 0
    roi_points, bbox2d_pred, bbox2d_gt = [], [], []
    for i in range(batch_size):
        n = n_pred[i]
        centers = jax.random.uniform(
            keys[kidx], (n, 3),
            minval=jnp.array([-8.0, 0.5, 10.0]),
            maxval=jnp.array([8.0, 2.0, 40.0])); kidx += 1
        noise = jax.random.normal(keys[kidx], (n, K, 3)) * jnp.array([0.8, 0.3, 1.5]); kidx += 1
        roi_points.append(centers[:, None, :] + noise)       # (n, K, 3)

        xy = jax.random.uniform(keys[kidx], (n, 2), minval=100.0, maxval=900.0); kidx += 1
        wh = jax.random.uniform(keys[kidx], (n, 2), minval=40.0, maxval=150.0); kidx += 1
        conf = jnp.ones((n, 1), jnp.float32)
        cls = jnp.full((n, 1), 2.0, jnp.float32)              # car -> dim_prior[2]
        bbox2d_pred.append(jnp.concatenate([xy, xy + wh, conf, cls], axis=-1))

        g = jax.random.uniform(keys[kidx], (n_gt[i], 6), minval=0.0, maxval=1.0); kidx += 1
        bbox2d_gt.append(g)

    depth_pred = jax.random.uniform(keys[kidx], (batch_size, max_pred, 1),
                                    minval=10.0, maxval=40.0); kidx += 1
    offset_pred = jax.random.normal(keys[kidx], (batch_size, max_pred, 2)) * 5.0; kidx += 1
    pred3d = (depth_pred, offset_pred)

    total_loss, loss_3d = wdm3d_depth_off_loss(
        roi_points, bbox2d_pred, pred3d, bbox2d_gt, calibs, sample_roi_points=K)
    jax.block_until_ready((total_loss, loss_3d))
    assert total_loss.shape == (1,) and loss_3d.shape == (1,)
    assert bool(jnp.isfinite(total_loss).all())
    assert bool(jnp.isfinite(loss_3d).all())
    print("KERNEL_OK")
</pallas_src>

<mosaic_0001>
module attributes {stable_mosaic.version = 11 : i64} {
  func.func @_wdm3d_loss_kernel(%arg0: i32, %arg1: memref<1x3x8x128xf32, #tpu.memory_space<vmem>>, %arg2: memref<1x8x128xf32, #tpu.memory_space<vmem>>, %arg3: memref<1x8x128xf32, #tpu.memory_space<vmem>>) attributes {dimension_semantics = [#tpu.dimension_semantics<parallel>], iteration_bounds = array<i64: 2>, scalar_prefetch = 0 : i64, scratch_operands = 0 : i64, tpu.core_type = #tpu.core_type<tc>, window_params = [{transform_indices = @transform_0, window_bounds = array<i64: 1, 3, 8, 128>}, {transform_indices = @transform_1, window_bounds = array<i64: 1, 8, 128>}, {transform_indices = @transform_2, window_bounds = array<i64: 1, 8, 128>}]} {
    %c0 = arith.constant 0 : index
    %c0_0 = arith.constant 0 : index
    %c0_1 = arith.constant 0 : index
    %c0_2 = arith.constant 0 : index
    %0 = vector.load %arg1[%c0, %c0_0, %c0_1, %c0_2] : memref<1x3x8x128xf32, #tpu.memory_space<vmem>>, vector<1x1x8x128xf32>
    %1 = vector.shape_cast %0 : vector<1x1x8x128xf32> to vector<8x128xf32>
    %c0_3 = arith.constant 0 : index
    %c2 = arith.constant 2 : index
    %c0_4 = arith.constant 0 : index
    %c0_5 = arith.constant 0 : index
    %2 = vector.load %arg1[%c0_3, %c2, %c0_4, %c0_5] : memref<1x3x8x128xf32, #tpu.memory_space<vmem>>, vector<1x1x8x128xf32>
    %3 = vector.shape_cast %2 : vector<1x1x8x128xf32> to vector<8x128xf32>
    %c0_6 = arith.constant 0 : index
    %c0_7 = arith.constant 0 : index
    %c0_8 = arith.constant 0 : index
    %4 = vector.load %arg2[%c0_6, %c0_7, %c0_8] : memref<1x8x128xf32, #tpu.memory_space<vmem>>, vector<1x8x128xf32>
    %5 = vector.shape_cast %4 : vector<1x8x128xf32> to vector<8x128xf32>
    %6 = vector.extract_strided_slice %5 {offsets = [0, 0], sizes = [8, 1], strides = [1, 1]} : vector<8x128xf32> to vector<8x1xf32>
    %7 = vector.extract_strided_slice %5 {offsets = [0, 2], sizes = [8, 1], strides = [1, 1]} : vector<8x128xf32> to vector<8x1xf32>
    %8 = vector.extract_strided_slice %5 {offsets = [0, 4], sizes = [8, 1], strides = [1, 1]} : vector<8x128xf32> to vector<8x1xf32>
    %9 = vector.extract_strided_slice %5 {offsets = [0, 5], sizes = [8, 1], strides = [1, 1]} : vector<8x128xf32> to vector<8x1xf32>
    %10 = vector.extract_strided_slice %5 {offsets = [0, 7], sizes = [8, 1], strides = [1, 1]} : vector<8x128xf32> to vector<8x1xf32>
    %11 = vector.extract_strided_slice %5 {offsets = [0, 9], sizes = [8, 1], strides = [1, 1]} : vector<8x128xf32> to vector<8x1xf32>
    %12 = vector.extract_strided_slice %5 {offsets = [0, 10], sizes = [8, 1], strides = [1, 1]} : vector<8x128xf32> to vector<8x1xf32>
    %13 = vector.extract_strided_slice %5 {offsets = [0, 11], sizes = [8, 1], strides = [1, 1]} : vector<8x128xf32> to vector<8x1xf32>
    %14 = vector.extract_strided_slice %5 {offsets = [0, 12], sizes = [8, 1], strides = [1, 1]} : vector<8x128xf32> to vector<8x1xf32>
    %15 = vector.extract_strided_slice %5 {offsets = [0, 13], sizes = [8, 1], strides = [1, 1]} : vector<8x128xf32> to vector<8x1xf32>
    %16 = vector.extract_strided_slice %5 {offsets = [0, 14], sizes = [8, 1], strides = [1, 1]} : vector<8x128xf32> to vector<8x1xf32>
    %17 = tpu.iota {dimensions = array<i32: 1>} : vector<8x128xi32>
    %18 = arith.sitofp %17 : vector<8x128xi32> to vector<8x128xf32>
    %19 = vector.broadcast %13 : vector<8x1xf32> to vector<8x128xf32>
    %20 = arith.cmpf olt, %18, %19 : vector<8x128xf32>
    %21 = arith.extui %20 : vector<8x128xi1> to vector<8x128xi32>
    %22 = arith.sitofp %21 : vector<8x128xi32> to vector<8x128xf32>
    %cst = arith.constant dense<0.000000e+00> : vector<8xf32>
    %23 = vector.multi_reduction <add>, %22, %cst [1] : vector<8x128xf32> to vector<8xf32>
    %24 = vector.shape_cast %23 : vector<8xf32> to vector<8x1xf32>
    %cst_9 = arith.constant 1.000000e+00 : f32
    %25 = vector.broadcast %cst_9 : f32 to vector<8x1xf32>
    %26 = arith.maximumf %24, %25 : vector<8x1xf32>
    %27 = tpu.reciprocal %26 {approx = true} : vector<8x1xf32> -> vector<8x1xf32>
    %cst_10 = arith.constant 1.000000e+00 : f32
    %28 = vector.broadcast %cst_10 : f32 to vector<8x128xf32>
    %29 = arith.subf %28, %22 : vector<8x128xf32>
    %cst_11 = arith.constant 1.000000e+04 : f32
    %30 = vector.broadcast %cst_11 : f32 to vector<8x128xf32>
    %31 = arith.mulf %29, %30 : vector<8x128xf32>
    %32 = arith.addf %1, %31 : vector<8x128xf32>
    %33 = vector.shape_cast %32 : vector<8x128xf32> to vector<8x128x1xf32>
    %34 = vector.shape_cast %32 : vector<8x128xf32> to vector<8x1x128xf32>
    %35 = vector.broadcast %33 : vector<8x128x1xf32> to vector<8x128x128xf32>
    %36 = vector.broadcast %34 : vector<8x1x128xf32> to vector<8x128x128xf32>
    %37 = arith.subf %35, %36 : vector<8x128x128xf32>
    %38 = arith.mulf %37, %37 : vector<8x128x128xf32>
    %39 = vector.shape_cast %3 : vector<8x128xf32> to vector<8x128x1xf32>
    %40 = vector.shape_cast %3 : vector<8x128xf32> to vector<8x1x128xf32>
    %41 = vector.broadcast %39 : vector<8x128x1xf32> to vector<8x128x128xf32>
    %42 = vector.broadcast %40 : vector<8x1x128xf32> to vector<8x128x128xf32>
    %43 = arith.subf %41, %42 : vector<8x128x128xf32>
    %44 = arith.mulf %43, %43 : vector<8x128x128xf32>
    %45 = arith.addf %38, %44 : vector<8x128x128xf32>
    %cst_12 = arith.constant 2.500000e-01 : f32
    %46 = vector.broadcast %cst_12 : f32 to vector<8x128x128xf32>
    %47 = arith.cmpf olt, %45, %46 : vector<8x128x128xf32>
    %48 = arith.extui %47 : vector<8x128x128xi1> to vector<8x128x128xi32>
    %49 = arith.sitofp %48 : vector<8x128x128xi32> to vector<8x128x128xf32>
    %cst_13 = arith.constant dense<0.000000e+00> : vector<8x128xf32>
    %50 = vector.multi_reduction <add>, %49, %cst_13 [2] : vector<8x128x128xf32> to vector<8x128xf32>
    %cst_14 = arith.constant 1.000000e+00 : f32
    %51 = vector.broadcast %cst_14 : f32 to vector<8x128xf32>
    %52 = arith.maximumf %50, %51 : vector<8x128xf32>
    %53 = tpu.reciprocal %52 {approx = true} : vector<8x128xf32> -> vector<8x128xf32>
    %54 = arith.mulf %22, %53 : vector<8x128xf32>
    %cst_15 = arith.constant dense<0.000000e+00> : vector<8xf32>
    %55 = vector.multi_reduction <add>, %54, %cst_15 [1] : vector<8x128xf32> to vector<8xf32>
    %56 = vector.shape_cast %55 : vector<8xf32> to vector<8x1xf32>
    %cst_16 = arith.constant 9.99999997E-7 : f32
    %57 = vector.broadcast %cst_16 : f32 to vector<8x1xf32>
    %58 = arith.maximumf %56, %57 : vector<8x1xf32>
    %59 = tpu.reciprocal %58 {approx = true} : vector<8x1xf32> -> vector<8x1xf32>
    %60 = vector.broadcast %59 : vector<8x1xf32> to vector<8x128xf32>
    %61 = arith.mulf %54, %60 : vector<8x128xf32>
    %62 = arith.mulf %1, %22 : vector<8x128xf32>
    %cst_17 = arith.constant dense<0.000000e+00> : vector<8xf32>
    %63 = vector.multi_reduction <add>, %62, %cst_17 [1] : vector<8x128xf32> to vector<8xf32>
    %64 = vector.shape_cast %63 : vector<8xf32> to vector<8x1xf32>
    %65 = arith.mulf %64, %27 : vector<8x1xf32>
    %66 = arith.mulf %3, %22 : vector<8x128xf32>
    %cst_18 = arith.constant dense<0.000000e+00> : vector<8xf32>
    %67 = vector.multi_reduction <add>, %66, %cst_18 [1] : vector<8x128xf32> to vector<8xf32>
    %68 = vector.shape_cast %67 : vector<8xf32> to vector<8x1xf32>
    %69 = arith.mulf %68, %27 : vector<8x1xf32>
    %70 = vector.broadcast %65 : vector<8x1xf32> to vector<8x128xf32>
    %71 = arith.subf %1, %70 : vector<8x128xf32>
    %72 = vector.broadcast %69 : vector<8x1xf32> to vector<8x128xf32>
    %73 = arith.subf %3, %72 : vector<8x128xf32>
    %74 = arith.mulf %71, %73 : vector<8x128xf32>
    %75 = arith.mulf %74, %22 : vector<8x128xf32>
    %cst_19 = arith.constant dense<0.000000e+00> : vector<8xf32>
    %76 = vector.multi_reduction <add>, %75, %cst_19 [1] : vector<8x128xf32> to vector<8xf32>
    %77 = vector.shape_cast %76 : vector<8xf32> to vector<8x1xf32>
    %78 = arith.mulf %77, %27 : vector<8x1xf32>
    %79 = arith.mulf %71, %71 : vector<8x128xf32>
    %80 = arith.mulf %79, %22 : vector<8x128xf32>
    %cst_20 = arith.constant dense<0.000000e+00> : vector<8xf32>
    %81 = vector.multi_reduction <add>, %80, %cst_20 [1] : vector<8x128xf32> to vector<8xf32>
    %82 = vector.shape_cast %81 : vector<8xf32> to vector<8x1xf32>
    %83 = arith.mulf %82, %27 : vector<8x1xf32>
    %cst_21 = arith.constant 9.99999997E-7 : f32
    %84 = vector.broadcast %cst_21 : f32 to vector<8x1xf32>
    %85 = arith.addf %83, %84 : vector<8x1xf32>
    %86 = tpu.reciprocal %85 {approx = true} : vector<8x1xf32> -> vector<8x1xf32>
    %87 = arith.mulf %78, %86 : vector<8x1xf32>
    %88 = arith.mulf %87, %87 : vector<8x1xf32>
    %cst_22 = arith.constant 1.000000e+00 : f32
    %89 = vector.broadcast %cst_22 : f32 to vector<8x1xf32>
    %90 = arith.addf %89, %88 : vector<8x1xf32>
    %91 = math.rsqrt %90 : vector<8x1xf32>
    %92 = arith.mulf %87, %91 : vector<8x1xf32>
    %93 = tpu.reciprocal %14 {approx = true} : vector<8x1xf32> -> vector<8x1xf32>
    %94 = arith.addf %6, %7 : vector<8x1xf32>
    %cst_23 = arith.constant 5.000000e-01 : f32
    %95 = vector.broadcast %cst_23 : f32 to vector<8x1xf32>
    %96 = arith.mulf %94, %95 : vector<8x1xf32>
    %97 = arith.addf %96, %9 : vector<8x1xf32>
    %98 = arith.mulf %97, %8 : vector<8x1xf32>
    %99 = arith.mulf %15, %8 : vector<8x1xf32>
    %100 = arith.subf %98, %99 : vector<8x1xf32>
    %101 = arith.subf %100, %16 : vector<8x1xf32>
    %102 = arith.mulf %101, %93 : vector<8x1xf32>
    %cst_24 = arith.constant 5.000000e-01 : f32
    %103 = vector.broadcast %cst_24 : f32 to vector<8x1xf32>
    %104 = arith.mulf %10, %103 : vector<8x1xf32>
    %cst_25 = arith.constant 5.000000e-01 : f32
    %105 = vector.broadcast %cst_25 : f32 to vector<8x1xf32>
    %106 = arith.mulf %11, %105 : vector<8x1xf32>
    %107 = vector.broadcast %102 : vector<8x1xf32> to vector<8x128xf32>
    %108 = arith.subf %1, %107 : vector<8x128xf32>
    %109 = vector.broadcast %8 : vector<8x1xf32> to vector<8x128xf32>
    %110 = arith.subf %3, %109 : vector<8x128xf32>
    %111 = vector.broadcast %91 : vector<8x1xf32> to vector<8x128xf32>
    %112 = arith.mulf %111, %108 : vector<8x128xf32>
    %113 = vector.broadcast %92 : vector<8x1xf32> to vector<8x128xf32>
    %114 = arith.mulf %113, %110 : vector<8x128xf32>
    %115 = arith.addf %112, %114 : vector<8x128xf32>
    %116 = vector.broadcast %91 : vector<8x1xf32> to vector<8x128xf32>
    %117 = arith.mulf %116, %110 : vector<8x128xf32>
    %118 = vector.broadcast %92 : vector<8x1xf32> to vector<8x128xf32>
    %119 = arith.mulf %118, %108 : vector<8x128xf32>
    %120 = arith.subf %117, %119 : vector<8x128xf32>
    %121 = math.absf %115 : vector<8x128xf32>
    %122 = vector.broadcast %106 : vector<8x1xf32> to vector<8x128xf32>
    %123 = arith.subf %121, %122 : vector<8x128xf32>
    %124 = math.absf %120 : vector<8x128xf32>
    %125 = vector.broadcast %104 : vector<8x1xf32> to vector<8x128xf32>
    %126 = arith.subf %124, %125 : vector<8x128xf32>
    %cst_26 = arith.constant 0.000000e+00 : f32
    %127 = vector.broadcast %cst_26 : f32 to vector<8x128xf32>
    %128 = arith.maximumf %123, %127 : vector<8x128xf32>
    %129 = arith.mulf %128, %128 : vector<8x128xf32>
    %cst_27 = arith.constant 0.000000e+00 : f32
    %130 = vector.broadcast %cst_27 : f32 to vector<8x128xf32>
    %131 = arith.maximumf %126, %130 : vector<8x128xf32>
    %132 = arith.mulf %131, %131 : vector<8x128xf32>
    %133 = arith.addf %129, %132 : vector<8x128xf32>
    %cst_28 = arith.constant 9.99999996E-13 : f32
    %134 = vector.broadcast %cst_28 : f32 to vector<8x128xf32>
    %135 = arith.addf %133, %134 : vector<8x128xf32>
    %136 = math.sqrt %135 : vector<8x128xf32>
    %137 = arith.maximumf %123, %126 : vector<8x128xf32>
    %cst_29 = arith.constant 0.000000e+00 : f32
    %138 = vector.broadcast %cst_29 : f32 to vector<8x128xf32>
    %139 = arith.minimumf %137, %138 : vector<8x128xf32>
    %140 = arith.addf %136, %139 : vector<8x128xf32>
    %141 = math.absf %140 : vector<8x128xf32>
    %142 = arith.mulf %61, %141 : vector<8x128xf32>
    %143 = arith.mulf %142, %22 : vector<8x128xf32>
    %cst_30 = arith.constant dense<0.000000e+00> : vector<8xf32>
    %144 = vector.multi_reduction <add>, %143, %cst_30 [1] : vector<8x128xf32> to vector<8xf32>
    %145 = vector.shape_cast %144 : vector<8xf32> to vector<8x1xf32>
    %146 = arith.mulf %61, %1 : vector<8x128xf32>
    %cst_31 = arith.constant dense<0.000000e+00> : vector<8xf32>
    %147 = vector.multi_reduction <add>, %146, %cst_31 [1] : vector<8x128xf32> to vector<8xf32>
    %148 = vector.shape_cast %147 : vector<8xf32> to vector<8x1xf32>
    %149 = arith.mulf %61, %3 : vector<8x128xf32>
    %cst_32 = arith.constant dense<0.000000e+00> : vector<8xf32>
    %150 = vector.multi_reduction <add>, %149, %cst_32 [1] : vector<8x128xf32> to vector<8xf32>
    %151 = vector.shape_cast %150 : vector<8xf32> to vector<8x1xf32>
    %152 = arith.subf %148, %102 : vector<8x1xf32>
    %153 = math.absf %152 : vector<8x1xf32>
    %154 = arith.subf %151, %8 : vector<8x1xf32>
    %155 = math.absf %154 : vector<8x1xf32>
    %156 = arith.addf %153, %155 : vector<8x1xf32>
    %157 = arith.addf %145, %156 : vector<8x1xf32>
    %158 = arith.mulf %157, %12 : vector<8x1xf32>
    %cst_33 = arith.constant dense<0.000000e+00> : vector<1xf32>
    %159 = vector.multi_reduction <add>, %12, %cst_33 [0] : vector<8x1xf32> to vector<1xf32>
    %160 = vector.shape_cast %159 : vector<1xf32> to vector<1x1xf32>
    %cst_34 = arith.constant 1.000000e+00 : f32
    %161 = vector.broadcast %cst_34 : f32 to vector<1x1xf32>
    %162 = arith.maximumf %160, %161 : vector<1x1xf32>
    %163 = tpu.reciprocal %162 {approx = true} : vector<1x1xf32> -> vector<1x1xf32>
    %cst_35 = arith.constant dense<0.000000e+00> : vector<1xf32>
    %164 = vector.multi_reduction <add>, %158, %cst_35 [0] : vector<8x1xf32> to vector<1xf32>
    %165 = vector.shape_cast %164 : vector<1xf32> to vector<1x1xf32>
    %166 = arith.mulf %165, %163 : vector<1x1xf32>
    %167 = vector.shape_cast %166 : vector<1x1xf32> to vector<1x1xf32>
    %168 = vector.broadcast %167 : vector<1x1xf32> to vector<8x128xf32>
    %c0_36 = arith.constant 0 : index
    %c0_37 = arith.constant 0 : index
    %c0_38 = arith.constant 0 : index
    %169 = vector.load %arg3[%c0_36, %c0_37, %c0_38] : memref<1x8x128xf32, #tpu.memory_space<vmem>>, vector<1x8x128xf32>
    %170 = vector.shape_cast %169 : vector<1x8x128xf32> to vector<8x128xf32>
    %171 = vector.shape_cast %168 : vector<8x128xf32> to vector<1x8x128xf32>
    tpu.vector_store %arg3[%c0_36, %c0_37, %c0_38], %171 {strides = array<i32>} : memref<1x8x128xf32, #tpu.memory_space<vmem>>, vector<1x8x128xf32>,
    return
  }
  func.func @transform_0(%arg0: i32) -> (i32, i32, i32, i32) {
    %c0_i32 = arith.constant 0 : i32
    %c0_i32_0 = arith.constant 0 : i32
    %c0_i32_1 = arith.constant 0 : i32
    %c0_i32_2 = arith.constant 0 : i32
    return %arg0, %c0_i32, %c0_i32_0, %c0_i32_1 : i32, i32, i32, i32
  }
  func.func @transform_1(%arg0: i32) -> (i32, i32, i32) {
    %c0_i32 = arith.constant 0 : i32
    %c0_i32_0 = arith.constant 0 : i32
    %c0_i32_1 = arith.constant 0 : i32
    return %arg0, %c0_i32, %c0_i32_0 : i32, i32, i32
  }
  func.func @transform_2(%arg0: i32) -> (i32, i32, i32) {
    %c0_i32 = arith.constant 0 : i32
    %c0_i32_0 = arith.constant 0 : i32
    %c0_i32_1 = arith.constant 0 : i32
    return %arg0, %c0_i32, %c0_i32_0 : i32, i32, i32
  }
}

</mosaic_0001>

<llo_original>
// kernel: _batched_loss_jit.1
$region0: #{_batched_loss_jit.1}
  #allocation0 [shape = 'u32[]', space=smem, size = 0x4, offset = 0x4, fixed_abs, tag = 'smem constant byte address 0x4 - core index']
  #allocation1 [shape = 'u32[144,128]{1,0:T(1,128)}', space=vmem, size = 0x12000, scoped, tag = 'internal scratch']
  %s0 = inlined_call_operand.hbm [shape: f32[2,3,8,128], index: 0, kind: input, shape index: {}]
  %s1 = inlined_call_operand.hbm [shape: f32[2,8,128], index: 1, kind: input, shape index: {}]
  %s2 = inlined_call_operand.vmem [shape: f32[2,8,128], index: 2, kind: output, shape index: {}]
  %s3 = sld [smem:[#allocation0]]
  $region49: #{_batched_loss_jit.1} parent=0
    _
  %s5 = ssub.s32 1, %s3
  %s6 = scalar_select 0, %s5, %s3
  $region1: #{_batched_loss_jit.1} parent=0
    #allocation2 [shape = 'u8[24576]{0}', space=vmem, size = 0x6000, scoped, tag = 'input window, operand 0']
    #allocation3 [shape = 's32[2]{0}', space=sflag, size = 0x8, scoped, tag = 'scoped memory for _batched_loss_jit.1']
    #allocation4 [shape = 'u8[8192]{0}', space=vmem, size = 0x2000, scoped, tag = 'input window, operand 1']
    #allocation5 [shape = 's32[2]{0}', space=sflag, size = 0x8, scoped, tag = 'scoped memory for _batched_loss_jit.1']
    %7 = vsyncpa [#allocation3], 0
    %s8 = scalar_lea.sflag [#allocation3], 1
    %9 = vsyncpa %s8, 0
    %10 = vsyncpa [#allocation5], 0
    %s11 = scalar_lea.sflag [#allocation5], 1
    %12 = vsyncpa %s11, 0
    loop: start=0, step=1, limit=4
    $region2: #{_batched_loss_jit.1} parent=1 // loop_pre_header
      _
    $region3: #{_batched_loss_jit.1} parent=1 // loop_header
      %s14 = sphi 0, %s18
      %p15 = scmp.ge.s32.totalorder %s14, 4
      %s24 = sphi 0, %s26
      %s27 = sphi 0, %s24
      %s28 = sphi 0, %s27
      %s44 = sphi 0, %s28
      %s50 = sphi 0, %s52
      %s53 = sphi 0, %s50
      %s54 = sphi 0, %s53
      %s70 = sphi 0, %s54
      %s76 = sphi 0, %s78
      %s79 = sphi 0, %s76
      %s80 = sphi 0, %s79
      %s96 = sphi 0, %s80
    $region4: #{_batched_loss_jit.1} parent=1 // loop_header_branch
      %17 = sbr.rel (%p15) target = $region8
    $region5: #{_batched_loss_jit.1} parent=1 // loop_body
      %s19 = ssub.s32 %s14, 1
      %s20 = ssub.s32 %s14, 2
      %s21 = sadd.s32 %s14, 1
      %s22 = ssub.s32 %s14, %s21
      %p23 = scmp.eq.s32.totalorder %s22, 0
      %s25 = sadd.s32 %s24, 1
      %s26 = scalar_select %p23, %s24, %s25
      %p29 = pneg %p23
      %p30 = scmp.eq.s32.totalorder %s14, 1
      %p31 = por %p29, %p30
      %p32 = scmp.ne.s32.totalorder %s24, %s27
      %p33 = scmp.eq.s32.totalorder %s14, 0
      %p34 = por %p32, %p33
      %p35 = scmp.ne.s32.totalorder %s24, %s27
      %p36 = scmp.eq.s32.totalorder %s19, 1
      %p37 = por %p35, %p36
      %p38 = scmp.ne.s32.totalorder %s27, %s28
      %p39 = scmp.eq.s32.totalorder %s19, 0
      %p40 = por %p38, %p39
      %p41 = scmp.ne.s32.totalorder %s27, %s28
      %p42 = scmp.eq.s32.totalorder %s20, 1
      %p43 = por %p41, %p42
      %p45 = scmp.ne.s32.totalorder %s28, %s44
      %p46 = scmp.eq.s32.totalorder %s20, 0
      %p47 = por %p45, %p46
      %s48 = ssub.s32 %s14, %s21
      %p49 = scmp.eq.s32.totalorder %s48, 0
      %s51 = sadd.s32 %s50, 1
      %s52 = scalar_select %p49, %s50, %s51
      %p55 = pneg %p49
      %p56 = scmp.eq.s32.totalorder %s14, 1
      %p57 = por %p55, %p56
      %p58 = scmp.ne.s32.totalorder %s50, %s53
      %p59 = scmp.eq.s32.totalorder %s14, 0
      %p60 = por %p58, %p59
      %p61 = scmp.ne.s32.totalorder %s50, %s53
      %p62 = scmp.eq.s32.totalorder %s19, 1
      %p63 = por %p61, %p62
      %p64 = scmp.ne.s32.totalorder %s53, %s54
      %p65 = scmp.eq.s32.totalorder %s19, 0
      %p66 = por %p64, %p65
      %p67 = scmp.ne.s32.totalorder %s53, %s54
      %p68 = scmp.eq.s32.totalorder %s20, 1
      %p69 = por %p67, %p68
      %p71 = scmp.ne.s32.totalorder %s54, %s70
      %p72 = scmp.eq.s32.totalorder %s20, 0
      %p73 = por %p71, %p72
      %s74 = ssub.s32 %s14, %s21
      %p75 = scmp.eq.s32.totalorder %s74, 0
      %s77 = sadd.s32 %s76, 1
      %s78 = scalar_select %p75, %s76, %s77
      %p81 = pneg %p75
      %p82 = scmp.eq.s32.totalorder %s14, 1
      %p83 = por %p81, %p82
      %p84 = scmp.ne.s32.totalorder %s76, %s79
      %p85 = scmp.eq.s32.totalorder %s14, 0
      %p86 = por %p84, %p85
      %p87 = scmp.ne.s32.totalorder %s76, %s79
      %p88 = scmp.eq.s32.totalorder %s19, 1
      %p89 = por %p87, %p88
      %p90 = scmp.ne.s32.totalorder %s79, %s80
      %p91 = scmp.eq.s32.totalorder %s19, 0
      %p92 = por %p90, %p91
      %p93 = scmp.ne.s32.totalorder %s79, %s80
      %p94 = scmp.eq.s32.totalorder %s20, 1
      %p95 = por %p93, %p94
      %p97 = scmp.ne.s32.totalorder %s80, %s96
      %p98 = scmp.eq.s32.totalorder %s20, 0
      %p99 = por %p97, %p98
      %p100 = scmp.le.s32.totalorder 1, %s14
      %p101 = scmp.lt.s32.totalorder %s14, 3
      %p102 = pnand %p100, %p101
      %p103 = pneg %p102
      // Predicated region
      $region9: #{_batched_loss_jit.1} parent=5 // pred_check
        _
      $region10: #{_batched_loss_jit.1} parent=5 // pred_check_branch
        %105 = sbr.rel (%p102) target = $region12
      $region11: #{_batched_loss_jit.1} parent=5 // pred_region
        %s106 = ssub.s32 %s14, 1
      $region12: #{_batched_loss_jit.1} parent=5 // pred_fallthru
        _
      %p107 = scmp.lt.s32.totalorder %s14, 2
      // Predicated region
      $region13: #{_batched_loss_jit.1} parent=5 // pred_check
        %p108 = pneg %p107
      $region14: #{_batched_loss_jit.1} parent=5 // pred_check_branch
        %110 = sbr.rel (%p108) target = $region16
      $region15: #{_batched_loss_jit.1} parent=5 // pred_region
        // Predicated region
        $region17: #{_batched_loss_jit.1} parent=15 // pred_check
          %p111 = pneg %p34
        $region18: #{_batched_loss_jit.1} parent=15 // pred_check_branch
          %113 = sbr.rel (%p111) target = $region20
        $region19: #{_batched_loss_jit.1} parent=15 // pred_region
          %s114 = sand.u32 %s24, 1
          %s115 = scalar_lea.sflag [#allocation3], %s114
          %s116 = sand.u32 %s24, 1
          %s117 = smul.addr %s116, 24
          %s118 = scalar_lea.vmem [#allocation2], %s117
          %s120 = ssub.s32 384, 384
          %121 = vsyncadd %s115, %s120
          %s122 = smul.addr %s14, 3
          %s123 = smul.addr %s122, 128
          %s124 = scalar_lea.hbm %s0, %s123
          %s125 = sshll.u32 %s118, 4
          %s126 = int_to_ptr.vmem [resolvable:$true] %s125
          %131 = dma.hbm_to_vmem [thread:$0]  %s124, 384, %s126, %s115, 128, 128, 8
        $region20: #{_batched_loss_jit.1} parent=15 // pred_fallthru
          _
        // Predicated region
        $region21: #{_batched_loss_jit.1} parent=15 // pred_check
          %p132 = pneg %p60
        $region22: #{_batched_loss_jit.1} parent=15 // pred_check_branch
          %134 = sbr.rel (%p132) target = $region24
        $region23: #{_batched_loss_jit.1} parent=15 // pred_region
          %s135 = sand.u32 %s50, 1
          %s136 = scalar_lea.sflag [#allocation5], %s135
          %s137 = sand.u32 %s50, 1
          %s138 = smul.addr %s137, 8
          %s139 = scalar_lea.vmem [#allocation4], %s138
          %s141 = ssub.s32 128, 128
          %142 = vsyncadd %s136, %s141
          %s143 = smul.addr %s14, 128
          %s144 = scalar_lea.hbm %s1, %s143
          %s146 = sshll.u32 %s139, 4
          %s147 = int_to_ptr.vmem [resolvable:$true] %s146
          %149 = dma.hbm_to_vmem [thread:$0]  %s144, 128, %s147, %s136
        $region24: #{_batched_loss_jit.1} parent=15 // pred_fallthru
          _
      $region16: #{_batched_loss_jit.1} parent=5 // pred_fallthru
        _
      %p150 = scmp.le.s32.totalorder 1, %s14
      %p151 = scmp.lt.s32.totalorder %s14, 3
      %p152 = pnand %p150, %p151
      %p153 = pneg %p152
      // Predicated region
      $region25: #{_batched_loss_jit.1} parent=5 // pred_check
        _
      $region26: #{_batched_loss_jit.1} parent=5 // pred_check_branch
        %155 = sbr.rel (%p152) target = $region28
      $region27: #{_batched_loss_jit.1} parent=5 // pred_region
        %s156 = ssub.s32 %s14, 1
        %s157 = sand.u32 %s27, 1
        %s158 = scalar_lea.sflag [#allocation3], %s157
        %s159 = sand.u32 %s27, 1
        %s160 = smul.addr %s159, 24
        %s161 = scalar_lea.vmem [#allocation2], %s160
        // Predicated region
        $region29: #{_batched_loss_jit.1} parent=27 // pred_check
          %p162 = pneg %p40
        $region30: #{_batched_loss_jit.1} parent=27 // pred_check_branch
          %164 = sbr.rel (%p162) target = $region32
        $region31: #{_batched_loss_jit.1} parent=27 // pred_region
          %165 = dma.done %s158, 384
        $region32: #{_batched_loss_jit.1} parent=27 // pred_fallthru
          _
        %s166 = sand.u32 %s53, 1
        %s167 = scalar_lea.sflag [#allocation5], %s166
        %s168 = sand.u32 %s53, 1
        %s169 = smul.addr %s168, 8
        %s170 = scalar_lea.vmem [#allocation4], %s169
        // Predicated region
        $region33: #{_batched_loss_jit.1} parent=27 // pred_check
          %p171 = pneg %p66
        $region34: #{_batched_loss_jit.1} parent=27 // pred_check_branch
          %173 = sbr.rel (%p171) target = $region36
        $region35: #{_batched_loss_jit.1} parent=27 // pred_region
          %174 = dma.done %s167, 128
        $region36: #{_batched_loss_jit.1} parent=27 // pred_fallthru
          _
        %s175 = sand.u32 %s27, 1
        %s176 = scalar_lea.sflag [#allocation3], %s175
        %s177 = sand.u32 %s27, 1
        %s178 = smul.addr %s177, 24
        %s179 = scalar_lea.vmem [#allocation2], %s178
        %p180 = pneg %p40
        %p181 = pneg %p37
        %s182 = sand.u32 %s53, 1
        %s183 = scalar_lea.sflag [#allocation5], %s182
        %s184 = sand.u32 %s53, 1
        %s185 = smul.addr %s184, 8
        %s186 = scalar_lea.vmem [#allocation4], %s185
        %p187 = pneg %p66
        %p188 = pneg %p63
        %p189 = pneg %p92
        %p190 = pneg %p89
        %p191 = scmp.lt.s32.totalorder %s19, 1
        %s192 = scalar_select %p191, %s19, 1
        %s193 = smul.addr %s192, 8
        %s194 = scalar_lea.vmem %s2, %s193
        %p195 = scmp.lt.s32.totalorder %s19, 1
        %s196 = scalar_select %p195, %s19, 1
        %s197 = smul.addr %s196, 8
        %s198 = scalar_lea.vmem %s2, %s197
        %v199 = vld [vmem:[%s161] sm:$0xff]
        %s200 = scalar_lea.vmem %s161, 16 [#allocation2]
        %v201 = vld [vmem:[%s200] sm:$0xff]
        %v202 = vld [vmem:[%s170] sm:$0xff]
        %v203 = vlaneseq
        %v204 = vand.u32 %v203, 127
        %v205 = vcvt.s32.f32 %v204
        %207 = vset.pattern.permute.xlu0 11
        %208 = vperm.xlu0 %207, %v202
        %v209 = vpop.permute.xlu0 %208
        %vm211 = vcmp.lt.f32.partialorder %v205, %v209
        %v212 = vsel %vm211, 1, 0
        %v213 = vcvt.s32.f32 %v212
        %214 = vadd.xlane.f32.xlu0 %v213
        %v215 = vpop.xlane.xlu0 %214
        %v216 = vmax.f32 %v215, 1.0
        %v217 = vrcp.pop %v216
        %v218 = vsub.f32 1.0, %v213
        %v219 = vmul.f32 %v218, 10000.0
        %v220 = vadd.f32 %v199, %v219
        %v221 = vlaneseq
        %v222 = vshrl.u32 %v221, 7
        %v223 = vsub.s32 0, %v222
        %v224 = vrot.slane %v220, %v223
        %226 = vbcast.lane.b32.xlu0 %v224, 256
        %v227 = vpop.permute.xlu0 %226
        %s229 = sor.u32 256, 8
        %230 = vbcast.lane.b32.xlu0 %v224, %s229
        %v231 = vpop.permute.xlu0 %230
        %s233 = sor.u32 256, 16
        %234 = vbcast.lane.b32.xlu0 %v224, %s233
        %v235 = vpop.permute.xlu0 %234
        %s237 = sor.u32 256, 24
        %238 = vbcast.lane.b32.xlu0 %v224, %s237
        %v239 = vpop.permute.xlu0 %238
        %s241 = sor.u32 256, 32
        %242 = vbcast.lane.b32.xlu0 %v224, %s241
        %v243 = vpop.permute.xlu0 %242
        %s245 = sor.u32 256, 40
        %246 = vbcast.lane.b32.xlu0 %v224, %s245
        %v247 = vpop.permute.xlu0 %246
        %s249 = sor.u32 256, 48
        %250 = vbcast.lane.b32.xlu0 %v224, %s249
        %v251 = vpop.permute.xlu0 %250
        %s253 = sor.u32 256, 56
        %254 = vbcast.lane.b32.xlu0 %v224, %s253
        %v255 = vpop.permute.xlu0 %254
        %s257 = sor.u32 256, 64
        %258 = vbcast.lane.b32.xlu0 %v224, %s257
        %v259 = vpop.permute.xlu0 %258
        %s261 = sor.u32 256, 72
        %262 = vbcast.lane.b32.xlu0 %v224, %s261
        %v263 = vpop.permute.xlu0 %262
        %s265 = sor.u32 256, 80
        %266 = vbcast.lane.b32.xlu0 %v224, %s265
        %v267 = vpop.permute.xlu0 %266
        %s269 = sor.u32 256, 88
        %270 = vbcast.lane.b32.xlu0 %v224, %s269
        %v271 = vpop.permute.xlu0 %270
        %s273 = sor.u32 256, 96
        %274 = vbcast.lane.b32.xlu0 %v224, %s273
        %v275 = vpop.permute.xlu0 %274
        %s277 = sor.u32 256, 104
        %278 = vbcast.lane.b32.xlu0 %v224, %s277
        %v279 = vpop.permute.xlu0 %278
        %s281 = sor.u32 256, 112
        %282 = vbcast.lane.b32.xlu0 %v224, %s281
        %v283 = vpop.permute.xlu0 %282
        %s285 = sor.u32 256, 120
        %286 = vbcast.lane.b32.xlu0 %v224, %s285
        %v287 = vpop.permute.xlu0 %286
        %v288 = vlaneseq
        %v289 = vshrl.u32 %v288, 7
        %v290 = vsub.s32 1, %v289
        %v291 = vrot.slane %v220, %v290
        %293 = vbcast.lane.b32.xlu0 %v291, 256
        %v294 = vpop.permute.xlu0 %293
        %s296 = sor.u32 256, 8
        %297 = vbcast.lane.b32.xlu0 %v291, %s296
        %v298 = vpop.permute.xlu0 %297
        %s300 = sor.u32 256, 16
        %301 = vbcast.lane.b32.xlu0 %v291, %s300
        %v302 = vpop.permute.xlu0 %301
        %s304 = sor.u32 256, 24
        %305 = vbcast.lane.b32.xlu0 %v291, %s304
        %v306 = vpop.permute.xlu0 %305
        %s308 = sor.u32 256, 32
        %309 = vbcast.lane.b32.xlu0 %v291, %s308
        %v310 = vpop.permute.xlu0 %309
        %s312 = sor.u32 256, 40
        %313 = vbcast.lane.b32.xlu0 %v291, %s312
        %v314 = vpop.permute.xlu0 %313
        %s316 = sor.u32 256, 48
        %317 = vbcast.lane.b32.xlu0 %v291, %s316
        %v318 = vpop.permute.xlu0 %317
        %s320 = sor.u32 256, 56
        %321 = vbcast.lane.b32.xlu0 %v291, %s320
        %v322 = vpop.permute.xlu0 %321
        %s324 = sor.u32 256, 64
        %325 = vbcast.lane.b32.xlu0 %v291, %s324
        %v326 = vpop.permute.xlu0 %325
        %s328 = sor.u32 256, 72
        %329 = vbcast.lane.b32.xlu0 %v291, %s328
        %v330 = vpop.permute.xlu0 %329
        %s332 = sor.u32 256, 80
        %333 = vbcast.lane.b32.xlu0 %v291, %s332
        %v334 = vpop.permute.xlu0 %333
        %s336 = sor.u32 256, 88
        %337 = vbcast.lane.b32.xlu0 %v291, %s336
        %v338 = vpop.permute.xlu0 %337
        %s340 = sor.u32 256, 96
        %341 = vbcast.lane.b32.xlu0 %v291, %s340
        %v342 = vpop.permute.xlu0 %341
        %s344 = sor.u32 256, 104
        %345 = vbcast.lane.b32.xlu0 %v291, %s344
        %v346 = vpop.permute.xlu0 %345
        %s348 = sor.u32 256, 112
        %349 = vbcast.lane.b32.xlu0 %v291, %s348
        %v350 = vpop.permute.xlu0 %349
        %s352 = sor.u32 256, 120
        %353 = vbcast.lane.b32.xlu0 %v291, %s352
        %v354 = vpop.permute.xlu0 %353
        %v355 = vlaneseq
        %v356 = vshrl.u32 %v355, 7
        %v357 = vsub.s32 2, %v356
        %v358 = vrot.slane %v220, %v357
        %360 = vbcast.lane.b32.xlu0 %v358, 256
        %v361 = vpop.permute.xlu0 %360
        %s363 = sor.u32 256, 8
        %364 = vbcast.lane.b32.xlu0 %v358, %s363
        %v365 = vpop.permute.xlu0 %364
        %s367 = sor.u32 256, 16
        %368 = vbcast.lane.b32.xlu0 %v358, %s367
        %v369 = vpop.permute.xlu0 %368
        %s371 = sor.u32 256, 24
        %372 = vbcast.lane.b32.xlu0 %v358, %s371
        %v373 = vpop.permute.xlu0 %372
        %s375 = sor.u32 256, 32
        %376 = vbcast.lane.b32.xlu0 %v358, %s375
        %v377 = vpop.permute.xlu0 %376
        %s379 = sor.u32 256, 40
        %380 = vbcast.lane.b32.xlu0 %v358, %s379
        %v381 = vpop.permute.xlu0 %380
        %s383 = sor.u32 256, 48
        %384 = vbcast.lane.b32.xlu0 %v358, %s383
        %v385 = vpop.permute.xlu0 %384
        %s387 = sor.u32 256, 56
        %388 = vbcast.lane.b32.xlu0 %v358, %s387
        %v389 = vpop.permute.xlu0 %388
        %s391 = sor.u32 256, 64
        %392 = vbcast.lane.b32.xlu0 %v358, %s391
        %v393 = vpop.permute.xlu0 %392
        %s395 = sor.u32 256, 72
        %396 = vbcast.lane.b32.xlu0 %v358, %s395
        %v397 = vpop.permute.xlu0 %396
        %s399 = sor.u32 256, 80
        %400 = vbcast.lane.b32.xlu0 %v358, %s399
        %v401 = vpop.permute.xlu0 %400
        %s403 = sor.u32 256, 88
        %404 = vbcast.lane.b32.xlu0 %v358, %s403
        %v405 = vpop.permute.xlu0 %404
        %s407 = sor.u32 256, 96
        %408 = vbcast.lane.b32.xlu0 %v358, %s407
        %v409 = vpop.permute.xlu0 %408
        %s411 = sor.u32 256, 104
        %412 = vbcast.lane.b32.xlu0 %v358, %s411
        %v413 = vpop.permute.xlu0 %412
        %s415 = sor.u32 256, 112
        %416 = vbcast.lane.b32.xlu0 %v358, %s415
        %v417 = vpop.permute.xlu0 %416
        %s419 = sor.u32 256, 120
        %420 = vbcast.lane.b32.xlu0 %v358, %s419
        %v421 = vpop.permute.xlu0 %420
        %v422 = vlaneseq
        %v423 = vshrl.u32 %v422, 7
        %v424 = vsub.s32 3, %v423
        %v425 = vrot.slane %v220, %v424
        %427 = vbcast.lane.b32.xlu0 %v425, 256
        %v428 = vpop.permute.xlu0 %427
        %s430 = sor.u32 256, 8
        %431 = vbcast.lane.b32.xlu0 %v425, %s430
        %v432 = vpop.permute.xlu0 %431
        %s434 = sor.u32 256, 16
        %435 = vbcast.lane.b32.xlu0 %v425, %s434
        %v436 = vpop.permute.xlu0 %435
        %s438 = sor.u32 256, 24
        %439 = vbcast.lane.b32.xlu0 %v425, %s438
        %v440 = vpop.permute.xlu0 %439
        %s442 = sor.u32 256, 32
        %443 = vbcast.lane.b32.xlu0 %v425, %s442
        %v444 = vpop.permute.xlu0 %443
        %s446 = sor.u32 256, 40
        %447 = vbcast.lane.b32.xlu0 %v425, %s446
        %v448 = vpop.permute.xlu0 %447
        %s450 = sor.u32 256, 48
        %451 = vbcast.lane.b32.xlu0 %v425, %s450
        %v452 = vpop.permute.xlu0 %451
        %s454 = sor.u32 256, 56
        %455 = vbcast.lane.b32.xlu0 %v425, %s454
        %v456 = vpop.permute.xlu0 %455
        %s458 = sor.u32 256, 64
        %459 = vbcast.lane.b32.xlu0 %v425, %s458
        %v460 = vpop.permute.xlu0 %459
        %s462 = sor.u32 256, 72
        %463 = vbcast.lane.b32.xlu0 %v425, %s462
        %v464 = vpop.permute.xlu0 %463
        %s466 = sor.u32 256, 80
        %467 = vbcast.lane.b32.xlu0 %v425, %s466
        %v468 = vpop.permute.xlu0 %467
        %s470 = sor.u32 256, 88
        %471 = vbcast.lane.b32.xlu0 %v425, %s470
        %v472 = vpop.permute.xlu0 %471
        %s474 = sor.u32 256, 96
        %475 = vbcast.lane.b32.xlu0 %v425, %s474
        %v476 = vpop.permute.xlu0 %475
        %s478 = sor.u32 256, 104
        %479 = vbcast.lane.b32.xlu0 %v425, %s478
        %v480 = vpop.permute.xlu0 %479
        %s482 = sor.u32 256, 112
        %483 = vbcast.lane.b32.xlu0 %v425, %s482
        %v484 = vpop.permute.xlu0 %483
        %s486 = sor.u32 256, 120
        %487 = vbcast.lane.b32.xlu0 %v425, %s486
        %v488 = vpop.permute.xlu0 %487
        %v489 = vlaneseq
        %v490 = vshrl.u32 %v489, 7
        %v491 = vsub.s32 4, %v490
        %v492 = vrot.slane %v220, %v491
        %494 = vbcast.lane.b32.xlu0 %v492, 256
        %v495 = vpop.permute.xlu0 %494
        %s497 = sor.u32 256, 8
        %498 = vbcast.lane.b32.xlu0 %v492, %s497
        %v499 = vpop.permute.xlu0 %498
        %s501 = sor.u32 256, 16
        %502 = vbcast.lane.b32.xlu0 %v492, %s501
        %v503 = vpop.permute.xlu0 %502
        %s505 = sor.u32 256, 24
        %506 = vbcast.lane.b32.xlu0 %v492, %s505
        %v507 = vpop.permute.xlu0 %506
        %s509 = sor.u32 256, 32
        %510 = vbcast.lane.b32.xlu0 %v492, %s509
        %v511 = vpop.permute.xlu0 %510
        %s513 = sor.u32 256, 40
        %514 = vbcast.lane.b32.xlu0 %v492, %s513
        %v515 = vpop.permute.xlu0 %514
        %s517 = sor.u32 256, 48
        %518 = vbcast.lane.b32.xlu0 %v492, %s517
        %v519 = vpop.permute.xlu0 %518
        %s521 = sor.u32 256, 56
        %522 = vbcast.lane.b32.xlu0 %v492, %s521
        %v523 = vpop.permute.xlu0 %522
        %s525 = sor.u32 256, 64
        %526 = vbcast.lane.b32.xlu0 %v492, %s525
        %v527 = vpop.permute.xlu0 %526
        %s529 = sor.u32 256, 72
        %530 = vbcast.lane.b32.xlu0 %v492, %s529
        %v531 = vpop.permute.xlu0 %530
        %s533 = sor.u32 256, 80
        %534 = vbcast.lane.b32.xlu0 %v492, %s533
        %v535 = vpop.permute.xlu0 %534
        %s537 = sor.u32 256, 88
        %538 = vbcast.lane.b32.xlu0 %v492, %s537
        %v539 = vpop.permute.xlu0 %538
        %s541 = sor.u32 256, 96
        %542 = vbcast.lane.b32.xlu0 %v492, %s541
        %v543 = vpop.permute.xlu0 %542
        %s545 = sor.u32 256, 104
        %546 = vbcast.lane.b32.xlu0 %v492, %s545
        %v547 = vpop.permute.xlu0 %546
        %s549 = sor.u32 256, 112
        %550 = vbcast.lane.b32.xlu0 %v492, %s549
        %v551 = vpop.permute.xlu0 %550
        %s553 = sor.u32 256, 120
        %554 = vbcast.lane.b32.xlu0 %v492, %s553
        %v555 = vpop.permute.xlu0 %554
        %v556 = vlaneseq
        %v557 = vshrl.u32 %v556, 7
        %v558 = vsub.s32 5, %v557
        %v559 = vrot.slane %v220, %v558
        %561 = vbcast.lane.b32.xlu0 %v559, 256
        %v562 = vpop.permute.xlu0 %561
        %s564 = sor.u32 256, 8
        %565 = vbcast.lane.b32.xlu0 %v559, %s564
        %v566 = vpop.permute.xlu0 %565
        %s568 = sor.u32 256, 16
        %569 = vbcast.lane.b32.xlu0 %v559, %s568
        %v570 = vpop.permute.xlu0 %569
        %s572 = sor.u32 256, 24
        %573 = vbcast.lane.b32.xlu0 %v559, %s572
        %v574 = vpop.permute.xlu0 %573
        %s576 = sor.u32 256, 32
        %577 = vbcast.lane.b32.xlu0 %v559, %s576
        %v578 = vpop.permute.xlu0 %577
        %s580 = sor.u32 256, 40
        %581 = vbcast.lane.b32.xlu0 %v559, %s580
        %v582 = vpop.permute.xlu0 %581
        %s584 = sor.u32 256, 48
        %585 = vbcast.lane.b32.xlu0 %v559, %s584
        %v586 = vpop.permute.xlu0 %585
        %s588 = sor.u32 256, 56
        %589 = vbcast.lane.b32.xlu0 %v559, %s588
        %v590 = vpop.permute.xlu0 %589
        %s592 = sor.u32 256, 64
        %593 = vbcast.lane.b32.xlu0 %v559, %s592
        %v594 = vpop.permute.xlu0 %593
        %s596 = sor.u32 256, 72
        %597 = vbcast.lane.b32.xlu0 %v559, %s596
        %v598 = vpop.permute.xlu0 %597
        %s600 = sor.u32 256, 80
        %601 = vbcast.lane.b32.xlu0 %v559, %s600
        %v602 = vpop.permute.xlu0 %601
        %s604 = sor.u32 256, 88
        %605 = vbcast.lane.b32.xlu0 %v559, %s604
        %v606 = vpop.permute.xlu0 %605
        %s608 = sor.u32 256, 96
        %609 = vbcast.lane.b32.xlu0 %v559, %s608
        %v610 = vpop.permute.xlu0 %609
        %s612 = sor.u32 256, 104
        %613 = vbcast.lane.b32.xlu0 %v559, %s612
        %v614 = vpop.permute.xlu0 %613
        %s616 = sor.u32 256, 112
        %617 = vbcast.lane.b32.xlu0 %v559, %s616
        %v618 = vpop.permute.xlu0 %617
        %s620 = sor.u32 256, 120
        %621 = vbcast.lane.b32.xlu0 %v559, %s620
        %v622 = vpop.permute.xlu0 %621
        %v623 = vlaneseq
        %v624 = vshrl.u32 %v623, 7
        %v625 = vsub.s32 6, %v624
        %v626 = vrot.slane %v220, %v625
        %628 = vbcast.lane.b32.xlu0 %v626, 256
        %v629 = vpop.permute.xlu0 %628
        %s631 = sor.u32 256, 8
        %632 = vbcast.lane.b32.xlu0 %v626, %s631
        %v633 = vpop.permute.xlu0 %632
        %s635 = sor.u32 256, 16
        %636 = vbcast.lane.b32.xlu0 %v626, %s635
        %v637 = vpop.permute.xlu0 %636
        %s639 = sor.u32 256, 24
        %640 = vbcast.lane.b32.xlu0 %v626, %s639
        %v641 = vpop.permute.xlu0 %640
        %s643 = sor.u32 256, 32
        %644 = vbcast.lane.b32.xlu0 %v626, %s643
        %v645 = vpop.permute.xlu0 %644
        %s647 = sor.u32 256, 40
        %648 = vbcast.lane.b32.xlu0 %v626, %s647
        %v649 = vpop.permute.xlu0 %648
        %s651 = sor.u32 256, 48
        %652 = vbcast.lane.b32.xlu0 %v626, %s651
        %v653 = vpop.permute.xlu0 %652
        %s655 = sor.u32 256, 56
        %656 = vbcast.lane.b32.xlu0 %v626, %s655
        %v657 = vpop.permute.xlu0 %656
        %s659 = sor.u32 256, 64
        %660 = vbcast.lane.b32.xlu0 %v626, %s659
        %v661 = vpop.permute.xlu0 %660
        %s663 = sor.u32 256, 72
        %664 = vbcast.lane.b32.xlu0 %v626, %s663
        %v665 = vpop.permute.xlu0 %664
        %s667 = sor.u32 256, 80
        %668 = vbcast.lane.b32.xlu0 %v626, %s667
        %v669 = vpop.permute.xlu0 %668
        %s671 = sor.u32 256, 88
        %672 = vbcast.lane.b32.xlu0 %v626, %s671
        %v673 = vpop.permute.xlu0 %672
        %s675 = sor.u32 256, 96
        %676 = vbcast.lane.b32.xlu0 %v626, %s675
        %v677 = vpop.permute.xlu0 %676
        %s679 = sor.u32 256, 104
        %680 = vbcast.lane.b32.xlu0 %v626, %s679
        %v681 = vpop.permute.xlu0 %680
        %s683 = sor.u32 256, 112
        %684 = vbcast.lane.b32.xlu0 %v626, %s683
        %v685 = vpop.permute.xlu0 %684
        %s687 = sor.u32 256, 120
        %688 = vbcast.lane.b32.xlu0 %v626, %s687
        %v689 = vpop.permute.xlu0 %688
        %v690 = vlaneseq
        %v691 = vshrl.u32 %v690, 7
        %v692 = vsub.s32 7, %v691
        %v693 = vrot.slane %v220, %v692
        %695 = vbcast.lane.b32.xlu0 %v693, 256
        %v696 = vpop.permute.xlu0 %695
        %s698 = sor.u32 256, 8
        %699 = vbcast.lane.b32.xlu0 %v693, %s698
        %v700 = vpop.permute.xlu0 %699
        %s702 = sor.u32 256, 16
        %703 = vbcast.lane.b32.xlu0 %v693, %s702
        %v704 = vpop.permute.xlu0 %703
        %s706 = sor.u32 256, 24
        %707 = vbcast.lane.b32.xlu0 %v693, %s706
        %v708 = vpop.permute.xlu0 %707
        %s710 = sor.u32 256, 32
        %711 = vbcast.lane.b32.xlu0 %v693, %s710
        %v712 = vpop.permute.xlu0 %711
        %s714 = sor.u32 256, 40
        %715 = vbcast.lane.b32.xlu0 %v693, %s714
        %v716 = vpop.permute.xlu0 %715
        %s718 = sor.u32 256, 48
        %719 = vbcast.lane.b32.xlu0 %v693, %s718
        %v720 = vpop.permute.xlu0 %719
        %s722 = sor.u32 256, 56
        %723 = vbcast.lane.b32.xlu0 %v693, %s722
        %v724 = vpop.permute.xlu0 %723
        %s726 = sor.u32 256, 64
        %727 = vbcast.lane.b32.xlu0 %v693, %s726
        %v728 = vpop.permute.xlu0 %727
        %s730 = sor.u32 256, 72
        %731 = vbcast.lane.b32.xlu0 %v693, %s730
        %v732 = vpop.permute.xlu0 %731
        %s734 = sor.u32 256, 80
        %735 = vbcast.lane.b32.xlu0 %v693, %s734
        %v736 = vpop.permute.xlu0 %735
        %s738 = sor.u32 256, 88
        %739 = vbcast.lane.b32.xlu0 %v693, %s738
        %v740 = vpop.permute.xlu0 %739
        %s742 = sor.u32 256, 96
        %743 = vbcast.lane.b32.xlu0 %v693, %s742
        %v744 = vpop.permute.xlu0 %743
        %s746 = sor.u32 256, 104
        %747 = vbcast.lane.b32.xlu0 %v693, %s746
        %v748 = vpop.permute.xlu0 %747
        %s750 = sor.u32 256, 112
        %751 = vbcast.lane.b32.xlu0 %v693, %s750
        %v752 = vpop.permute.xlu0 %751
        %s754 = sor.u32 256, 120
        %755 = vbcast.lane.b32.xlu0 %v693, %s754
        %v756 = vpop.permute.xlu0 %755
        %v758 = vcombine.high %v220, %v220
        %v760 = vunpack.c.l.s4 1966171168
        %v761 = vunpack.c.0.s8 %v760
        %v762 = vlaneseq
        %v763 = vshrl.u32 %v762, 7
        %v764 = vsub.s32 %v761, %v763
        %v765 = vrot.slane %v220, %v764
        %v767 = vunpack.c.l.s4 1966171168
        %v768 = vunpack.c.0.s8 %v767
        %v769 = vlaneseq
        %v770 = vshrl.u32 %v769, 7
        %v771 = vsub.s32 %v768, %v770
        %v772 = vrot.slane %v758, %v771
        %v773 = vcombine.high %v765, %v765
        %v774 = vcombine.high %v772, %v772
        %v776 = vunpack.c.l.s4 1966171168
        %v777 = vunpack.c.0.s8 %v776
        %v778 = vlaneseq
        %v779 = vshrl.u32 %v778, 7
        %v780 = vsub.s32 %v777, %v779
        %v781 = vrot.slane %v765, %v780
        %v783 = vunpack.c.l.s4 1966171168
        %v784 = vunpack.c.0.s8 %v783
        %v785 = vlaneseq
        %v786 = vshrl.u32 %v785, 7
        %v787 = vsub.s32 %v784, %v786
        %v788 = vrot.slane %v772, %v787
        %v790 = vunpack.c.l.s4 1966171168
        %v791 = vunpack.c.0.s8 %v790
        %v792 = vlaneseq
        %v793 = vshrl.u32 %v792, 7
        %v794 = vsub.s32 %v791, %v793
        %v795 = vrot.slane %v773, %v794
        %v797 = vunpack.c.l.s4 1966171168
        %v798 = vunpack.c.0.s8 %v797
        %v799 = vlaneseq
        %v800 = vshrl.u32 %v799, 7
        %v801 = vsub.s32 %v798, %v800
        %v802 = vrot.slane %v774, %v801
        %v803 = vcombine.high %v781, %v781
        %v804 = vcombine.high %v788, %v788
        %v805 = vcombine.high %v795, %v795
        %v806 = vcombine.high %v802, %v802
        %v807 = vlaneseq
        %v808 = vshrl.u32 %v807, 7
        %v809 = vsub.s32 0, %v808
        %v810 = vrot.slane %v781, %v809
        %v811 = vlaneseq
        %v812 = vshrl.u32 %v811, 7
        %v813 = vsub.s32 0, %v812
        %v814 = vrot.slane %v795, %v813
        %v815 = vlaneseq
        %v816 = vshrl.u32 %v815, 7
        %v817 = vsub.s32 0, %v816
        %v818 = vrot.slane %v803, %v817
        %v819 = vlaneseq
        %v820 = vshrl.u32 %v819, 7
        %v821 = vsub.s32 0, %v820
        %v822 = vrot.slane %v805, %v821
        %v823 = vlaneseq
        %v824 = vshrl.u32 %v823, 7
        %v825 = vsub.s32 0, %v824
        %v826 = vrot.slane %v788, %v825
        %v827 = vlaneseq
        %v828 = vshrl.u32 %v827, 7
        %v829 = vsub.s32 0, %v828
        %v830 = vrot.slane %v802, %v829
        %v831 = vlaneseq
        %v832 = vshrl.u32 %v831, 7
        %v833 = vsub.s32 0, %v832
        %v834 = vrot.slane %v804, %v833
        %v835 = vlaneseq
        %v836 = vshrl.u32 %v835, 7
        %v837 = vsub.s32 0, %v836
        %v838 = vrot.slane %v806, %v837
        %v847 = vsub.f32 %v227, %v810
        %v848 = vsub.f32 %v231, %v810
        %v849 = vsub.f32 %v235, %v810
        %v850 = vsub.f32 %v239, %v810
        %v851 = vsub.f32 %v243, %v810
        %v852 = vsub.f32 %v247, %v810
        %v853 = vsub.f32 %v251, %v810
        %v854 = vsub.f32 %v255, %v810
        %v855 = vsub.f32 %v259, %v810
        %v856 = vsub.f32 %v263, %v810
        %v857 = vsub.f32 %v267, %v810
        %v858 = vsub.f32 %v271, %v810
        %v859 = vsub.f32 %v275, %v810
        %v860 = vsub.f32 %v279, %v810
        %v861 = vsub.f32 %v283, %v810
        %v862 = vsub.f32 %v287, %v810
        %v863 = vsub.f32 %v294, %v814
        %v864 = vsub.f32 %v298, %v814
        %v865 = vsub.f32 %v302, %v814
        %v866 = vsub.f32 %v306, %v814
        %v867 = vsub.f32 %v310, %v814
        %v868 = vsub.f32 %v314, %v814
        %v869 = vsub.f32 %v318, %v814
        %v870 = vsub.f32 %v322, %v814
        %v871 = vsub.f32 %v326, %v814
        %v872 = vsub.f32 %v330, %v814
        %v873 = vsub.f32 %v334, %v814
        %v874 = vsub.f32 %v338, %v814
        %v875 = vsub.f32 %v342, %v814
        %v876 = vsub.f32 %v346, %v814
        %v877 = vsub.f32 %v350, %v814
        %v878 = vsub.f32 %v354, %v814
        %v879 = vsub.f32 %v361, %v818
        %v880 = vsub.f32 %v365, %v818
        %v881 = vsub.f32 %v369, %v818
        %v882 = vsub.f32 %v373, %v818
        %v883 = vsub.f32 %v377, %v818
        %v884 = vsub.f32 %v381, %v818
        %v885 = vsub.f32 %v385, %v818
        %v886 = vsub.f32 %v389, %v818
        %v887 = vsub.f32 %v393, %v818
        %v888 = vsub.f32 %v397, %v818
        %v889 = vsub.f32 %v401, %v818
        %v890 = vsub.f32 %v405, %v818
        %v891 = vsub.f32 %v409, %v818
        %v892 = vsub.f32 %v413, %v818
        %v893 = vsub.f32 %v417, %v818
        %v894 = vsub.f32 %v421, %v818
        %v895 = vsub.f32 %v428, %v822
        %v896 = vsub.f32 %v432, %v822
        %v897 = vsub.f32 %v436, %v822
        %v898 = vsub.f32 %v440, %v822
        %v899 = vsub.f32 %v444, %v822
        %v900 = vsub.f32 %v448, %v822
        %v901 = vsub.f32 %v452, %v822
        %v902 = vsub.f32 %v456, %v822
        %v903 = vsub.f32 %v460, %v822
        %v904 = vsub.f32 %v464, %v822
        %v905 = vsub.f32 %v468, %v822
        %v906 = vsub.f32 %v472, %v822
        %v907 = vsub.f32 %v476, %v822
        %v908 = vsub.f32 %v480, %v822
        %v909 = vsub.f32 %v484, %v822
        %v910 = vsub.f32 %v488, %v822
        %v911 = vsub.f32 %v495, %v826
        %v912 = vsub.f32 %v499, %v826
        %v913 = vsub.f32 %v503, %v826
        %v914 = vsub.f32 %v507, %v826
        %v915 = vsub.f32 %v511, %v826
        %v916 = vsub.f32 %v515, %v826
        %v917 = vsub.f32 %v519, %v826
        %v918 = vsub.f32 %v523, %v826
        %v919 = vsub.f32 %v527, %v826
        %v920 = vsub.f32 %v531, %v826
        %v921 = vsub.f32 %v535, %v826
        %v922 = vsub.f32 %v539, %v826
        %v923 = vsub.f32 %v543, %v826
        %v924 = vsub.f32 %v547, %v826
        %v925 = vsub.f32 %v551, %v826
        %v926 = vsub.f32 %v555, %v826
        %v927 = vsub.f32 %v562, %v830
        %v928 = vsub.f32 %v566, %v830
        %v929 = vsub.f32 %v570, %v830
        %v930 = vsub.f32 %v574, %v830
        %v931 = vsub.f32 %v578, %v830
        %v932 = vsub.f32 %v582, %v830
        %v933 = vsub.f32 %v586, %v830
        %v934 = vsub.f32 %v590, %v830
        %v935 = vsub.f32 %v594, %v830
        %v936 = vsub.f32 %v598, %v830
        %v937 = vsub.f32 %v602, %v830
        %v938 = vsub.f32 %v606, %v830
        %v939 = vsub.f32 %v610, %v830
        %v940 = vsub.f32 %v614, %v830
        %v941 = vsub.f32 %v618, %v830
        %v942 = vsub.f32 %v622, %v830
        %v943 = vsub.f32 %v629, %v834
        %v944 = vsub.f32 %v633, %v834
        %v945 = vsub.f32 %v637, %v834
        %v946 = vsub.f32 %v641, %v834
        %v947 = vsub.f32 %v645, %v834
        %v948 = vsub.f32 %v649, %v834
        %v949 = vsub.f32 %v653, %v834
        %v950 = vsub.f32 %v657, %v834
        %v951 = vsub.f32 %v661, %v834
        %v952 = vsub.f32 %v665, %v834
        %v953 = vsub.f32 %v669, %v834
        %v954 = vsub.f32 %v673, %v834
        %v955 = vsub.f32 %v677, %v834
        %v956 = vsub.f32 %v681, %v834
        %v957 = vsub.f32 %v685, %v834
        %v958 = vsub.f32 %v689, %v834
        %v959 = vsub.f32 %v696, %v838
        %v960 = vsub.f32 %v700, %v838
        %v961 = vsub.f32 %v704, %v838
        %v962 = vsub.f32 %v708, %v838
        %v963 = vsub.f32 %v712, %v838
        %v964 = vsub.f32 %v716, %v838
        %v965 = vsub.f32 %v720, %v838
        %v966 = vsub.f32 %v724, %v838
        %v967 = vsub.f32 %v728, %v838
        %v968 = vsub.f32 %v732, %v838
        %v969 = vsub.f32 %v736, %v838
        %v970 = vsub.f32 %v740, %v838
        %v971 = vsub.f32 %v744, %v838
        %v972 = vsub.f32 %v748, %v838
        %v973 = vsub.f32 %v752, %v838
        %v974 = vsub.f32 %v756, %v838
        %v975 = vmul.f32 %v847, %v847
        %v976 = vmul.f32 %v848, %v848
        %v977 = vmul.f32 %v849, %v849
        %v978 = vmul.f32 %v850, %v850
        %v979 = vmul.f32 %v851, %v851
        %v980 = vmul.f32 %v852, %v852
        %v981 = vmul.f32 %v853, %v853
        %v982 = vmul.f32 %v854, %v854
        %v983 = vmul.f32 %v855, %v855
        %v984 = vmul.f32 %v856, %v856
        %v985 = vmul.f32 %v857, %v857
        %v986 = vmul.f32 %v858, %v858
        %v987 = vmul.f32 %v859, %v859
        %v988 = vmul.f32 %v860, %v860
        %v989 = vmul.f32 %v861, %v861
        %v990 = vmul.f32 %v862, %v862
        %v991 = vmul.f32 %v863, %v863
        %v992 = vmul.f32 %v864, %v864
        %v993 = vmul.f32 %v865, %v865
        %v994 = vmul.f32 %v866, %v866
        %v995 = vmul.f32 %v867, %v867
        %v996 = vmul.f32 %v868, %v868
        %v997 = vmul.f32 %v869, %v869
        %v998 = vmul.f32 %v870, %v870
        %v999 = vmul.f32 %v871, %v871
        %v1000 = vmul.f32 %v872, %v872
        %v1001 = vmul.f32 %v873, %v873
        %v1002 = vmul.f32 %v874, %v874
        %v1003 = vmul.f32 %v875, %v875
        %v1004 = vmul.f32 %v876, %v876
        %v1005 = vmul.f32 %v877, %v877
        %v1006 = vmul.f32 %v878, %v878
        %v1007 = vmul.f32 %v879, %v879
        %v1008 = vmul.f32 %v880, %v880
        %v1009 = vmul.f32 %v881, %v881
        %v1010 = vmul.f32 %v882, %v882
        %v1011 = vmul.f32 %v883, %v883
        %v1012 = vmul.f32 %v884, %v884
        %v1013 = vmul.f32 %v885, %v885
        %v1014 = vmul.f32 %v886, %v886
        %v1015 = vmul.f32 %v887, %v887
        %v1016 = vmul.f32 %v888, %v888
        %v1017 = vmul.f32 %v889, %v889
        %v1018 = vmul.f32 %v890, %v890
        %v1019 = vmul.f32 %v891, %v891
        %v1020 = vmul.f32 %v892, %v892
        %v1021 = vmul.f32 %v893, %v893
        %v1022 = vmul.f32 %v894, %v894
        %v1023 = vmul.f32 %v895, %v895
        %v1024 = vmul.f32 %v896, %v896
        %v1025 = vmul.f32 %v897, %v897
        %v1026 = vmul.f32 %v898, %v898
        %v1027 = vmul.f32 %v899, %v899
        %v1028 = vmul.f32 %v900, %v900
        %v1029 = vmul.f32 %v901, %v901
        %v1030 = vmul.f32 %v902, %v902
        %v1031 = vmul.f32 %v903, %v903
        %v1032 = vmul.f32 %v904, %v904
        %v1033 = vmul.f32 %v905, %v905
        %v1034 = vmul.f32 %v906, %v906
        %v1035 = vmul.f32 %v907, %v907
        %v1036 = vmul.f32 %v908, %v908
        %v1037 = vmul.f32 %v909, %v909
        %v1038 = vmul.f32 %v910, %v910
        %v1039 = vmul.f32 %v911, %v911
        %v1040 = vmul.f32 %v912, %v912
        %v1041 = vmul.f32 %v913, %v913
        %v1042 = vmul.f32 %v914, %v914
        %v1043 = vmul.f32 %v915, %v915
        %v1044 = vmul.f32 %v916, %v916
        %v1045 = vmul.f32 %v917, %v917
        %v1046 = vmul.f32 %v918, %v918
        %v1047 = vmul.f32 %v919, %v919
        %v1048 = vmul.f32 %v920, %v920
        %v1049 = vmul.f32 %v921, %v921
        %v1050 = vmul.f32 %v922, %v922
        %v1051 = vmul.f32 %v923, %v923
        %v1052 = vmul.f32 %v924, %v924
        %v1053 = vmul.f32 %v925, %v925
        %v1054 = vmul.f32 %v926, %v926
        %v1055 = vmul.f32 %v927, %v927
        %v1056 = vmul.f32 %v928, %v928
        %v1057 = vmul.f32 %v929, %v929
        %v1058 = vmul.f32 %v930, %v930
        %v1059 = vmul.f32 %v931, %v931
        %v1060 = vmul.f32 %v932, %v932
        %v1061 = vmul.f32 %v933, %v933
        %v1062 = vmul.f32 %v934, %v934
        %v1063 = vmul.f32 %v935, %v935
        %v1064 = vmul.f32 %v936, %v936
        %v1065 = vmul.f32 %v937, %v937
        %v1066 = vmul.f32 %v938, %v938
        %v1067 = vmul.f32 %v939, %v939
        %v1068 = vmul.f32 %v940, %v940
        %v1069 = vmul.f32 %v941, %v941
        %v1070 = vmul.f32 %v942, %v942
        %v1071 = vmul.f32 %v943, %v943
        %v1072 = vmul.f32 %v944, %v944
        %v1073 = vmul.f32 %v945, %v945
        %v1074 = vmul.f32 %v946, %v946
        %v1075 = vmul.f32 %v947, %v947
        %v1076 = vmul.f32 %v948, %v948
        %v1077 = vmul.f32 %v949, %v949
        %v1078 = vmul.f32 %v950, %v950
        %v1079 = vmul.f32 %v951, %v951
        %v1080 = vmul.f32 %v952, %v952
        %v1081 = vmul.f32 %v953, %v953
        %v1082 = vmul.f32 %v954, %v954
        %v1083 = vmul.f32 %v955, %v955
        %v1084 = vmul.f32 %v956, %v956
        %v1085 = vmul.f32 %v957, %v957
        %v1086 = vmul.f32 %v958, %v958
        %v1087 = vmul.f32 %v959, %v959
        %v1088 = vmul.f32 %v960, %v960
        %v1089 = vmul.f32 %v961, %v961
        %v1090 = vmul.f32 %v962, %v962
        %v1091 = vmul.f32 %v963, %v963
        %v1092 = vmul.f32 %v964, %v964
        %v1093 = vmul.f32 %v965, %v965
        %v1094 = vmul.f32 %v966, %v966
        %v1095 = vmul.f32 %v967, %v967
        %v1096 = vmul.f32 %v968, %v968
        %v1097 = vmul.f32 %v969, %v969
        %v1098 = vmul.f32 %v970, %v970
        %v1099 = vmul.f32 %v971, %v971
        %v1100 = vmul.f32 %v972, %v972
        %v1101 = vmul.f32 %v973, %v973
        %v1102 = vmul.f32 %v974, %v974
        %v1103 = vlaneseq
        %v1104 = vshrl.u32 %v1103, 7
        %v1105 = vsub.s32 0, %v1104
        %v1106 = vrot.slane %v201, %v1105
        %1108 = vbcast.lane.b32.xlu0 %v1106, 256
        %v1109 = vpop.permute.xlu0 %1108
        %s1111 = sor.u32 256, 8
        %1112 = vbcast.lane.b32.xlu0 %v1106, %s1111
        %v1113 = vpop.permute.xlu0 %1112
        %s1115 = sor.u32 256, 16
        %1116 = vbcast.lane.b32.xlu0 %v1106, %s1115
        %v1117 = vpop.permute.xlu0 %1116
        %s1119 = sor.u32 256, 24
        %1120 = vbcast.lane.b32.xlu0 %v1106, %s1119
        %v1121 = vpop.permute.xlu0 %1120
        %s1123 = sor.u32 256, 32
        %1124 = vbcast.lane.b32.xlu0 %v1106, %s1123
        %v1125 = vpop.permute.xlu0 %1124
        %s1127 = sor.u32 256, 40
        %1128 = vbcast.lane.b32.xlu0 %v1106, %s1127
        %v1129 = vpop.permute.xlu0 %1128
        %s1131 = sor.u32 256, 48
        %1132 = vbcast.lane.b32.xlu0 %v1106, %s1131
        %v1133 = vpop.permute.xlu0 %1132
        %s1135 = sor.u32 256, 56
        %1136 = vbcast.lane.b32.xlu0 %v1106, %s1135
        %v1137 = vpop.permute.xlu0 %1136
        %s1139 = sor.u32 256, 64
        %1140 = vbcast.lane.b32.xlu0 %v1106, %s1139
        %v1141 = vpop.permute.xlu0 %1140
        %s1143 = sor.u32 256, 72
        %1144 = vbcast.lane.b32.xlu0 %v1106, %s1143
        %v1145 = vpop.permute.xlu0 %1144
        %s1147 = sor.u32 256, 80
        %1148 = vbcast.lane.b32.xlu0 %v1106, %s1147
        %v1149 = vpop.permute.xlu0 %1148
        %s1151 = sor.u32 256, 88
        %1152 = vbcast.lane.b32.xlu0 %v1106, %s1151
        %v1153 = vpop.permute.xlu0 %1152
        %s1155 = sor.u32 256, 96
        %1156 = vbcast.lane.b32.xlu0 %v1106, %s1155
        %v1157 = vpop.permute.xlu0 %1156
        %s1159 = sor.u32 256, 104
        %1160 = vbcast.lane.b32.xlu0 %v1106, %s1159
        %v1161 = vpop.permute.xlu0 %1160
        %s1163 = sor.u32 256, 112
        %1164 = vbcast.lane.b32.xlu0 %v1106, %s1163
        %v1165 = vpop.permute.xlu0 %1164
        %s1167 = sor.u32 256, 120
        %1168 = vbcast.lane.b32.xlu0 %v1106, %s1167
        %v1169 = vpop.permute.xlu0 %1168
        %v1170 = vlaneseq
        %v1171 = vshrl.u32 %v1170, 7
        %v1172 = vsub.s32 1, %v1171
        %v1173 = vrot.slane %v201, %v1172
        %1175 = vbcast.lane.b32.xlu0 %v1173, 256
        %v1176 = vpop.permute.xlu0 %1175
        %s1178 = sor.u32 256, 8
        %1179 = vbcast.lane.b32.xlu0 %v1173, %s1178
        %v1180 = vpop.permute.xlu0 %1179
        %s1182 = sor.u32 256, 16
        %1183 = vbcast.lane.b32.xlu0 %v1173, %s1182
        %v1184 = vpop.permute.xlu0 %1183
        %s1186 = sor.u32 256, 24
        %1187 = vbcast.lane.b32.xlu0 %v1173, %s1186
        %v1188 = vpop.permute.xlu0 %1187
        %s1190 = sor.u32 256, 32
        %1191 = vbcast.lane.b32.xlu0 %v1173, %s1190
        %v1192 = vpop.permute.xlu0 %1191
        %s1194 = sor.u32 256, 40
        %1195 = vbcast.lane.b32.xlu0 %v1173, %s1194
        %v1196 = vpop.permute.xlu0 %1195
        %s1198 = sor.u32 256, 48
        %1199 = vbcast.lane.b32.xlu0 %v1173, %s1198
        %v1200 = vpop.permute.xlu0 %1199
        %s1202 = sor.u32 256, 56
        %1203 = vbcast.lane.b32.xlu0 %v1173, %s1202
        %v1204 = vpop.permute.xlu0 %1203
        %s1206 = sor.u32 256, 64
        %1207 = vbcast.lane.b32.xlu0 %v1173, %s1206
        %v1208 = vpop.permute.xlu0 %1207
        %s1210 = sor.u32 256, 72
        %1211 = vbcast.lane.b32.xlu0 %v1173, %s1210
        %v1212 = vpop.permute.xlu0 %1211
        %s1214 = sor.u32 256, 80
        %1215 = vbcast.lane.b32.xlu0 %v1173, %s1214
        %v1216 = vpop.permute.xlu0 %1215
        %s1218 = sor.u32 256, 88
        %1219 = vbcast.lane.b32.xlu0 %v1173, %s1218
        %v1220 = vpop.permute.xlu0 %1219
        %s1222 = sor.u32 256, 96
        %1223 = vbcast.lane.b32.xlu0 %v1173, %s1222
        %v1224 = vpop.permute.xlu0 %1223
        %s1226 = sor.u32 256, 104
        %1227 = vbcast.lane.b32.xlu0 %v1173, %s1226
        %v1228 = vpop.permute.xlu0 %1227
        %s1230 = sor.u32 256, 112
        %1231 = vbcast.lane.b32.xlu0 %v1173, %s1230
        %v1232 = vpop.permute.xlu0 %1231
        %s1234 = sor.u32 256, 120
        %1235 = vbcast.lane.b32.xlu0 %v1173, %s1234
        %v1236 = vpop.permute.xlu0 %1235
        %v1237 = vlaneseq
        %v1238 = vshrl.u32 %v1237, 7
        %v1239 = vsub.s32 2, %v1238
        %v1240 = vrot.slane %v201, %v1239
        %1242 = vbcast.lane.b32.xlu0 %v1240, 256
        %v1243 = vpop.permute.xlu0 %1242
        %s1245 = sor.u32 256, 8
        %1246 = vbcast.lane.b32.xlu0 %v1240, %s1245
        %v1247 = vpop.permute.xlu0 %1246
        %s1249 = sor.u32 256, 16
        %1250 = vbcast.lane.b32.xlu0 %v1240, %s1249
        %v1251 = vpop.permute.xlu0 %1250
        %s1253 = sor.u32 256, 24
        %1254 = vbcast.lane.b32.xlu0 %v1240, %s1253
        %v1255 = vpop.permute.xlu0 %1254
        %s1257 = sor.u32 256, 32
        %1258 = vbcast.lane.b32.xlu0 %v1240, %s1257
        %v1259 = vpop.permute.xlu0 %1258
        %s1261 = sor.u32 256, 40
        %1262 = vbcast.lane.b32.xlu0 %v1240, %s1261
        %v1263 = vpop.permute.xlu0 %1262
        %s1265 = sor.u32 256, 48
        %1266 = vbcast.lane.b32.xlu0 %v1240, %s1265
        %v1267 = vpop.permute.xlu0 %1266
        %s1269 = sor.u32 256, 56
        %1270 = vbcast.lane.b32.xlu0 %v1240, %s1269
        %v1271 = vpop.permute.xlu0 %1270
        %s1273 = sor.u32 256, 64
        %1274 = vbcast.lane.b32.xlu0 %v1240, %s1273
        %v1275 = vpop.permute.xlu0 %1274
        %s1277 = sor.u32 256, 72
        %1278 = vbcast.lane.b32.xlu0 %v1240, %s1277
        %v1279 = vpop.permute.xlu0 %1278
        %s1281 = sor.u32 256, 80
        %1282 = vbcast.lane.b32.xlu0 %v1240, %s1281
        %v1283 = vpop.permute.xlu0 %1282
        %s1285 = sor.u32 256, 88
        %1286 = vbcast.lane.b32.xlu0 %v1240, %s1285
        %v1287 = vpop.permute.xlu0 %1286
        %s1289 = sor.u32 256, 96
        %1290 = vbcast.lane.b32.xlu0 %v1240, %s1289
        %v1291 = vpop.permute.xlu0 %1290
        %s1293 = sor.u32 256, 104
        %1294 = vbcast.lane.b32.xlu0 %v1240, %s1293
        %v1295 = vpop.permute.xlu0 %1294
        %s1297 = sor.u32 256, 112
        %1298 = vbcast.lane.b32.xlu0 %v1240, %s1297
        %v1299 = vpop.permute.xlu0 %1298
        %s1301 = sor.u32 256, 120
        %1302 = vbcast.lane.b32.xlu0 %v1240, %s1301
        %v1303 = vpop.permute.xlu0 %1302
        %v1304 = vlaneseq
        %v1305 = vshrl.u32 %v1304, 7
        %v1306 = vsub.s32 3, %v1305
        %v1307 = vrot.slane %v201, %v1306
        %1309 = vbcast.lane.b32.xlu0 %v1307, 256
        %v1310 = vpop.permute.xlu0 %1309
        %s1312 = sor.u32 256, 8
        %1313 = vbcast.lane.b32.xlu0 %v1307, %s1312
        %v1314 = vpop.permute.xlu0 %1313
        %s1316 = sor.u32 256, 16
        %1317 = vbcast.lane.b32.xlu0 %v1307, %s1316
        %v1318 = vpop.permute.xlu0 %1317
        %s1320 = sor.u32 256, 24
        %1321 = vbcast.lane.b32.xlu0 %v1307, %s1320
        %v1322 = vpop.permute.xlu0 %1321
        %s1324 = sor.u32 256, 32
        %1325 = vbcast.lane.b32.xlu0 %v1307, %s1324
        %v1326 = vpop.permute.xlu0 %1325
        %s1328 = sor.u32 256, 40
        %1329 = vbcast.lane.b32.xlu0 %v1307, %s1328
        %v1330 = vpop.permute.xlu0 %1329
        %s1332 = sor.u32 256, 48
        %1333 = vbcast.lane.b32.xlu0 %v1307, %s1332
        %v1334 = vpop.permute.xlu0 %1333
        %s1336 = sor.u32 256, 56
        %1337 = vbcast.lane.b32.xlu0 %v1307, %s1336
        %v1338 = vpop.permute.xlu0 %1337
        %s1340 = sor.u32 256, 64
        %1341 = vbcast.lane.b32.xlu0 %v1307, %s1340
        %v1342 = vpop.permute.xlu0 %1341
        %s1344 = sor.u32 256, 72
        %1345 = vbcast.lane.b32.xlu0 %v1307, %s1344
        %v1346 = vpop.permute.xlu0 %1345
        %s1348 = sor.u32 256, 80
        %1349 = vbcast.lane.b32.xlu0 %v1307, %s1348
        %v1350 = vpop.permute.xlu0 %1349
        %s1352 = sor.u32 256, 88
        %1353 = vbcast.lane.b32.xlu0 %v1307, %s1352
        %v1354 = vpop.permute.xlu0 %1353
        %s1356 = sor.u32 256, 96
        %1357 = vbcast.lane.b32.xlu0 %v1307, %s1356
        %v1358 = vpop.permute.xlu0 %1357
        %s1360 = sor.u32 256, 104
        %1361 = vbcast.lane.b32.xlu0 %v1307, %s1360
        %v1362 = vpop.permute.xlu0 %1361
        %s1364 = sor.u32 256, 112
        %1365 = vbcast.lane.b32.xlu0 %v1307, %s1364
        %v1366 = vpop.permute.xlu0 %1365
        %s1368 = sor.u32 256, 120
        %1369 = vbcast.lane.b32.xlu0 %v1307, %s1368
        %v1370 = vpop.permute.xlu0 %1369
        %v1371 = vlaneseq
        %v1372 = vshrl.u32 %v1371, 7
        %v1373 = vsub.s32 4, %v1372
        %v1374 = vrot.slane %v201, %v1373
        %1376 = vbcast.lane.b32.xlu0 %v1374, 256
        %v1377 = vpop.permute.xlu0 %1376
        %s1379 = sor.u32 256, 8
        %1380 = vbcast.lane.b32.xlu0 %v1374, %s1379
        %v1381 = vpop.permute.xlu0 %1380
        %s1383 = sor.u32 256, 16
        %1384 = vbcast.lane.b32.xlu0 %v1374, %s1383
        %v1385 = vpop.permute.xlu0 %1384
        %s1387 = sor.u32 256, 24
        %1388 = vbcast.lane.b32.xlu0 %v1374, %s1387
        %v1389 = vpop.permute.xlu0 %1388
        %s1391 = sor.u32 256, 32
        %1392 = vbcast.lane.b32.xlu0 %v1374, %s1391
        %v1393 = vpop.permute.xlu0 %1392
        %s1395 = sor.u32 256, 40
        %1396 = vbcast.lane.b32.xlu0 %v1374, %s1395
        %v1397 = vpop.permute.xlu0 %1396
        %s1399 = sor.u32 256, 48
        %1400 = vbcast.lane.b32.xlu0 %v1374, %s1399
        %v1401 = vpop.permute.xlu0 %1400
        %s1403 = sor.u32 256, 56
        %1404 = vbcast.lane.b32.xlu0 %v1374, %s1403
        %v1405 = vpop.permute.xlu0 %1404
        %s1407 = sor.u32 256, 64
        %1408 = vbcast.lane.b32.xlu0 %v1374, %s1407
        %v1409 = vpop.permute.xlu0 %1408
        %s1411 = sor.u32 256, 72
        %1412 = vbcast.lane.b32.xlu0 %v1374, %s1411
        %v1413 = vpop.permute.xlu0 %1412
        %s1415 = sor.u32 256, 80
        %1416 = vbcast.lane.b32.xlu0 %v1374, %s1415
        %v1417 = vpop.permute.xlu0 %1416
        %s1419 = sor.u32 256, 88
        %1420 = vbcast.lane.b32.xlu0 %v1374, %s1419
        %v1421 = vpop.permute.xlu0 %1420
        %s1423 = sor.u32 256, 96
        %1424 = vbcast.lane.b32.xlu0 %v1374, %s1423
        %v1425 = vpop.permute.xlu0 %1424
        %s1427 = sor.u32 256, 104
        %1428 = vbcast.lane.b32.xlu0 %v1374, %s1427
        %v1429 = vpop.permute.xlu0 %1428
        %s1431 = sor.u32 256, 112
        %1432 = vbcast.lane.b32.xlu0 %v1374, %s1431
        %v1433 = vpop.permute.xlu0 %1432
        %s1435 = sor.u32 256, 120
        %1436 = vbcast.lane.b32.xlu0 %v1374, %s1435
        %v1437 = vpop.permute.xlu0 %1436
        %v1438 = vlaneseq
        %v1439 = vshrl.u32 %v1438, 7
        %v1440 = vsub.s32 5, %v1439
        %v1441 = vrot.slane %v201, %v1440
        %1443 = vbcast.lane.b32.xlu0 %v1441, 256
        %v1444 = vpop.permute.xlu0 %1443
        %s1446 = sor.u32 256, 8
        %1447 = vbcast.lane.b32.xlu0 %v1441, %s1446
        %v1448 = vpop.permute.xlu0 %1447
        %s1450 = sor.u32 256, 16
        %1451 = vbcast.lane.b32.xlu0 %v1441, %s1450
        %v1452 = vpop.permute.xlu0 %1451
        %s1454 = sor.u32 256, 24
        %1455 = vbcast.lane.b32.xlu0 %v1441, %s1454
        %v1456 = vpop.permute.xlu0 %1455
        %s1458 = sor.u32 256, 32
        %1459 = vbcast.lane.b32.xlu0 %v1441, %s1458
        %v1460 = vpop.permute.xlu0 %1459
        %s1462 = sor.u32 256, 40
        %1463 = vbcast.lane.b32.xlu0 %v1441, %s1462
        %v1464 = vpop.permute.xlu0 %1463
        %s1466 = sor.u32 256, 48
        %1467 = vbcast.lane.b32.xlu0 %v1441, %s1466
        %v1468 = vpop.permute.xlu0 %1467
        %s1470 = sor.u32 256, 56
        %1471 = vbcast.lane.b32.xlu0 %v1441, %s1470
        %v1472 = vpop.permute.xlu0 %1471
        %s1474 = sor.u32 256, 64
        %1475 = vbcast.lane.b32.xlu0 %v1441, %s1474
        %v1476 = vpop.permute.xlu0 %1475
        %s1478 = sor.u32 256, 72
        %1479 = vbcast.lane.b32.xlu0 %v1441, %s1478
        %v1480 = vpop.permute.xlu0 %1479
        %s1482 = sor.u32 256, 80
        %1483 = vbcast.lane.b32.xlu0 %v1441, %s1482
        %v1484 = vpop.permute.xlu0 %1483
        %s1486 = sor.u32 256, 88
        %1487 = vbcast.lane.b32.xlu0 %v1441, %s1486
        %v1488 = vpop.permute.xlu0 %1487
        %s1490 = sor.u32 256, 96
        %1491 = vbcast.lane.b32.xlu0 %v1441, %s1490
        %v1492 = vpop.permute.xlu0 %1491
        %s1494 = sor.u32 256, 104
        %1495 = vbcast.lane.b32.xlu0 %v1441, %s1494
        %v1496 = vpop.permute.xlu0 %1495
        %s1498 = sor.u32 256, 112
        %1499 = vbcast.lane.b32.xlu0 %v1441, %s1498
        %v1500 = vpop.permute.xlu0 %1499
        %s1502 = sor.u32 256, 120
        %1503 = vbcast.lane.b32.xlu0 %v1441, %s1502
        %v1504 = vpop.permute.xlu0 %1503
        %v1505 = vlaneseq
        %v1506 = vshrl.u32 %v1505, 7
        %v1507 = vsub.s32 6, %v1506
        %v1508 = vrot.slane %v201, %v1507
        %1510 = vbcast.lane.b32.xlu0 %v1508, 256
        %v1511 = vpop.permute.xlu0 %1510
        %s1513 = sor.u32 256, 8
        %1514 = vbcast.lane.b32.xlu0 %v1508, %s1513
        %v1515 = vpop.permute.xlu0 %1514
        %s1517 = sor.u32 256, 16
        %1518 = vbcast.lane.b32.xlu0 %v1508, %s1517
        %v1519 = vpop.permute.xlu0 %1518
        %s1521 = sor.u32 256, 24
        %1522 = vbcast.lane.b32.xlu0 %v1508, %s1521
        %v1523 = vpop.permute.xlu0 %1522
        %s1525 = sor.u32 256, 32
        %1526 = vbcast.lane.b32.xlu0 %v1508, %s1525
        %v1527 = vpop.permute.xlu0 %1526
        %s1529 = sor.u32 256, 40
        %1530 = vbcast.lane.b32.xlu0 %v1508, %s1529
        %v1531 = vpop.permute.xlu0 %1530
        %s1533 = sor.u32 256, 48
        %1534 = vbcast.lane.b32.xlu0 %v1508, %s1533
        %v1535 = vpop.permute.xlu0 %1534
        %s1537 = sor.u32 256, 56
        %1538 = vbcast.lane.b32.xlu0 %v1508, %s1537
        %v1539 = vpop.permute.xlu0 %1538
        %s1541 = sor.u32 256, 64
        %1542 = vbcast.lane.b32.xlu0 %v1508, %s1541
        %v1543 = vpop.permute.xlu0 %1542
        %s1545 = sor.u32 256, 72
        %1546 = vbcast.lane.b32.xlu0 %v1508, %s1545
        %v1547 = vpop.permute.xlu0 %1546
        %s1549 = sor.u32 256, 80
        %1550 = vbcast.lane.b32.xlu0 %v1508, %s1549
        %v1551 = vpop.permute.xlu0 %1550
        %s1553 = sor.u32 256, 88
        %1554 = vbcast.lane.b32.xlu0 %v1508, %s1553
        %v1555 = vpop.permute.xlu0 %1554
        %s1557 = sor.u32 256, 96
        %1558 = vbcast.lane.b32.xlu0 %v1508, %s1557
        %v1559 = vpop.permute.xlu0 %1558
        %s1561 = sor.u32 256, 104
        %1562 = vbcast.lane.b32.xlu0 %v1508, %s1561
        %v1563 = vpop.permute.xlu0 %1562
        %s1565 = sor.u32 256, 112
        %1566 = vbcast.lane.b32.xlu0 %v1508, %s1565
        %v1567 = vpop.permute.xlu0 %1566
        %s1569 = sor.u32 256, 120
        %1570 = vbcast.lane.b32.xlu0 %v1508, %s1569
        %v1571 = vpop.permute.xlu0 %1570
        %v1572 = vlaneseq
        %v1573 = vshrl.u32 %v1572, 7
        %v1574 = vsub.s32 7, %v1573
        %v1575 = vrot.slane %v201, %v1574
        %1577 = vbcast.lane.b32.xlu0 %v1575, 256
        %v1578 = vpop.permute.xlu0 %1577
        %s1580 = sor.u32 256, 8
        %1581 = vbcast.lane.b32.xlu0 %v1575, %s1580
        %v1582 = vpop.permute.xlu0 %1581
        %s1584 = sor.u32 256, 16
        %1585 = vbcast.lane.b32.xlu0 %v1575, %s1584
        %v1586 = vpop.permute.xlu0 %1585
        %s1588 = sor.u32 256, 24
        %1589 = vbcast.lane.b32.xlu0 %v1575, %s1588
        %v1590 = vpop.permute.xlu0 %1589
        %s1592 = sor.u32 256, 32
        %1593 = vbcast.lane.b32.xlu0 %v1575, %s1592
        %v1594 = vpop.permute.xlu0 %1593
        %s1596 = sor.u32 256, 40
        %1597 = vbcast.lane.b32.xlu0 %v1575, %s1596
        %v1598 = vpop.permute.xlu0 %1597
        %s1600 = sor.u32 256, 48
        %1601 = vbcast.lane.b32.xlu0 %v1575, %s1600
        %v1602 = vpop.permute.xlu0 %1601
        %s1604 = sor.u32 256, 56
        %1605 = vbcast.lane.b32.xlu0 %v1575, %s1604
        %v1606 = vpop.permute.xlu0 %1605
        %s1608 = sor.u32 256, 64
        %1609 = vbcast.lane.b32.xlu0 %v1575, %s1608
        %v1610 = vpop.permute.xlu0 %1609
        %s1612 = sor.u32 256, 72
        %1613 = vbcast.lane.b32.xlu0 %v1575, %s1612
        %v1614 = vpop.permute.xlu0 %1613
        %s1616 = sor.u32 256, 80
        %1617 = vbcast.lane.b32.xlu0 %v1575, %s1616
        %v1618 = vpop.permute.xlu0 %1617
        %s1620 = sor.u32 256, 88
        %1621 = vbcast.lane.b32.xlu0 %v1575, %s1620
        %v1622 = vpop.permute.xlu0 %1621
        %s1624 = sor.u32 256, 96
        %1625 = vbcast.lane.b32.xlu0 %v1575, %s1624
        %v1626 = vpop.permute.xlu0 %1625
        %s1628 = sor.u32 256, 104
        %1629 = vbcast.lane.b32.xlu0 %v1575, %s1628
        %v1630 = vpop.permute.xlu0 %1629
        %s1632 = sor.u32 256, 112
        %1633 = vbcast.lane.b32.xlu0 %v1575, %s1632
        %v1634 = vpop.permute.xlu0 %1633
        %s1636 = sor.u32 256, 120
        %1637 = vbcast.lane.b32.xlu0 %v1575, %s1636
        %v1638 = vpop.permute.xlu0 %1637
        %v1640 = vcombine.high %v201, %v201
        %v1642 = vunpack.c.l.s4 1966171168
        %v1643 = vunpack.c.0.s8 %v1642
        %v1644 = vlaneseq
        %v1645 = vshrl.u32 %v1644, 7
        %v1646 = vsub.s32 %v1643, %v1645
        %v1647 = vrot.slane %v201, %v1646
        %v1649 = vunpack.c.l.s4 1966171168
        %v1650 = vunpack.c.0.s8 %v1649
        %v1651 = vlaneseq
        %v1652 = vshrl.u32 %v1651, 7
        %v1653 = vsub.s32 %v1650, %v1652
        %v1654 = vrot.slane %v1640, %v1653
        %v1655 = vcombine.high %v1647, %v1647
        %v1656 = vcombine.high %v1654, %v1654
        %v1658 = vunpack.c.l.s4 1966171168
        %v1659 = vunpack.c.0.s8 %v1658
        %v1660 = vlaneseq
        %v1661 = vshrl.u32 %v1660, 7
        %v1662 = vsub.s32 %v1659, %v1661
        %v1663 = vrot.slane %v1647, %v1662
        %v1665 = vunpack.c.l.s4 1966171168
        %v1666 = vunpack.c.0.s8 %v1665
        %v1667 = vlaneseq
        %v1668 = vshrl.u32 %v1667, 7
        %v1669 = vsub.s32 %v1666, %v1668
        %v1670 = vrot.slane %v1654, %v1669
        %v1672 = vunpack.c.l.s4 1966171168
        %v1673 = vunpack.c.0.s8 %v1672
        %v1674 = vlaneseq
        %v1675 = vshrl.u32 %v1674, 7
        %v1676 = vsub.s32 %v1673, %v1675
        %v1677 = vrot.slane %v1655, %v1676
        %v1679 = vunpack.c.l.s4 1966171168
        %v1680 = vunpack.c.0.s8 %v1679
        %v1681 = vlaneseq
        %v1682 = vshrl.u32 %v1681, 7
        %v1683 = vsub.s32 %v1680, %v1682
        %v1684 = vrot.slane %v1656, %v1683
        %v1685 = vcombine.high %v1663, %v1663
        %v1686 = vcombine.high %v1670, %v1670
        %v1687 = vcombine.high %v1677, %v1677
        %v1688 = vcombine.high %v1684, %v1684
        %v1689 = vlaneseq
        %v1690 = vshrl.u32 %v1689, 7
        %v1691 = vsub.s32 0, %v1690
        %v1692 = vrot.slane %v1663, %v1691
        %v1693 = vlaneseq
        %v1694 = vshrl.u32 %v1693, 7
        %v1695 = vsub.s32 0, %v1694
        %v1696 = vrot.slane %v1677, %v1695
        %v1697 = vlaneseq
        %v1698 = vshrl.u32 %v1697, 7
        %v1699 = vsub.s32 0, %v1698
        %v1700 = vrot.slane %v1685, %v1699
        %v1701 = vlaneseq
        %v1702 = vshrl.u32 %v1701, 7
        %v1703 = vsub.s32 0, %v1702
        %v1704 = vrot.slane %v1687, %v1703
        %v1705 = vlaneseq
        %v1706 = vshrl.u32 %v1705, 7
        %v1707 = vsub.s32 0, %v1706
        %v1708 = vrot.slane %v1670, %v1707
        %v1709 = vlaneseq
        %v1710 = vshrl.u32 %v1709, 7
        %v1711 = vsub.s32 0, %v1710
        %v1712 = vrot.slane %v1684, %v1711
        %v1713 = vlaneseq
        %v1714 = vshrl.u32 %v1713, 7
        %v1715 = vsub.s32 0, %v1714
        %v1716 = vrot.slane %v1686, %v1715
        %v1717 = vlaneseq
        %v1718 = vshrl.u32 %v1717, 7
        %v1719 = vsub.s32 0, %v1718
        %v1720 = vrot.slane %v1688, %v1719
        %v1729 = vsub.f32 %v1109, %v1692
        %v1730 = vsub.f32 %v1113, %v1692
        %v1731 = vsub.f32 %v1117, %v1692
        %v1732 = vsub.f32 %v1121, %v1692
        %v1733 = vsub.f32 %v1125, %v1692
        %v1734 = vsub.f32 %v1129, %v1692
        %v1735 = vsub.f32 %v1133, %v1692
        %v1736 = vsub.f32 %v1137, %v1692
        %v1737 = vsub.f32 %v1141, %v1692
        %v1738 = vsub.f32 %v1145, %v1692
        %v1739 = vsub.f32 %v1149, %v1692
        %v1740 = vsub.f32 %v1153, %v1692
        %v1741 = vsub.f32 %v1157, %v1692
        %v1742 = vsub.f32 %v1161, %v1692
        %v1743 = vsub.f32 %v1165, %v1692
        %v1744 = vsub.f32 %v1169, %v1692
        %v1745 = vsub.f32 %v1176, %v1696
        %v1746 = vsub.f32 %v1180, %v1696
        %v1747 = vsub.f32 %v1184, %v1696
        %v1748 = vsub.f32 %v1188, %v1696
        %v1749 = vsub.f32 %v1192, %v1696
        %v1750 = vsub.f32 %v1196, %v1696
        %v1751 = vsub.f32 %v1200, %v1696
        %v1752 = vsub.f32 %v1204, %v1696
        %v1753 = vsub.f32 %v1208, %v1696
        %v1754 = vsub.f32 %v1212, %v1696
        %v1755 = vsub.f32 %v1216, %v1696
        %v1756 = vsub.f32 %v1220, %v1696
        %v1757 = vsub.f32 %v1224, %v1696
        %v1758 = vsub.f32 %v1228, %v1696
        %v1759 = vsub.f32 %v1232, %v1696
        %v1760 = vsub.f32 %v1236, %v1696
        %v1761 = vsub.f32 %v1243, %v1700
        %v1762 = vsub.f32 %v1247, %v1700
        %v1763 = vsub.f32 %v1251, %v1700
        %v1764 = vsub.f32 %v1255, %v1700
        %v1765 = vsub.f32 %v1259, %v1700
        %v1766 = vsub.f32 %v1263, %v1700
        %v1767 = vsub.f32 %v1267, %v1700
        %v1768 = vsub.f32 %v1271, %v1700
        %v1769 = vsub.f32 %v1275, %v1700
        %v1770 = vsub.f32 %v1279, %v1700
        %v1771 = vsub.f32 %v1283, %v1700
        %v1772 = vsub.f32 %v1287, %v1700
        %v1773 = vsub.f32 %v1291, %v1700
        %v1774 = vsub.f32 %v1295, %v1700
        %v1775 = vsub.f32 %v1299, %v1700
        %v1776 = vsub.f32 %v1303, %v1700
        %v1777 = vsub.f32 %v1310, %v1704
        %v1778 = vsub.f32 %v1314, %v1704
        %v1779 = vsub.f32 %v1318, %v1704
        %v1780 = vsub.f32 %v1322, %v1704
        %v1781 = vsub.f32 %v1326, %v1704
        %v1782 = vsub.f32 %v1330, %v1704
        %v1783 = vsub.f32 %v1334, %v1704
        %v1784 = vsub.f32 %v1338, %v1704
        %v1785 = vsub.f32 %v1342, %v1704
        %v1786 = vsub.f32 %v1346, %v1704
        %v1787 = vsub.f32 %v1350, %v1704
        %v1788 = vsub.f32 %v1354, %v1704
        %v1789 = vsub.f32 %v1358, %v1704
        %v1790 = vsub.f32 %v1362, %v1704
        %v1791 = vsub.f32 %v1366, %v1704
        %v1792 = vsub.f32 %v1370, %v1704
        %v1793 = vsub.f32 %v1377, %v1708
        %v1794 = vsub.f32 %v1381, %v1708
        %v1795 = vsub.f32 %v1385, %v1708
        %v1796 = vsub.f32 %v1389, %v1708
        %v1797 = vsub.f32 %v1393, %v1708
        %v1798 = vsub.f32 %v1397, %v1708
        %v1799 = vsub.f32 %v1401, %v1708
        %v1800 = vsub.f32 %v1405, %v1708
        %v1801 = vsub.f32 %v1409, %v1708
        %v1802 = vsub.f32 %v1413, %v1708
        %v1803 = vsub.f32 %v1417, %v1708
        %v1804 = vsub.f32 %v1421, %v1708
        %v1805 = vsub.f32 %v1425, %v1708
        %v1806 = vsub.f32 %v1429, %v1708
        %v1807 = vsub.f32 %v1433, %v1708
        %v1808 = vsub.f32 %v1437, %v1708
        %v1809 = vsub.f32 %v1444, %v1712
        %v1810 = vsub.f32 %v1448, %v1712
        %v1811 = vsub.f32 %v1452, %v1712
        %v1812 = vsub.f32 %v1456, %v1712
        %v1813 = vsub.f32 %v1460, %v1712
        %v1814 = vsub.f32 %v1464, %v1712
        %v1815 = vsub.f32 %v1468, %v1712
        %v1816 = vsub.f32 %v1472, %v1712
        %v1817 = vsub.f32 %v1476, %v1712
        %v1818 = vsub.f32 %v1480, %v1712
        %v1819 = vsub.f32 %v1484, %v1712
        %v1820 = vsub.f32 %v1488, %v1712
        %v1821 = vsub.f32 %v1492, %v1712
        %v1822 = vsub.f32 %v1496, %v1712
        %v1823 = vsub.f32 %v1500, %v1712
        %v1824 = vsub.f32 %v1504, %v1712
        %v1825 = vsub.f32 %v1511, %v1716
        %v1826 = vsub.f32 %v1515, %v1716
        %v1827 = vsub.f32 %v1519, %v1716
        %v1828 = vsub.f32 %v1523, %v1716
        %v1829 = vsub.f32 %v1527, %v1716
        %v1830 = vsub.f32 %v1531, %v1716
        %v1831 = vsub.f32 %v1535, %v1716
        %v1832 = vsub.f32 %v1539, %v1716
        %v1833 = vsub.f32 %v1543, %v1716
        %v1834 = vsub.f32 %v1547, %v1716
        %v1835 = vsub.f32 %v1551, %v1716
        %v1836 = vsub.f32 %v1555, %v1716
        %v1837 = vsub.f32 %v1559, %v1716
        %v1838 = vsub.f32 %v1563, %v1716
        %v1839 = vsub.f32 %v1567, %v1716
        %v1840 = vsub.f32 %v1571, %v1716
        %v1841 = vsub.f32 %v1578, %v1720
        %v1842 = vsub.f32 %v1582, %v1720
        %v1843 = vsub.f32 %v1586, %v1720
        %v1844 = vsub.f32 %v1590, %v1720
        %v1845 = vsub.f32 %v1594, %v1720
        %v1846 = vsub.f32 %v1598, %v1720
        %v1847 = vsub.f32 %v1602, %v1720
        %v1848 = vsub.f32 %v1606, %v1720
        %v1849 = vsub.f32 %v1610, %v1720
        %v1850 = vsub.f32 %v1614, %v1720
        %v1851 = vsub.f32 %v1618, %v1720
        %v1852 = vsub.f32 %v1622, %v1720
        %v1853 = vsub.f32 %v1626, %v1720
        %v1854 = vsub.f32 %v1630, %v1720
        %v1855 = vsub.f32 %v1634, %v1720
        %v1856 = vsub.f32 %v1638, %v1720
        %v1857 = vmul.f32 %v1729, %v1729
        %v1858 = vmul.f32 %v1730, %v1730
        %v1859 = vmul.f32 %v1731, %v1731
        %v1860 = vmul.f32 %v1732, %v1732
        %v1861 = vmul.f32 %v1733, %v1733
        %v1862 = vmul.f32 %v1734, %v1734
        %v1863 = vmul.f32 %v1735, %v1735
        %v1864 = vmul.f32 %v1736, %v1736
        %v1865 = vmul.f32 %v1737, %v1737
        %v1866 = vmul.f32 %v1738, %v1738
        %v1867 = vmul.f32 %v1739, %v1739
        %v1868 = vmul.f32 %v1740, %v1740
        %v1869 = vmul.f32 %v1741, %v1741
        %v1870 = vmul.f32 %v1742, %v1742
        %v1871 = vmul.f32 %v1743, %v1743
        %v1872 = vmul.f32 %v1744, %v1744
        %v1873 = vmul.f32 %v1745, %v1745
        %v1874 = vmul.f32 %v1746, %v1746
        %v1875 = vmul.f32 %v1747, %v1747
        %v1876 = vmul.f32 %v1748, %v1748
        %v1877 = vmul.f32 %v1749, %v1749
        %v1878 = vmul.f32 %v1750, %v1750
        %v1879 = vmul.f32 %v1751, %v1751
        %v1880 = vmul.f32 %v1752, %v1752
        %v1881 = vmul.f32 %v1753, %v1753
        %v1882 = vmul.f32 %v1754, %v1754
        %v1883 = vmul.f32 %v1755, %v1755
        %v1884 = vmul.f32 %v1756, %v1756
        %v1885 = vmul.f32 %v1757, %v1757
        %v1886 = vmul.f32 %v1758, %v1758
        %v1887 = vmul.f32 %v1759, %v1759
        %v1888 = vmul.f32 %v1760, %v1760
        %v1889 = vmul.f32 %v1761, %v1761
        %v1890 = vmul.f32 %v1762, %v1762
        %v1891 = vmul.f32 %v1763, %v1763
        %v1892 = vmul.f32 %v1764, %v1764
        %v1893 = vmul.f32 %v1765, %v1765
        %v1894 = vmul.f32 %v1766, %v1766
        %v1895 = vmul.f32 %v1767, %v1767
        %v1896 = vmul.f32 %v1768, %v1768
        %v1897 = vmul.f32 %v1769, %v1769
        %v1898 = vmul.f32 %v1770, %v1770
        %v1899 = vmul.f32 %v1771, %v1771
        %v1900 = vmul.f32 %v1772, %v1772
        %v1901 = vmul.f32 %v1773, %v1773
        %v1902 = vmul.f32 %v1774, %v1774
        %v1903 = vmul.f32 %v1775, %v1775
        %v1904 = vmul.f32 %v1776, %v1776
        %v1905 = vmul.f32 %v1777, %v1777
        %v1906 = vmul.f32 %v1778, %v1778
        %v1907 = vmul.f32 %v1779, %v1779
        %v1908 = vmul.f32 %v1780, %v1780
        %v1909 = vmul.f32 %v1781, %v1781
        %v1910 = vmul.f32 %v1782, %v1782
        %v1911 = vmul.f32 %v1783, %v1783
        %v1912 = vmul.f32 %v1784, %v1784
        %v1913 = vmul.f32 %v1785, %v1785
        %v1914 = vmul.f32 %v1786, %v1786
        %v1915 = vmul.f32 %v1787, %v1787
        %v1916 = vmul.f32 %v1788, %v1788
        %v1917 = vmul.f32 %v1789, %v1789
        %v1918 = vmul.f32 %v1790, %v1790
        %v1919 = vmul.f32 %v1791, %v1791
        %v1920 = vmul.f32 %v1792, %v1792
        %v1921 = vmul.f32 %v1793, %v1793
        %v1922 = vmul.f32 %v1794, %v1794
        %v1923 = vmul.f32 %v1795, %v1795
        %v1924 = vmul.f32 %v1796, %v1796
        %v1925 = vmul.f32 %v1797, %v1797
        %v1926 = vmul.f32 %v1798, %v1798
        %v1927 = vmul.f32 %v1799, %v1799
        %v1928 = vmul.f32 %v1800, %v1800
        %v1929 = vmul.f32 %v1801, %v1801
        %v1930 = vmul.f32 %v1802, %v1802
        %v1931 = vmul.f32 %v1803, %v1803
        %v1932 = vmul.f32 %v1804, %v1804
        %v1933 = vmul.f32 %v1805, %v1805
        %v1934 = vmul.f32 %v1806, %v1806
        %v1935 = vmul.f32 %v1807, %v1807
        %v1936 = vmul.f32 %v1808, %v1808
        %v1937 = vmul.f32 %v1809, %v1809
        %v1938 = vmul.f32 %v1810, %v1810
        %v1939 = vmul.f32 %v1811, %v1811
        %v1940 = vmul.f32 %v1812, %v1812
        %v1941 = vmul.f32 %v1813, %v1813
        %v1942 = vmul.f32 %v1814, %v1814
        %v1943 = vmul.f32 %v1815, %v1815
        %v1944 = vmul.f32 %v1816, %v1816
        %v1945 = vmul.f32 %v1817, %v1817
        %v1946 = vmul.f32 %v1818, %v1818
        %v1947 = vmul.f32 %v1819, %v1819
        %v1948 = vmul.f32 %v1820, %v1820
        %v1949 = vmul.f32 %v1821, %v1821
        %v1950 = vmul.f32 %v1822, %v1822
        %v1951 = vmul.f32 %v1823, %v1823
        %v1952 = vmul.f32 %v1824, %v1824
        %v1953 = vmul.f32 %v1825, %v1825
        %v1954 = vmul.f32 %v1826, %v1826
        %v1955 = vmul.f32 %v1827, %v1827
        %v1956 = vmul.f32 %v1828, %v1828
        %v1957 = vmul.f32 %v1829, %v1829
        %v1958 = vmul.f32 %v1830, %v1830
        %v1959 = vmul.f32 %v1831, %v1831
        %v1960 = vmul.f32 %v1832, %v1832
        %v1961 = vmul.f32 %v1833, %v1833
        %v1962 = vmul.f32 %v1834, %v1834
        %v1963 = vmul.f32 %v1835, %v1835
        %v1964 = vmul.f32 %v1836, %v1836
        %v1965 = vmul.f32 %v1837, %v1837
        %v1966 = vmul.f32 %v1838, %v1838
        %v1967 = vmul.f32 %v1839, %v1839
        %v1968 = vmul.f32 %v1840, %v1840
        %v1969 = vmul.f32 %v1841, %v1841
        %v1970 = vmul.f32 %v1842, %v1842
        %v1971 = vmul.f32 %v1843, %v1843
        %v1972 = vmul.f32 %v1844, %v1844
        %v1973 = vmul.f32 %v1845, %v1845
        %v1974 = vmul.f32 %v1846, %v1846
        %v1975 = vmul.f32 %v1847, %v1847
        %v1976 = vmul.f32 %v1848, %v1848
        %v1977 = vmul.f32 %v1849, %v1849
        %v1978 = vmul.f32 %v1850, %v1850
        %v1979 = vmul.f32 %v1851, %v1851
        %v1980 = vmul.f32 %v1852, %v1852
        %v1981 = vmul.f32 %v1853, %v1853
        %v1982 = vmul.f32 %v1854, %v1854
        %v1983 = vmul.f32 %v1855, %v1855
        %v1984 = vmul.f32 %v1856, %v1856
        %v1985 = vadd.f32 %v975, %v1857
        %v1986 = vadd.f32 %v976, %v1858
        %v1987 = vadd.f32 %v977, %v1859
        %v1988 = vadd.f32 %v978, %v1860
        %v1989 = vadd.f32 %v979, %v1861
        %v1990 = vadd.f32 %v980, %v1862
        %v1991 = vadd.f32 %v981, %v1863
        %v1992 = vadd.f32 %v982, %v1864
        %v1993 = vadd.f32 %v983, %v1865
        %v1994 = vadd.f32 %v984, %v1866
        %v1995 = vadd.f32 %v985, %v1867
        %v1996 = vadd.f32 %v986, %v1868
        %v1997 = vadd.f32 %v987, %v1869
        %v1998 = vadd.f32 %v988, %v1870
        %v1999 = vadd.f32 %v989, %v1871
        %v2000 = vadd.f32 %v990, %v1872
        %v2001 = vadd.f32 %v991, %v1873
        %v2002 = vadd.f32 %v992, %v1874
        %v2003 = vadd.f32 %v993, %v1875
        %v2004 = vadd.f32 %v994, %v1876
        %v2005 = vadd.f32 %v995, %v1877
        %v2006 = vadd.f32 %v996, %v1878
        %v2007 = vadd.f32 %v997, %v1879
        %v2008 = vadd.f32 %v998, %v1880
        %v2009 = vadd.f32 %v999, %v1881
        %v2010 = vadd.f32 %v1000, %v1882
        %v2011 = vadd.f32 %v1001, %v1883
        %v2012 = vadd.f32 %v1002, %v1884
        %v2013 = vadd.f32 %v1003, %v1885
        %v2014 = vadd.f32 %v1004, %v1886
        %v2015 = vadd.f32 %v1005, %v1887
        %v2016 = vadd.f32 %v1006, %v1888
        %v2017 = vadd.f32 %v1007, %v1889
        %v2018 = vadd.f32 %v1008, %v1890
        %v2019 = vadd.f32 %v1009, %v1891
        %v2020 = vadd.f32 %v1010, %v1892
        %v2021 = vadd.f32 %v1011, %v1893
        %v2022 = vadd.f32 %v1012, %v1894
        %v2023 = vadd.f32 %v1013, %v1895
        %v2024 = vadd.f32 %v1014, %v1896
        %v2025 = vadd.f32 %v1015, %v1897
        %v2026 = vadd.f32 %v1016, %v1898
        %v2027 = vadd.f32 %v1017, %v1899
        %v2028 = vadd.f32 %v1018, %v1900
        %v2029 = vadd.f32 %v1019, %v1901
        %v2030 = vadd.f32 %v1020, %v1902
        %v2031 = vadd.f32 %v1021, %v1903
        %v2032 = vadd.f32 %v1022, %v1904
        %v2033 = vadd.f32 %v1023, %v1905
        %v2034 = vadd.f32 %v1024, %v1906
        %v2035 = vadd.f32 %v1025, %v1907
        %v2036 = vadd.f32 %v1026, %v1908
        %v2037 = vadd.f32 %v1027, %v1909
        %v2038 = vadd.f32 %v1028, %v1910
        %v2039 = vadd.f32 %v1029, %v1911
        %v2040 = vadd.f32 %v1030, %v1912
        %v2041 = vadd.f32 %v1031, %v1913
        %v2042 = vadd.f32 %v1032, %v1914
        %v2043 = vadd.f32 %v1033, %v1915
        %v2044 = vadd.f32 %v1034, %v1916
        %v2045 = vadd.f32 %v1035, %v1917
        %v2046 = vadd.f32 %v1036, %v1918
        %v2047 = vadd.f32 %v1037, %v1919
        %v2048 = vadd.f32 %v1038, %v1920
        %v2049 = vadd.f32 %v1039, %v1921
        %v2050 = vadd.f32 %v1040, %v1922
        %v2051 = vadd.f32 %v1041, %v1923
        %v2052 = vadd.f32 %v1042, %v1924
        %v2053 = vadd.f32 %v1043, %v1925
        %v2054 = vadd.f32 %v1044, %v1926
        %v2055 = vadd.f32 %v1045, %v1927
        %v2056 = vadd.f32 %v1046, %v1928
        %v2057 = vadd.f32 %v1047, %v1929
        %v2058 = vadd.f32 %v1048, %v1930
        %v2059 = vadd.f32 %v1049, %v1931
        %v2060 = vadd.f32 %v1050, %v1932
        %v2061 = vadd.f32 %v1051, %v1933
        %v2062 = vadd.f32 %v1052, %v1934
        %v2063 = vadd.f32 %v1053, %v1935
        %v2064 = vadd.f32 %v1054, %v1936
        %v2065 = vadd.f32 %v1055, %v1937
        %v2066 = vadd.f32 %v1056, %v1938
        %v2067 = vadd.f32 %v1057, %v1939
        %v2068 = vadd.f32 %v1058, %v1940
        %v2069 = vadd.f32 %v1059, %v1941
        %v2070 = vadd.f32 %v1060, %v1942
        %v2071 = vadd.f32 %v1061, %v1943
        %v2072 = vadd.f32 %v1062, %v1944
        %v2073 = vadd.f32 %v1063, %v1945
        %v2074 = vadd.f32 %v1064, %v1946
        %v2075 = vadd.f32 %v1065, %v1947
        %v2076 = vadd.f32 %v1066, %v1948
        %v2077 = vadd.f32 %v1067, %v1949
        %v2078 = vadd.f32 %v1068, %v1950
        %v2079 = vadd.f32 %v1069, %v1951
        %v2080 = vadd.f32 %v1070, %v1952
        %v2081 = vadd.f32 %v1071, %v1953
        %v2082 = vadd.f32 %v1072, %v1954
        %v2083 = vadd.f32 %v1073, %v1955
        %v2084 = vadd.f32 %v1074, %v1956
        %v2085 = vadd.f32 %v1075, %v1957
        %v2086 = vadd.f32 %v1076, %v1958
        %v2087 = vadd.f32 %v1077, %v1959
        %v2088 = vadd.f32 %v1078, %v1960
        %v2089 = vadd.f32 %v1079, %v1961
        %v2090 = vadd.f32 %v1080, %v1962
        %v2091 = vadd.f32 %v1081, %v1963
        %v2092 = vadd.f32 %v1082, %v1964
        %v2093 = vadd.f32 %v1083, %v1965
        %v2094 = vadd.f32 %v1084, %v1966
        %v2095 = vadd.f32 %v1085, %v1967
        %v2096 = vadd.f32 %v1086, %v1968
        %v2097 = vadd.f32 %v1087, %v1969
        %v2098 = vadd.f32 %v1088, %v1970
        %v2099 = vadd.f32 %v1089, %v1971
        %v2100 = vadd.f32 %v1090, %v1972
        %v2101 = vadd.f32 %v1091, %v1973
        %v2102 = vadd.f32 %v1092, %v1974
        %v2103 = vadd.f32 %v1093, %v1975
        %v2104 = vadd.f32 %v1094, %v1976
        %v2105 = vadd.f32 %v1095, %v1977
        %v2106 = vadd.f32 %v1096, %v1978
        %v2107 = vadd.f32 %v1097, %v1979
        %v2108 = vadd.f32 %v1098, %v1980
        %v2109 = vadd.f32 %v1099, %v1981
        %v2110 = vadd.f32 %v1100, %v1982
        %v2111 = vadd.f32 %v1101, %v1983
        %v2112 = vadd.f32 %v1102, %v1984
        %vm2113 = vcmp.lt.f32.partialorder %v1985, 0.25
        %vm2114 = vcmp.lt.f32.partialorder %v1986, 0.25
        %vm2115 = vcmp.lt.f32.partialorder %v1987, 0.25
        %vm2116 = vcmp.lt.f32.partialorder %v1988, 0.25
        %vm2117 = vcmp.lt.f32.partialorder %v1989, 0.25
        %vm2118 = vcmp.lt.f32.partialorder %v1990, 0.25
        %vm2119 = vcmp.lt.f32.partialorder %v1991, 0.25
        %vm2120 = vcmp.lt.f32.partialorder %v1992, 0.25
        %vm2121 = vcmp.lt.f32.partialorder %v1993, 0.25
        %vm2122 = vcmp.lt.f32.partialorder %v1994, 0.25
        %vm2123 = vcmp.lt.f32.partialorder %v1995, 0.25
        %vm2124 = vcmp.lt.f32.partialorder %v1996, 0.25
        %vm2125 = vcmp.lt.f32.partialorder %v1997, 0.25
        %vm2126 = vcmp.lt.f32.partialorder %v1998, 0.25
        %vm2127 = vcmp.lt.f32.partialorder %v1999, 0.25
        %vm2128 = vcmp.lt.f32.partialorder %v2000, 0.25
        %vm2129 = vcmp.lt.f32.partialorder %v2001, 0.25
        %vm2130 = vcmp.lt.f32.partialorder %v2002, 0.25
        %vm2131 = vcmp.lt.f32.partialorder %v2003, 0.25
        %vm2132 = vcmp.lt.f32.partialorder %v2004, 0.25
        %vm2133 = vcmp.lt.f32.partialorder %v2005, 0.25
        %vm2134 = vcmp.lt.f32.partialorder %v2006, 0.25
        %vm2135 = vcmp.lt.f32.partialorder %v2007, 0.25
        %vm2136 = vcmp.lt.f32.partialorder %v2008, 0.25
        %vm2137 = vcmp.lt.f32.partialorder %v2009, 0.25
        %vm2138 = vcmp.lt.f32.partialorder %v2010, 0.25
        %vm2139 = vcmp.lt.f32.partialorder %v2011, 0.25
        %vm2140 = vcmp.lt.f32.partialorder %v2012, 0.25
        %vm2141 = vcmp.lt.f32.partialorder %v2013, 0.25
        %vm2142 = vcmp.lt.f32.partialorder %v2014, 0.25
        %vm2143 = vcmp.lt.f32.partialorder %v2015, 0.25
        %vm2144 = vcmp.lt.f32.partialorder %v2016, 0.25
        %vm2145 = vcmp.lt.f32.partialorder %v2017, 0.25
        %vm2146 = vcmp.lt.f32.partialorder %v2018, 0.25
        %vm2147 = vcmp.lt.f32.partialorder %v2019, 0.25
        %vm2148 = vcmp.lt.f32.partialorder %v2020, 0.25
        %vm2149 = vcmp.lt.f32.partialorder %v2021, 0.25
        %vm2150 = vcmp.lt.f32.partialorder %v2022, 0.25
        %vm2151 = vcmp.lt.f32.partialorder %v2023, 0.25
        %vm2152 = vcmp.lt.f32.partialorder %v2024, 0.25
        %vm2153 = vcmp.lt.f32.partialorder %v2025, 0.25
        %vm2154 = vcmp.lt.f32.partialorder %v2026, 0.25
        %vm2155 = vcmp.lt.f32.partialorder %v2027, 0.25
        %vm2156 = vcmp.lt.f32.partialorder %v2028, 0.25
        %vm2157 = vcmp.lt.f32.partialorder %v2029, 0.25
        %vm2158 = vcmp.lt.f32.partialorder %v2030, 0.25
        %vm2159 = vcmp.lt.f32.partialorder %v2031, 0.25
        %vm2160 = vcmp.lt.f32.partialorder %v2032, 0.25
        %vm2161 = vcmp.lt.f32.partialorder %v2033, 0.25
        %vm2162 = vcmp.lt.f32.partialorder %v2034, 0.25
        %vm2163 = vcmp.lt.f32.partialorder %v2035, 0.25
        %vm2164 = vcmp.lt.f32.partialorder %v2036, 0.25
        %vm2165 = vcmp.lt.f32.partialorder %v2037, 0.25
        %vm2166 = vcmp.lt.f32.partialorder %v2038, 0.25
        %vm2167 = vcmp.lt.f32.partialorder %v2039, 0.25
        %vm2168 = vcmp.lt.f32.partialorder %v2040, 0.25
        %vm2169 = vcmp.lt.f32.partialorder %v2041, 0.25
        %vm2170 = vcmp.lt.f32.partialorder %v2042, 0.25
        %vm2171 = vcmp.lt.f32.partialorder %v2043, 0.25
        %vm2172 = vcmp.lt.f32.partialorder %v2044, 0.25
        %vm2173 = vcmp.lt.f32.partialorder %v2045, 0.25
        %vm2174 = vcmp.lt.f32.partialorder %v2046, 0.25
        %vm2175 = vcmp.lt.f32.partialorder %v2047, 0.25
        %vm2176 = vcmp.lt.f32.partialorder %v2048, 0.25
        %vm2177 = vcmp.lt.f32.partialorder %v2049, 0.25
        %vm2178 = vcmp.lt.f32.partialorder %v2050, 0.25
        %vm2179 = vcmp.lt.f32.partialorder %v2051, 0.25
        %vm2180 = vcmp.lt.f32.partialorder %v2052, 0.25
        %vm2181 = vcmp.lt.f32.partialorder %v2053, 0.25
        %vm2182 = vcmp.lt.f32.partialorder %v2054, 0.25
        %vm2183 = vcmp.lt.f32.partialorder %v2055, 0.25
        %vm2184 = vcmp.lt.f32.partialorder %v2056, 0.25
        %vm2185 = vcmp.lt.f32.partialorder %v2057, 0.25
        %vm2186 = vcmp.lt.f32.partialorder %v2058, 0.25
        %vm2187 = vcmp.lt.f32.partialorder %v2059, 0.25
        %vm2188 = vcmp.lt.f32.partialorder %v2060, 0.25
        %vm2189 = vcmp.lt.f32.partialorder %v2061, 0.25
        %vm2190 = vcmp.lt.f32.partialorder %v2062, 0.25
        %vm2191 = vcmp.lt.f32.partialorder %v2063, 0.25
        %vm2192 = vcmp.lt.f32.partialorder %v2064, 0.25
        %vm2193 = vcmp.lt.f32.partialorder %v2065, 0.25
        %vm2194 = vcmp.lt.f32.partialorder %v2066, 0.25
        %vm2195 = vcmp.lt.f32.partialorder %v2067, 0.25
        %vm2196 = vcmp.lt.f32.partialorder %v2068, 0.25
        %vm2197 = vcmp.lt.f32.partialorder %v2069, 0.25
        %vm2198 = vcmp.lt.f32.partialorder %v2070, 0.25
        %vm2199 = vcmp.lt.f32.partialorder %v2071, 0.25
        %vm2200 = vcmp.lt.f32.partialorder %v2072, 0.25
        %vm2201 = vcmp.lt.f32.partialorder %v2073, 0.25
        %vm2202 = vcmp.lt.f32.partialorder %v2074, 0.25
        %vm2203 = vcmp.lt.f32.partialorder %v2075, 0.25
        %vm2204 = vcmp.lt.f32.partialorder %v2076, 0.25
        %vm2205 = vcmp.lt.f32.partialorder %v2077, 0.25
        %vm2206 = vcmp.lt.f32.partialorder %v2078, 0.25
        %vm2207 = vcmp.lt.f32.partialorder %v2079, 0.25
        %vm2208 = vcmp.lt.f32.partialorder %v2080, 0.25
        %vm2209 = vcmp.lt.f32.partialorder %v2081, 0.25
        %vm2210 = vcmp.lt.f32.partialorder %v2082, 0.25
        %vm2211 = vcmp.lt.f32.partialorder %v2083, 0.25
        %vm2212 = vcmp.lt.f32.partialorder %v2084, 0.25
        %vm2213 = vcmp.lt.f32.partialorder %v2085, 0.25
        %vm2214 = vcmp.lt.f32.partialorder %v2086, 0.25
        %vm2215 = vcmp.lt.f32.partialorder %v2087, 0.25
        %vm2216 = vcmp.lt.f32.partialorder %v2088, 0.25
        %vm2217 = vcmp.lt.f32.partialorder %v2089, 0.25
        %vm2218 = vcmp.lt.f32.partialorder %v2090, 0.25
        %vm2219 = vcmp.lt.f32.partialorder %v2091, 0.25
        %vm2220 = vcmp.lt.f32.partialorder %v2092, 0.25
        %vm2221 = vcmp.lt.f32.partialorder %v2093, 0.25
        %vm2222 = vcmp.lt.f32.partialorder %v2094, 0.25
        %vm2223 = vcmp.lt.f32.partialorder %v2095, 0.25
        %vm2224 = vcmp.lt.f32.partialorder %v2096, 0.25
        %vm2225 = vcmp.lt.f32.partialorder %v2097, 0.25
        %vm2226 = vcmp.lt.f32.partialorder %v2098, 0.25
        %vm2227 = vcmp.lt.f32.partialorder %v2099, 0.25
        %vm2228 = vcmp.lt.f32.partialorder %v2100, 0.25
        %vm2229 = vcmp.lt.f32.partialorder %v2101, 0.25
        %vm2230 = vcmp.lt.f32.partialorder %v2102, 0.25
        %vm2231 = vcmp.lt.f32.partialorder %v2103, 0.25
        %vm2232 = vcmp.lt.f32.partialorder %v2104, 0.25
        %vm2233 = vcmp.lt.f32.partialorder %v2105, 0.25
        %vm2234 = vcmp.lt.f32.partialorder %v2106, 0.25
        %vm2235 = vcmp.lt.f32.partialorder %v2107, 0.25
        %vm2236 = vcmp.lt.f32.partialorder %v2108, 0.25
        %vm2237 = vcmp.lt.f32.partialorder %v2109, 0.25
        %vm2238 = vcmp.lt.f32.partialorder %v2110, 0.25
        %vm2239 = vcmp.lt.f32.partialorder %v2111, 0.25
        %vm2240 = vcmp.lt.f32.partialorder %v2112, 0.25
        %v2241 = vsel %vm2113, 1, 0
        %v2242 = vsel %vm2114, 1, 0
        %v2243 = vsel %vm2115, 1, 0
        %v2244 = vsel %vm2116, 1, 0
        %v2245 = vsel %vm2117, 1, 0
        %v2246 = vsel %vm2118, 1, 0
        %v2247 = vsel %vm2119, 1, 0
        %v2248 = vsel %vm2120, 1, 0
        %v2249 = vsel %vm2121, 1, 0
        %v2250 = vsel %vm2122, 1, 0
        %v2251 = vsel %vm2123, 1, 0
        %v2252 = vsel %vm2124, 1, 0
        %v2253 = vsel %vm2125, 1, 0
        %v2254 = vsel %vm2126, 1, 0
        %v2255 = vsel %vm2127, 1, 0
        %v2256 = vsel %vm2128, 1, 0
        %v2257 = vsel %vm2129, 1, 0
        %v2258 = vsel %vm2130, 1, 0
        %v2259 = vsel %vm2131, 1, 0
        %v2260 = vsel %vm2132, 1, 0
        %v2261 = vsel %vm2133, 1, 0
        %v2262 = vsel %vm2134, 1, 0
        %v2263 = vsel %vm2135, 1, 0
        %v2264 = vsel %vm2136, 1, 0
        %v2265 = vsel %vm2137, 1, 0
        %v2266 = vsel %vm2138, 1, 0
        %v2267 = vsel %vm2139, 1, 0
        %v2268 = vsel %vm2140, 1, 0
        %v2269 = vsel %vm2141, 1, 0
        %v2270 = vsel %vm2142, 1, 0
        %v2271 = vsel %vm2143, 1, 0
        %v2272 = vsel %vm2144, 1, 0
        %v2273 = vsel %vm2145, 1, 0
        %v2274 = vsel %vm2146, 1, 0
        %v2275 = vsel %vm2147, 1, 0
        %v2276 = vsel %vm2148, 1, 0
        %v2277 = vsel %vm2149, 1, 0
        %v2278 = vsel %vm2150, 1, 0
        %v2279 = vsel %vm2151, 1, 0
        %v2280 = vsel %vm2152, 1, 0
        %v2281 = vsel %vm2153, 1, 0
        %v2282 = vsel %vm2154, 1, 0
        %v2283 = vsel %vm2155, 1, 0
        %v2284 = vsel %vm2156, 1, 0
        %v2285 = vsel %vm2157, 1, 0
        %v2286 = vsel %vm2158, 1, 0
        %v2287 = vsel %vm2159, 1, 0
        %v2288 = vsel %vm2160, 1, 0
        %v2289 = vsel %vm2161, 1, 0
        %v2290 = vsel %vm2162, 1, 0
        %v2291 = vsel %vm2163, 1, 0
        %v2292 = vsel %vm2164, 1, 0
        %v2293 = vsel %vm2165, 1, 0
        %v2294 = vsel %vm2166, 1, 0
        %v2295 = vsel %vm2167, 1, 0
        %v2296 = vsel %vm2168, 1, 0
        %v2297 = vsel %vm2169, 1, 0
        %v2298 = vsel %vm2170, 1, 0
        %v2299 = vsel %vm2171, 1, 0
        %v2300 = vsel %vm2172, 1, 0
        %v2301 = vsel %vm2173, 1, 0
        %v2302 = vsel %vm2174, 1, 0
        %v2303 = vsel %vm2175, 1, 0
        %v2304 = vsel %vm2176, 1, 0
        %v2305 = vsel %vm2177, 1, 0
        %v2306 = vsel %vm2178, 1, 0
        %v2307 = vsel %vm2179, 1, 0
        %v2308 = vsel %vm2180, 1, 0
        %v2309 = vsel %vm2181, 1, 0
        %v2310 = vsel %vm2182, 1, 0
        %v2311 = vsel %vm2183, 1, 0
        %v2312 = vsel %vm2184, 1, 0
        %v2313 = vsel %vm2185, 1, 0
        %v2314 = vsel %vm2186, 1, 0
        %v2315 = vsel %vm2187, 1, 0
        %v2316 = vsel %vm2188, 1, 0
        %v2317 = vsel %vm2189, 1, 0
        %v2318 = vsel %vm2190, 1, 0
        %v2319 = vsel %vm2191, 1, 0
        %v2320 = vsel %vm2192, 1, 0
        %v2321 = vsel %vm2193, 1, 0
        %v2322 = vsel %vm2194, 1, 0
        %v2323 = vsel %vm2195, 1, 0
        %v2324 = vsel %vm2196, 1, 0
        %v2325 = vsel %vm2197, 1, 0
        %v2326 = vsel %vm2198, 1, 0
        %v2327 = vsel %vm2199, 1, 0
        %v2328 = vsel %vm2200, 1, 0
        %v2329 = vsel %vm2201, 1, 0
        %v2330 = vsel %vm2202, 1, 0
        %v2331 = vsel %vm2203, 1, 0
        %v2332 = vsel %vm2204, 1, 0
        %v2333 = vsel %vm2205, 1, 0
        %v2334 = vsel %vm2206, 1, 0
        %v2335 = vsel %vm2207, 1, 0
        %v2336 = vsel %vm2208, 1, 0
        %v2337 = vsel %vm2209, 1, 0
        %v2338 = vsel %vm2210, 1, 0
        %v2339 = vsel %vm2211, 1, 0
        %v2340 = vsel %vm2212, 1, 0
        %v2341 = vsel %vm2213, 1, 0
        %v2342 = vsel %vm2214, 1, 0
        %v2343 = vsel %vm2215, 1, 0
        %v2344 = vsel %vm2216, 1, 0
        %v2345 = vsel %vm2217, 1, 0
        %v2346 = vsel %vm2218, 1, 0
        %v2347 = vsel %vm2219, 1, 0
        %v2348 = vsel %vm2220, 1, 0
        %v2349 = vsel %vm2221, 1, 0
        %v2350 = vsel %vm2222, 1, 0
        %v2351 = vsel %vm2223, 1, 0
        %v2352 = vsel %vm2224, 1, 0
        %v2353 = vsel %vm2225, 1, 0
        %v2354 = vsel %vm2226, 1, 0
        %v2355 = vsel %vm2227, 1, 0
        %v2356 = vsel %vm2228, 1, 0
        %v2357 = vsel %vm2229, 1, 0
        %v2358 = vsel %vm2230, 1, 0
        %v2359 = vsel %vm2231, 1, 0
        %v2360 = vsel %vm2232, 1, 0
        %v2361 = vsel %vm2233, 1, 0
        %v2362 = vsel %vm2234, 1, 0
        %v2363 = vsel %vm2235, 1, 0
        %v2364 = vsel %vm2236, 1, 0
        %v2365 = vsel %vm2237, 1, 0
        %v2366 = vsel %vm2238, 1, 0
        %v2367 = vsel %vm2239, 1, 0
        %v2368 = vsel %vm2240, 1, 0
        %v2369 = vcvt.s32.f32 %v2241
        %v2370 = vcvt.s32.f32 %v2242
        %v2371 = vcvt.s32.f32 %v2243
        %v2372 = vcvt.s32.f32 %v2244
        %v2373 = vcvt.s32.f32 %v2245
        %v2374 = vcvt.s32.f32 %v2246
        %v2375 = vcvt.s32.f32 %v2247
        %v2376 = vcvt.s32.f32 %v2248
        %v2377 = vcvt.s32.f32 %v2249
        %v2378 = vcvt.s32.f32 %v2250
        %v2379 = vcvt.s32.f32 %v2251
        %v2380 = vcvt.s32.f32 %v2252
        %v2381 = vcvt.s32.f32 %v2253
        %v2382 = vcvt.s32.f32 %v2254
        %v2383 = vcvt.s32.f32 %v2255
        %v2384 = vcvt.s32.f32 %v2256
        %v2385 = vcvt.s32.f32 %v2257
        %v2386 = vcvt.s32.f32 %v2258
        %v2387 = vcvt.s32.f32 %v2259
        %v2388 = vcvt.s32.f32 %v2260
        %v2389 = vcvt.s32.f32 %v2261
        %v2390 = vcvt.s32.f32 %v2262
        %v2391 = vcvt.s32.f32 %v2263
        %v2392 = vcvt.s32.f32 %v2264
        %v2393 = vcvt.s32.f32 %v2265
        %v2394 = vcvt.s32.f32 %v2266
        %v2395 = vcvt.s32.f32 %v2267
        %v2396 = vcvt.s32.f32 %v2268
        %v2397 = vcvt.s32.f32 %v2269
        %v2398 = vcvt.s32.f32 %v2270
        %v2399 = vcvt.s32.f32 %v2271
        %v2400 = vcvt.s32.f32 %v2272
        %v2401 = vcvt.s32.f32 %v2273
        %v2402 = vcvt.s32.f32 %v2274
        %v2403 = vcvt.s32.f32 %v2275
        %v2404 = vcvt.s32.f32 %v2276
        %v2405 = vcvt.s32.f32 %v2277
        %v2406 = vcvt.s32.f32 %v2278
        %v2407 = vcvt.s32.f32 %v2279
        %v2408 = vcvt.s32.f32 %v2280
        %v2409 = vcvt.s32.f32 %v2281
        %v2410 = vcvt.s32.f32 %v2282
        %v2411 = vcvt.s32.f32 %v2283
        %v2412 = vcvt.s32.f32 %v2284
        %v2413 = vcvt.s32.f32 %v2285
        %v2414 = vcvt.s32.f32 %v2286
        %v2415 = vcvt.s32.f32 %v2287
        %v2416 = vcvt.s32.f32 %v2288
        %v2417 = vcvt.s32.f32 %v2289
        %v2418 = vcvt.s32.f32 %v2290
        %v2419 = vcvt.s32.f32 %v2291
        %v2420 = vcvt.s32.f32 %v2292
        %v2421 = vcvt.s32.f32 %v2293
        %v2422 = vcvt.s32.f32 %v2294
        %v2423 = vcvt.s32.f32 %v2295
        %v2424 = vcvt.s32.f32 %v2296
        %v2425 = vcvt.s32.f32 %v2297
        %v2426 = vcvt.s32.f32 %v2298
        %v2427 = vcvt.s32.f32 %v2299
        %v2428 = vcvt.s32.f32 %v2300
        %v2429 = vcvt.s32.f32 %v2301
        %v2430 = vcvt.s32.f32 %v2302
        %v2431 = vcvt.s32.f32 %v2303
        %v2432 = vcvt.s32.f32 %v2304
        %v2433 = vcvt.s32.f32 %v2305
        %v2434 = vcvt.s32.f32 %v2306
        %v2435 = vcvt.s32.f32 %v2307
        %v2436 = vcvt.s32.f32 %v2308
        %v2437 = vcvt.s32.f32 %v2309
        %v2438 = vcvt.s32.f32 %v2310
        %v2439 = vcvt.s32.f32 %v2311
        %v2440 = vcvt.s32.f32 %v2312
        %v2441 = vcvt.s32.f32 %v2313
        %v2442 = vcvt.s32.f32 %v2314
        %v2443 = vcvt.s32.f32 %v2315
        %v2444 = vcvt.s32.f32 %v2316
        %v2445 = vcvt.s32.f32 %v2317
        %v2446 = vcvt.s32.f32 %v2318
        %v2447 = vcvt.s32.f32 %v2319
        %v2448 = vcvt.s32.f32 %v2320
        %v2449 = vcvt.s32.f32 %v2321
        %v2450 = vcvt.s32.f32 %v2322
        %v2451 = vcvt.s32.f32 %v2323
        %v2452 = vcvt.s32.f32 %v2324
        %v2453 = vcvt.s32.f32 %v2325
        %v2454 = vcvt.s32.f32 %v2326
        %v2455 = vcvt.s32.f32 %v2327
        %v2456 = vcvt.s32.f32 %v2328
        %v2457 = vcvt.s32.f32 %v2329
        %v2458 = vcvt.s32.f32 %v2330
        %v2459 = vcvt.s32.f32 %v2331
        %v2460 = vcvt.s32.f32 %v2332
        %v2461 = vcvt.s32.f32 %v2333
        %v2462 = vcvt.s32.f32 %v2334
        %v2463 = vcvt.s32.f32 %v2335
        %v2464 = vcvt.s32.f32 %v2336
        %v2465 = vcvt.s32.f32 %v2337
        %v2466 = vcvt.s32.f32 %v2338
        %v2467 = vcvt.s32.f32 %v2339
        %v2468 = vcvt.s32.f32 %v2340
        %v2469 = vcvt.s32.f32 %v2341
        %v2470 = vcvt.s32.f32 %v2342
        %v2471 = vcvt.s32.f32 %v2343
        %v2472 = vcvt.s32.f32 %v2344
        %v2473 = vcvt.s32.f32 %v2345
        %v2474 = vcvt.s32.f32 %v2346
        %v2475 = vcvt.s32.f32 %v2347
        %v2476 = vcvt.s32.f32 %v2348
        %v2477 = vcvt.s32.f32 %v2349
        %v2478 = vcvt.s32.f32 %v2350
        %v2479 = vcvt.s32.f32 %v2351
        %v2480 = vcvt.s32.f32 %v2352
        %v2481 = vcvt.s32.f32 %v2353
        %v2482 = vcvt.s32.f32 %v2354
        %v2483 = vcvt.s32.f32 %v2355
        %v2484 = vcvt.s32.f32 %v2356
        %v2485 = vcvt.s32.f32 %v2357
        %v2486 = vcvt.s32.f32 %v2358
        %v2487 = vcvt.s32.f32 %v2359
        %v2488 = vcvt.s32.f32 %v2360
        %v2489 = vcvt.s32.f32 %v2361
        %v2490 = vcvt.s32.f32 %v2362
        %v2491 = vcvt.s32.f32 %v2363
        %v2492 = vcvt.s32.f32 %v2364
        %v2493 = vcvt.s32.f32 %v2365
        %v2494 = vcvt.s32.f32 %v2366
        %v2495 = vcvt.s32.f32 %v2367
        %v2496 = vcvt.s32.f32 %v2368
        %2497 = vadd.xlane.f32.xlu0 %v2369
        %v2498 = vpop.xlane.xlu0 %2497
        %2499 = vadd.xlane.f32.xlu0 %v2370
        %v2500 = vpop.xlane.xlu0 %2499
        %2501 = vadd.xlane.f32.xlu0 %v2371
        %v2502 = vpop.xlane.xlu0 %2501
        %2503 = vadd.xlane.f32.xlu0 %v2372
        %v2504 = vpop.xlane.xlu0 %2503
        %2505 = vadd.xlane.f32.xlu0 %v2373
        %v2506 = vpop.xlane.xlu0 %2505
        %2507 = vadd.xlane.f32.xlu0 %v2374
        %v2508 = vpop.xlane.xlu0 %2507
        %2509 = vadd.xlane.f32.xlu0 %v2375
        %v2510 = vpop.xlane.xlu0 %2509
        %2511 = vadd.xlane.f32.xlu0 %v2376
        %v2512 = vpop.xlane.xlu0 %2511
        %2513 = vadd.xlane.f32.xlu0 %v2377
        %v2514 = vpop.xlane.xlu0 %2513
        %2515 = vadd.xlane.f32.xlu0 %v2378
        %v2516 = vpop.xlane.xlu0 %2515
        %2517 = vadd.xlane.f32.xlu0 %v2379
        %v2518 = vpop.xlane.xlu0 %2517
        %2519 = vadd.xlane.f32.xlu0 %v2380
        %v2520 = vpop.xlane.xlu0 %2519
        %2521 = vadd.xlane.f32.xlu0 %v2381
        %v2522 = vpop.xlane.xlu0 %2521
        %2523 = vadd.xlane.f32.xlu0 %v2382
        %v2524 = vpop.xlane.xlu0 %2523
        %2525 = vadd.xlane.f32.xlu0 %v2383
        %v2526 = vpop.xlane.xlu0 %2525
        %2527 = vadd.xlane.f32.xlu0 %v2384
        %v2528 = vpop.xlane.xlu0 %2527
        %2529 = vadd.xlane.f32.xlu0 %v2385
        %v2530 = vpop.xlane.xlu0 %2529
        %2531 = vadd.xlane.f32.xlu0 %v2386
        %v2532 = vpop.xlane.xlu0 %2531
        %2533 = vadd.xlane.f32.xlu0 %v2387
        %v2534 = vpop.xlane.xlu0 %2533
        %2535 = vadd.xlane.f32.xlu0 %v2388
        %v2536 = vpop.xlane.xlu0 %2535
        %2537 = vadd.xlane.f32.xlu0 %v2389
        %v2538 = vpop.xlane.xlu0 %2537
        %2539 = vadd.xlane.f32.xlu0 %v2390
        %v2540 = vpop.xlane.xlu0 %2539
        %2541 = vadd.xlane.f32.xlu0 %v2391
        %v2542 = vpop.xlane.xlu0 %2541
        %2543 = vadd.xlane.f32.xlu0 %v2392
        %v2544 = vpop.xlane.xlu0 %2543
        %2545 = vadd.xlane.f32.xlu0 %v2393
        %v2546 = vpop.xlane.xlu0 %2545
        %2547 = vadd.xlane.f32.xlu0 %v2394
        %v2548 = vpop.xlane.xlu0 %2547
        %2549 = vadd.xlane.f32.xlu0 %v2395
        %v2550 = vpop.xlane.xlu0 %2549
        %2551 = vadd.xlane.f32.xlu0 %v2396
        %v2552 = vpop.xlane.xlu0 %2551
        %2553 = vadd.xlane.f32.xlu0 %v2397
        %v2554 = vpop.xlane.xlu0 %2553
        %2555 = vadd.xlane.f32.xlu0 %v2398
        %v2556 = vpop.xlane.xlu0 %2555
        %2557 = vadd.xlane.f32.xlu0 %v2399
        %v2558 = vpop.xlane.xlu0 %2557
        %2559 = vadd.xlane.f32.xlu0 %v2400
        %v2560 = vpop.xlane.xlu0 %2559
        %2561 = vadd.xlane.f32.xlu0 %v2401
        %v2562 = vpop.xlane.xlu0 %2561
        %2563 = vadd.xlane.f32.xlu0 %v2402
        %v2564 = vpop.xlane.xlu0 %2563
        %2565 = vadd.xlane.f32.xlu0 %v2403
        %v2566 = vpop.xlane.xlu0 %2565
        %2567 = vadd.xlane.f32.xlu0 %v2404
        %v2568 = vpop.xlane.xlu0 %2567
        %2569 = vadd.xlane.f32.xlu0 %v2405
        %v2570 = vpop.xlane.xlu0 %2569
        %2571 = vadd.xlane.f32.xlu0 %v2406
        %v2572 = vpop.xlane.xlu0 %2571
        %2573 = vadd.xlane.f32.xlu0 %v2407
        %v2574 = vpop.xlane.xlu0 %2573
        %2575 = vadd.xlane.f32.xlu0 %v2408
        %v2576 = vpop.xlane.xlu0 %2575
        %2577 = vadd.xlane.f32.xlu0 %v2409
        %v2578 = vpop.xlane.xlu0 %2577
        %2579 = vadd.xlane.f32.xlu0 %v2410
        %v2580 = vpop.xlane.xlu0 %2579
        %2581 = vadd.xlane.f32.xlu0 %v2411
        %v2582 = vpop.xlane.xlu0 %2581
        %2583 = vadd.xlane.f32.xlu0 %v2412
        %v2584 = vpop.xlane.xlu0 %2583
        %2585 = vadd.xlane.f32.xlu0 %v2413
        %v2586 = vpop.xlane.xlu0 %2585
        %2587 = vadd.xlane.f32.xlu0 %v2414
        %v2588 = vpop.xlane.xlu0 %2587
        %2589 = vadd.xlane.f32.xlu0 %v2415
        %v2590 = vpop.xlane.xlu0 %2589
        %2591 = vadd.xlane.f32.xlu0 %v2416
        %v2592 = vpop.xlane.xlu0 %2591
        %2593 = vadd.xlane.f32.xlu0 %v2417
        %v2594 = vpop.xlane.xlu0 %2593
        %2595 = vadd.xlane.f32.xlu0 %v2418
        %v2596 = vpop.xlane.xlu0 %2595
        %2597 = vadd.xlane.f32.xlu0 %v2419
        %v2598 = vpop.xlane.xlu0 %2597
        %2599 = vadd.xlane.f32.xlu0 %v2420
        %v2600 = vpop.xlane.xlu0 %2599
        %2601 = vadd.xlane.f32.xlu0 %v2421
        %v2602 = vpop.xlane.xlu0 %2601
        %2603 = vadd.xlane.f32.xlu0 %v2422
        %v2604 = vpop.xlane.xlu0 %2603
        %2605 = vadd.xlane.f32.xlu0 %v2423
        %v2606 = vpop.xlane.xlu0 %2605
        %2607 = vadd.xlane.f32.xlu0 %v2424
        %v2608 = vpop.xlane.xlu0 %2607
        %2609 = vadd.xlane.f32.xlu0 %v2425
        %v2610 = vpop.xlane.xlu0 %2609
        %2611 = vadd.xlane.f32.xlu0 %v2426
        %v2612 = vpop.xlane.xlu0 %2611
        %2613 = vadd.xlane.f32.xlu0 %v2427
        %v2614 = vpop.xlane.xlu0 %2613
        %2615 = vadd.xlane.f32.xlu0 %v2428
        %v2616 = vpop.xlane.xlu0 %2615
        %2617 = vadd.xlane.f32.xlu0 %v2429
        %v2618 = vpop.xlane.xlu0 %2617
        %2619 = vadd.xlane.f32.xlu0 %v2430
        %v2620 = vpop.xlane.xlu0 %2619
        %2621 = vadd.xlane.f32.xlu0 %v2431
        %v2622 = vpop.xlane.xlu0 %2621
        %2623 = vadd.xlane.f32.xlu0 %v2432
        %v2624 = vpop.xlane.xlu0 %2623
        %2625 = vadd.xlane.f32.xlu0 %v2433
        %v2626 = vpop.xlane.xlu0 %2625
        %2627 = vadd.xlane.f32.xlu0 %v2434
        %v2628 = vpop.xlane.xlu0 %2627
        %2629 = vadd.xlane.f32.xlu0 %v2435
        %v2630 = vpop.xlane.xlu0 %2629
        %2631 = vadd.xlane.f32.xlu0 %v2436
        %v2632 = vpop.xlane.xlu0 %2631
        %2633 = vadd.xlane.f32.xlu0 %v2437
        %v2634 = vpop.xlane.xlu0 %2633
        %2635 = vadd.xlane.f32.xlu0 %v2438
        %v2636 = vpop.xlane.xlu0 %2635
        %2637 = vadd.xlane.f32.xlu0 %v2439
        %v2638 = vpop.xlane.xlu0 %2637
        %2639 = vadd.xlane.f32.xlu0 %v2440
        %v2640 = vpop.xlane.xlu0 %2639
        %2641 = vadd.xlane.f32.xlu0 %v2441
        %v2642 = vpop.xlane.xlu0 %2641
        %2643 = vadd.xlane.f32.xlu0 %v2442
        %v2644 = vpop.xlane.xlu0 %2643
        %2645 = vadd.xlane.f32.xlu0 %v2443
        %v2646 = vpop.xlane.xlu0 %2645
        %2647 = vadd.xlane.f32.xlu0 %v2444
        %v2648 = vpop.xlane.xlu0 %2647
        %2649 = vadd.xlane.f32.xlu0 %v2445
        %v2650 = vpop.xlane.xlu0 %2649
        %2651 = vadd.xlane.f32.xlu0 %v2446
        %v2652 = vpop.xlane.xlu0 %2651
        %2653 = vadd.xlane.f32.xlu0 %v2447
        %v2654 = vpop.xlane.xlu0 %2653
        %2655 = vadd.xlane.f32.xlu0 %v2448
        %v2656 = vpop.xlane.xlu0 %2655
        %2657 = vadd.xlane.f32.xlu0 %v2449
        %v2658 = vpop.xlane.xlu0 %2657
        %2659 = vadd.xlane.f32.xlu0 %v2450
        %v2660 = vpop.xlane.xlu0 %2659
        %2661 = vadd.xlane.f32.xlu0 %v2451
        %v2662 = vpop.xlane.xlu0 %2661
        %2663 = vadd.xlane.f32.xlu0 %v2452
        %v2664 = vpop.xlane.xlu0 %2663
        %2665 = vadd.xlane.f32.xlu0 %v2453
        %v2666 = vpop.xlane.xlu0 %2665
        %2667 = vadd.xlane.f32.xlu0 %v2454
        %v2668 = vpop.xlane.xlu0 %2667
        %2669 = vadd.xlane.f32.xlu0 %v2455
        %v2670 = vpop.xlane.xlu0 %2669
        %2671 = vadd.xlane.f32.xlu0 %v2456
        %v2672 = vpop.xlane.xlu0 %2671
        %2673 = vadd.xlane.f32.xlu0 %v2457
        %v2674 = vpop.xlane.xlu0 %2673
        %2675 = vadd.xlane.f32.xlu0 %v2458
        %v2676 = vpop.xlane.xlu0 %2675
        %2677 = vadd.xlane.f32.xlu0 %v2459
        %v2678 = vpop.xlane.xlu0 %2677
        %2679 = vadd.xlane.f32.xlu0 %v2460
        %v2680 = vpop.xlane.xlu0 %2679
        %2681 = vadd.xlane.f32.xlu0 %v2461
        %v2682 = vpop.xlane.xlu0 %2681
        %2683 = vadd.xlane.f32.xlu0 %v2462
        %v2684 = vpop.xlane.xlu0 %2683
        %2685 = vadd.xlane.f32.xlu0 %v2463
        %v2686 = vpop.xlane.xlu0 %2685
        %2687 = vadd.xlane.f32.xlu0 %v2464
        %v2688 = vpop.xlane.xlu0 %2687
        %2689 = vadd.xlane.f32.xlu0 %v2465
        %v2690 = vpop.xlane.xlu0 %2689
        %2691 = vadd.xlane.f32.xlu0 %v2466
        %v2692 = vpop.xlane.xlu0 %2691
        %2693 = vadd.xlane.f32.xlu0 %v2467
        %v2694 = vpop.xlane.xlu0 %2693
        %2695 = vadd.xlane.f32.xlu0 %v2468
        %v2696 = vpop.xlane.xlu0 %2695
        %2697 = vadd.xlane.f32.xlu0 %v2469
        %v2698 = vpop.xlane.xlu0 %2697
        %2699 = vadd.xlane.f32.xlu0 %v2470
        %v2700 = vpop.xlane.xlu0 %2699
        %2701 = vadd.xlane.f32.xlu0 %v2471
        %v2702 = vpop.xlane.xlu0 %2701
        %2703 = vadd.xlane.f32.xlu0 %v2472
        %v2704 = vpop.xlane.xlu0 %2703
        %2705 = vadd.xlane.f32.xlu0 %v2473
        %v2706 = vpop.xlane.xlu0 %2705
        %2707 = vadd.xlane.f32.xlu0 %v2474
        %v2708 = vpop.xlane.xlu0 %2707
        %2709 = vadd.xlane.f32.xlu0 %v2475
        %v2710 = vpop.xlane.xlu0 %2709
        %2711 = vadd.xlane.f32.xlu0 %v2476
        %v2712 = vpop.xlane.xlu0 %2711
        %2713 = vadd.xlane.f32.xlu0 %v2477
        %v2714 = vpop.xlane.xlu0 %2713
        %2715 = vadd.xlane.f32.xlu0 %v2478
        %v2716 = vpop.xlane.xlu0 %2715
        %2717 = vadd.xlane.f32.xlu0 %v2479
        %v2718 = vpop.xlane.xlu0 %2717
        %2719 = vadd.xlane.f32.xlu0 %v2480
        %v2720 = vpop.xlane.xlu0 %2719
        %2721 = vadd.xlane.f32.xlu0 %v2481
        %v2722 = vpop.xlane.xlu0 %2721
        %2723 = vadd.xlane.f32.xlu0 %v2482
        %v2724 = vpop.xlane.xlu0 %2723
        %2725 = vadd.xlane.f32.xlu0 %v2483
        %v2726 = vpop.xlane.xlu0 %2725
        %2727 = vadd.xlane.f32.xlu0 %v2484
        %v2728 = vpop.xlane.xlu0 %2727
        %2729 = vadd.xlane.f32.xlu0 %v2485
        %v2730 = vpop.xlane.xlu0 %2729
        %2731 = vadd.xlane.f32.xlu0 %v2486
        %v2732 = vpop.xlane.xlu0 %2731
        %2733 = vadd.xlane.f32.xlu0 %v2487
        %v2734 = vpop.xlane.xlu0 %2733
        %2735 = vadd.xlane.f32.xlu0 %v2488
        %v2736 = vpop.xlane.xlu0 %2735
        %2737 = vadd.xlane.f32.xlu0 %v2489
        %v2738 = vpop.xlane.xlu0 %2737
        %2739 = vadd.xlane.f32.xlu0 %v2490
        %v2740 = vpop.xlane.xlu0 %2739
        %2741 = vadd.xlane.f32.xlu0 %v2491
        %v2742 = vpop.xlane.xlu0 %2741
        %2743 = vadd.xlane.f32.xlu0 %v2492
        %v2744 = vpop.xlane.xlu0 %2743
        %2745 = vadd.xlane.f32.xlu0 %v2493
        %v2746 = vpop.xlane.xlu0 %2745
        %2747 = vadd.xlane.f32.xlu0 %v2494
        %v2748 = vpop.xlane.xlu0 %2747
        %2749 = vadd.xlane.f32.xlu0 %v2495
        %v2750 = vpop.xlane.xlu0 %2749
        %2751 = vadd.xlane.f32.xlu0 %v2496
        %v2752 = vpop.xlane.xlu0 %2751
        %v2753 = vmax.f32 %v2498, 1.0
        %v2754 = vmax.f32 %v2500, 1.0
        %v2755 = vmax.f32 %v2502, 1.0
        %v2756 = vmax.f32 %v2504, 1.0
        %v2757 = vmax.f32 %v2506, 1.0
        %v2758 = vmax.f32 %v2508, 1.0
        %v2759 = vmax.f32 %v2510, 1.0
        %v2760 = vmax.f32 %v2512, 1.0
        %v2761 = vmax.f32 %v2514, 1.0
        %v2762 = vmax.f32 %v2516, 1.0
        %v2763 = vmax.f32 %v2518, 1.0
        %v2764 = vmax.f32 %v2520, 1.0
        %v2765 = vmax.f32 %v2522, 1.0
        %v2766 = vmax.f32 %v2524, 1.0
        %v2767 = vmax.f32 %v2526, 1.0
        %v2768 = vmax.f32 %v2528, 1.0
        %v2769 = vmax.f32 %v2530, 1.0
        %v2770 = vmax.f32 %v2532, 1.0
        %v2771 = vmax.f32 %v2534, 1.0
        %v2772 = vmax.f32 %v2536, 1.0
        %v2773 = vmax.f32 %v2538, 1.0
        %v2774 = vmax.f32 %v2540, 1.0
        %v2775 = vmax.f32 %v2542, 1.0
        %v2776 = vmax.f32 %v2544, 1.0
        %v2777 = vmax.f32 %v2546, 1.0
        %v2778 = vmax.f32 %v2548, 1.0
        %v2779 = vmax.f32 %v2550, 1.0
        %v2780 = vmax.f32 %v2552, 1.0
        %v2781 = vmax.f32 %v2554, 1.0
        %v2782 = vmax.f32 %v2556, 1.0
        %v2783 = vmax.f32 %v2558, 1.0
        %v2784 = vmax.f32 %v2560, 1.0
        %v2785 = vmax.f32 %v2562, 1.0
        %v2786 = vmax.f32 %v2564, 1.0
        %v2787 = vmax.f32 %v2566, 1.0
        %v2788 = vmax.f32 %v2568, 1.0
        %v2789 = vmax.f32 %v2570, 1.0
        %v2790 = vmax.f32 %v2572, 1.0
        %v2791 = vmax.f32 %v2574, 1.0
        %v2792 = vmax.f32 %v2576, 1.0
        %v2793 = vmax.f32 %v2578, 1.0
        %v2794 = vmax.f32 %v2580, 1.0
        %v2795 = vmax.f32 %v2582, 1.0
        %v2796 = vmax.f32 %v2584, 1.0
        %v2797 = vmax.f32 %v2586, 1.0
        %v2798 = vmax.f32 %v2588, 1.0
        %v2799 = vmax.f32 %v2590, 1.0
        %v2800 = vmax.f32 %v2592, 1.0
        %v2801 = vmax.f32 %v2594, 1.0
        %v2802 = vmax.f32 %v2596, 1.0
        %v2803 = vmax.f32 %v2598, 1.0
        %v2804 = vmax.f32 %v2600, 1.0
        %v2805 = vmax.f32 %v2602, 1.0
        %v2806 = vmax.f32 %v2604, 1.0
        %v2807 = vmax.f32 %v2606, 1.0
        %v2808 = vmax.f32 %v2608, 1.0
        %v2809 = vmax.f32 %v2610, 1.0
        %v2810 = vmax.f32 %v2612, 1.0
        %v2811 = vmax.f32 %v2614, 1.0
        %v2812 = vmax.f32 %v2616, 1.0
        %v2813 = vmax.f32 %v2618, 1.0
        %v2814 = vmax.f32 %v2620, 1.0
        %v2815 = vmax.f32 %v2622, 1.0
        %v2816 = vmax.f32 %v2624, 1.0
        %v2817 = vmax.f32 %v2626, 1.0
        %v2818 = vmax.f32 %v2628, 1.0
        %v2819 = vmax.f32 %v2630, 1.0
        %v2820 = vmax.f32 %v2632, 1.0
        %v2821 = vmax.f32 %v2634, 1.0
        %v2822 = vmax.f32 %v2636, 1.0
        %v2823 = vmax.f32 %v2638, 1.0
        %v2824 = vmax.f32 %v2640, 1.0
        %v2825 = vmax.f32 %v2642, 1.0
        %v2826 = vmax.f32 %v2644, 1.0
        %v2827 = vmax.f32 %v2646, 1.0
        %v2828 = vmax.f32 %v2648, 1.0
        %v2829 = vmax.f32 %v2650, 1.0
        %v2830 = vmax.f32 %v2652, 1.0
        %v2831 = vmax.f32 %v2654, 1.0
        %v2832 = vmax.f32 %v2656, 1.0
        %v2833 = vmax.f32 %v2658, 1.0
        %v2834 = vmax.f32 %v2660, 1.0
        %v2835 = vmax.f32 %v2662, 1.0
        %v2836 = vmax.f32 %v2664, 1.0
        %v2837 = vmax.f32 %v2666, 1.0
        %v2838 = vmax.f32 %v2668, 1.0
        %v2839 = vmax.f32 %v2670, 1.0
        %v2840 = vmax.f32 %v2672, 1.0
        %v2841 = vmax.f32 %v2674, 1.0
        %v2842 = vmax.f32 %v2676, 1.0
        %v2843 = vmax.f32 %v2678, 1.0
        %v2844 = vmax.f32 %v2680, 1.0
        %v2845 = vmax.f32 %v2682, 1.0
        %v2846 = vmax.f32 %v2684, 1.0
        %v2847 = vmax.f32 %v2686, 1.0
        %v2848 = vmax.f32 %v2688, 1.0
        %v2849 = vmax.f32 %v2690, 1.0
        %v2850 = vmax.f32 %v2692, 1.0
        %v2851 = vmax.f32 %v2694, 1.0
        %v2852 = vmax.f32 %v2696, 1.0
        %v2853 = vmax.f32 %v2698, 1.0
        %v2854 = vmax.f32 %v2700, 1.0
        %v2855 = vmax.f32 %v2702, 1.0
        %v2856 = vmax.f32 %v2704, 1.0
        %v2857 = vmax.f32 %v2706, 1.0
        %v2858 = vmax.f32 %v2708, 1.0
        %v2859 = vmax.f32 %v2710, 1.0
        %v2860 = vmax.f32 %v2712, 1.0
        %v2861 = vmax.f32 %v2714, 1.0
        %v2862 = vmax.f32 %v2716, 1.0
        %v2863 = vmax.f32 %v2718, 1.0
        %v2864 = vmax.f32 %v2720, 1.0
        %v2865 = vmax.f32 %v2722, 1.0
        %v2866 = vmax.f32 %v2724, 1.0
        %v2867 = vmax.f32 %v2726, 1.0
        %v2868 = vmax.f32 %v2728, 1.0
        %v2869 = vmax.f32 %v2730, 1.0
        %v2870 = vmax.f32 %v2732, 1.0
        %v2871 = vmax.f32 %v2734, 1.0
        %v2872 = vmax.f32 %v2736, 1.0
        %v2873 = vmax.f32 %v2738, 1.0
        %v2874 = vmax.f32 %v2740, 1.0
        %v2875 = vmax.f32 %v2742, 1.0
        %v2876 = vmax.f32 %v2744, 1.0
        %v2877 = vmax.f32 %v2746, 1.0
        %v2878 = vmax.f32 %v2748, 1.0
        %v2879 = vmax.f32 %v2750, 1.0
        %v2880 = vmax.f32 %v2752, 1.0
        %v2881 = vrcp.pop %v2753
        %v2882 = vrcp.pop %v2754
        %v2883 = vrcp.pop %v2755
        %v2884 = vrcp.pop %v2756
        %v2885 = vrcp.pop %v2757
        %v2886 = vrcp.pop %v2758
        %v2887 = vrcp.pop %v2759
        %v2888 = vrcp.pop %v2760
        %v2889 = vrcp.pop %v2761
        %v2890 = vrcp.pop %v2762
        %v2891 = vrcp.pop %v2763
        %v2892 = vrcp.pop %v2764
        %v2893 = vrcp.pop %v2765
        %v2894 = vrcp.pop %v2766
        %v2895 = vrcp.pop %v2767
        %v2896 = vrcp.pop %v2768
        %v2897 = vrcp.pop %v2769
        %v2898 = vrcp.pop %v2770
        %v2899 = vrcp.pop %v2771
        %v2900 = vrcp.pop %v2772
        %v2901 = vrcp.pop %v2773
        %v2902 = vrcp.pop %v2774
        %v2903 = vrcp.pop %v2775
        %v2904 = vrcp.pop %v2776
        %v2905 = vrcp.pop %v2777
        %v2906 = vrcp.pop %v2778
        %v2907 = vrcp.pop %v2779
        %v2908 = vrcp.pop %v2780
        %v2909 = vrcp.pop %v2781
        %v2910 = vrcp.pop %v2782
        %v2911 = vrcp.pop %v2783
        %v2912 = vrcp.pop %v2784
        %v2913 = vrcp.pop %v2785
        %v2914 = vrcp.pop %v2786
        %v2915 = vrcp.pop %v2787
        %v2916 = vrcp.pop %v2788
        %v2917 = vrcp.pop %v2789
        %v2918 = vrcp.pop %v2790
        %v2919 = vrcp.pop %v2791
        %v2920 = vrcp.pop %v2792
        %v2921 = vrcp.pop %v2793
        %v2922 = vrcp.pop %v2794
        %v2923 = vrcp.pop %v2795
        %v2924 = vrcp.pop %v2796
        %v2925 = vrcp.pop %v2797
        %v2926 = vrcp.pop %v2798
        %v2927 = vrcp.pop %v2799
        %v2928 = vrcp.pop %v2800
        %v2929 = vrcp.pop %v2801
        %v2930 = vrcp.pop %v2802
        %v2931 = vrcp.pop %v2803
        %v2932 = vrcp.pop %v2804
        %v2933 = vrcp.pop %v2805
        %v2934 = vrcp.pop %v2806
        %v2935 = vrcp.pop %v2807
        %v2936 = vrcp.pop %v2808
        %v2937 = vrcp.pop %v2809
        %v2938 = vrcp.pop %v2810
        %v2939 = vrcp.pop %v2811
        %v2940 = vrcp.pop %v2812
        %v2941 = vrcp.pop %v2813
        %v2942 = vrcp.pop %v2814
        %v2943 = vrcp.pop %v2815
        %v2944 = vrcp.pop %v2816
        %v2945 = vrcp.pop %v2817
        %v2946 = vrcp.pop %v2818
        %v2947 = vrcp.pop %v2819
        %v2948 = vrcp.pop %v2820
        %v2949 = vrcp.pop %v2821
        %v2950 = vrcp.pop %v2822
        %v2951 = vrcp.pop %v2823
        %v2952 = vrcp.pop %v2824
        %v2953 = vrcp.pop %v2825
        %v2954 = vrcp.pop %v2826
        %v2955 = vrcp.pop %v2827
        %v2956 = vrcp.pop %v2828
        %v2957 = vrcp.pop %v2829
        %v2958 = vrcp.pop %v2830
        %v2959 = vrcp.pop %v2831
        %v2960 = vrcp.pop %v2832
        %v2961 = vrcp.pop %v2833
        %v2962 = vrcp.pop %v2834
        %v2963 = vrcp.pop %v2835
        %v2964 = vrcp.pop %v2836
        %v2965 = vrcp.pop %v2837
        %v2966 = vrcp.pop %v2838
        %v2967 = vrcp.pop %v2839
        %v2968 = vrcp.pop %v2840
        %v2969 = vrcp.pop %v2841
        %v2970 = vrcp.pop %v2842
        %v2971 = vrcp.pop %v2843
        %v2972 = vrcp.pop %v2844
        %v2973 = vrcp.pop %v2845
        %v2974 = vrcp.pop %v2846
        %v2975 = vrcp.pop %v2847
        %v2976 = vrcp.pop %v2848
        %v2977 = vrcp.pop %v2849
        %v2978 = vrcp.pop %v2850
        %v2979 = vrcp.pop %v2851
        %v2980 = vrcp.pop %v2852
        %v2981 = vrcp.pop %v2853
        %v2982 = vrcp.pop %v2854
        %v2983 = vrcp.pop %v2855
        %v2984 = vrcp.pop %v2856
        %v2985 = vrcp.pop %v2857
        %v2986 = vrcp.pop %v2858
        %v2987 = vrcp.pop %v2859
        %v2988 = vrcp.pop %v2860
        %v2989 = vrcp.pop %v2861
        %v2990 = vrcp.pop %v2862
        %v2991 = vrcp.pop %v2863
        %v2992 = vrcp.pop %v2864
        %v2993 = vrcp.pop %v2865
        %v2994 = vrcp.pop %v2866
        %v2995 = vrcp.pop %v2867
        %v2996 = vrcp.pop %v2868
        %v2997 = vrcp.pop %v2869
        %v2998 = vrcp.pop %v2870
        %v2999 = vrcp.pop %v2871
        %v3000 = vrcp.pop %v2872
        %v3001 = vrcp.pop %v2873
        %v3002 = vrcp.pop %v2874
        %v3003 = vrcp.pop %v2875
        %v3004 = vrcp.pop %v2876
        %v3005 = vrcp.pop %v2877
        %v3006 = vrcp.pop %v2878
        %v3007 = vrcp.pop %v2879
        %v3008 = vrcp.pop %v2880
        %v3137 = vlaneseq
        %v3138 = vshrl.u32 %v3137, 7
        %v3139 = vsub.s32 %v204, %v3138
        %v3140 = vrot.slane %v2881, %v3139
        %v3141 = vadd.s32 %v204, 4294967288
        %v3142 = vlaneseq
        %v3143 = vshrl.u32 %v3142, 7
        %v3144 = vsub.s32 %v3141, %v3143
        %v3145 = vrot.slane %v2882, %v3144
        %vm3146 = vcmask 130112
        %v3147 = vsel %vm3146, %v3145, %v3140
        %v3148 = vadd.s32 %v204, 4294967280
        %v3149 = vlaneseq
        %v3150 = vshrl.u32 %v3149, 7
        %v3151 = vsub.s32 %v3148, %v3150
        %v3152 = vrot.slane %v2883, %v3151
        %vm3153 = vcmask 195712
        %v3154 = vsel %vm3153, %v3152, %v3147
        %v3155 = vadd.s32 %v204, 4294967272
        %v3156 = vlaneseq
        %v3157 = vshrl.u32 %v3156, 7
        %v3158 = vsub.s32 %v3155, %v3157
        %v3159 = vrot.slane %v2884, %v3158
        %vm3160 = vcmask 261312
        %v3161 = vsel %vm3160, %v3159, %v3154
        %v3162 = vadd.s32 %v204, 4294967264
        %v3163 = vlaneseq
        %v3164 = vshrl.u32 %v3163, 7
        %v3165 = vsub.s32 %v3162, %v3164
        %v3166 = vrot.slane %v2885, %v3165
        %vm3167 = vcmask 326912
        %v3168 = vsel %vm3167, %v3166, %v3161
        %v3169 = vadd.s32 %v204, 4294967256
        %v3170 = vlaneseq
        %v3171 = vshrl.u32 %v3170, 7
        %v3172 = vsub.s32 %v3169, %v3171
        %v3173 = vrot.slane %v2886, %v3172
        %vm3174 = vcmask 392512
        %v3175 = vsel %vm3174, %v3173, %v3168
        %v3176 = vadd.s32 %v204, 4294967248
        %v3177 = vlaneseq
        %v3178 = vshrl.u32 %v3177, 7
        %v3179 = vsub.s32 %v3176, %v3178
        %v3180 = vrot.slane %v2887, %v3179
        %vm3181 = vcmask 458112
        %v3182 = vsel %vm3181, %v3180, %v3175
        %v3183 = vadd.s32 %v204, 4294967240
        %v3184 = vlaneseq
        %v3185 = vshrl.u32 %v3184, 7
        %v3186 = vsub.s32 %v3183, %v3185
        %v3187 = vrot.slane %v2888, %v3186
        %vm3188 = vcmask 523712
        %v3189 = vsel %vm3188, %v3187, %v3182
        %v3190 = vadd.s32 %v204, 4294967232
        %v3191 = vlaneseq
        %v3192 = vshrl.u32 %v3191, 7
        %v3193 = vsub.s32 %v3190, %v3192
        %v3194 = vrot.slane %v2889, %v3193
        %vm3195 = vcmask 589312
        %v3196 = vsel %vm3195, %v3194, %v3189
        %v3197 = vadd.s32 %v204, 4294967224
        %v3198 = vlaneseq
        %v3199 = vshrl.u32 %v3198, 7
        %v3200 = vsub.s32 %v3197, %v3199
        %v3201 = vrot.slane %v2890, %v3200
        %vm3202 = vcmask 654912
        %v3203 = vsel %vm3202, %v3201, %v3196
        %v3204 = vadd.s32 %v204, 4294967216
        %v3205 = vlaneseq
        %v3206 = vshrl.u32 %v3205, 7
        %v3207 = vsub.s32 %v3204, %v3206
        %v3208 = vrot.slane %v2891, %v3207
        %vm3209 = vcmask 720512
        %v3210 = vsel %vm3209, %v3208, %v3203
        %v3211 = vadd.s32 %v204, 4294967208
        %v3212 = vlaneseq
        %v3213 = vshrl.u32 %v3212, 7
        %v3214 = vsub.s32 %v3211, %v3213
        %v3215 = vrot.slane %v2892, %v3214
        %vm3216 = vcmask 786112
        %v3217 = vsel %vm3216, %v3215, %v3210
        %v3218 = vadd.s32 %v204, 4294967200
        %v3219 = vlaneseq
        %v3220 = vshrl.u32 %v3219, 7
        %v3221 = vsub.s32 %v3218, %v3220
        %v3222 = vrot.slane %v2893, %v3221
        %vm3223 = vcmask 851712
        %v3224 = vsel %vm3223, %v3222, %v3217
        %v3225 = vadd.s32 %v204, 4294967192
        %v3226 = vlaneseq
        %v3227 = vshrl.u32 %v3226, 7
        %v3228 = vsub.s32 %v3225, %v3227
        %v3229 = vrot.slane %v2894, %v3228
        %vm3230 = vcmask 917312
        %v3231 = vsel %vm3230, %v3229, %v3224
        %v3232 = vadd.s32 %v204, 4294967184
        %v3233 = vlaneseq
        %v3234 = vshrl.u32 %v3233, 7
        %v3235 = vsub.s32 %v3232, %v3234
        %v3236 = vrot.slane %v2895, %v3235
        %vm3237 = vcmask 982912
        %v3238 = vsel %vm3237, %v3236, %v3231
        %v3239 = vadd.s32 %v204, 4294967176
        %v3240 = vlaneseq
        %v3241 = vshrl.u32 %v3240, 7
        %v3242 = vsub.s32 %v3239, %v3241
        %v3243 = vrot.slane %v2896, %v3242
        %vm3244 = vcmask 1048512
        %v3245 = vsel %vm3244, %v3243, %v3238
        %v3246 = vlaneseq
        %v3247 = vshrl.u32 %v3246, 7
        %v3248 = vsub.s32 %v204, %v3247
        %v3249 = vrot.slane %v2897, %v3248
        %v3250 = vlaneseq
        %v3251 = vshrl.u32 %v3250, 7
        %v3252 = vsub.s32 %v3141, %v3251
        %v3253 = vrot.slane %v2898, %v3252
        %v3254 = vsel %vm3146, %v3253, %v3249
        %v3255 = vlaneseq
        %v3256 = vshrl.u32 %v3255, 7
        %v3257 = vsub.s32 %v3148, %v3256
        %v3258 = vrot.slane %v2899, %v3257
        %v3259 = vsel %vm3153, %v3258, %v3254
        %v3260 = vlaneseq
        %v3261 = vshrl.u32 %v3260, 7
        %v3262 = vsub.s32 %v3155, %v3261
        %v3263 = vrot.slane %v2900, %v3262
        %v3264 = vsel %vm3160, %v3263, %v3259
        %v3265 = vlaneseq
        %v3266 = vshrl.u32 %v3265, 7
        %v3267 = vsub.s32 %v3162, %v3266
        %v3268 = vrot.slane %v2901, %v3267
        %v3269 = vsel %vm3167, %v3268, %v3264
        %v3270 = vlaneseq
        %v3271 = vshrl.u32 %v3270, 7
        %v3272 = vsub.s32 %v3169, %v3271
        %v3273 = vrot.slane %v2902, %v3272
        %v3274 = vsel %vm3174, %v3273, %v3269
        %v3275 = vlaneseq
        %v3276 = vshrl.u32 %v3275, 7
        %v3277 = vsub.s32 %v3176, %v3276
        %v3278 = vrot.slane %v2903, %v3277
        %v3279 = vsel %vm3181, %v3278, %v3274
        %v3280 = vlaneseq
        %v3281 = vshrl.u32 %v3280, 7
        %v3282 = vsub.s32 %v3183, %v3281
        %v3283 = vrot.slane %v2904, %v3282
        %v3284 = vsel %vm3188, %v3283, %v3279
        %v3285 = vlaneseq
        %v3286 = vshrl.u32 %v3285, 7
        %v3287 = vsub.s32 %v3190, %v3286
        %v3288 = vrot.slane %v2905, %v3287
        %v3289 = vsel %vm3195, %v3288, %v3284
        %v3290 = vlaneseq
        %v3291 = vshrl.u32 %v3290, 7
        %v3292 = vsub.s32 %v3197, %v3291
        %v3293 = vrot.slane %v2906, %v3292
        %v3294 = vsel %vm3202, %v3293, %v3289
        %v3295 = vlaneseq
        %v3296 = vshrl.u32 %v3295, 7
        %v3297 = vsub.s32 %v3204, %v3296
        %v3298 = vrot.slane %v2907, %v3297
        %v3299 = vsel %vm3209, %v3298, %v3294
        %v3300 = vlaneseq
        %v3301 = vshrl.u32 %v3300, 7
        %v3302 = vsub.s32 %v3211, %v3301
        %v3303 = vrot.slane %v2908, %v3302
        %v3304 = vsel %vm3216, %v3303, %v3299
        %v3305 = vlaneseq
        %v3306 = vshrl.u32 %v3305, 7
        %v3307 = vsub.s32 %v3218, %v3306
        %v3308 = vrot.slane %v2909, %v3307
        %v3309 = vsel %vm3223, %v3308, %v3304
        %v3310 = vlaneseq
        %v3311 = vshrl.u32 %v3310, 7
        %v3312 = vsub.s32 %v3225, %v3311
        %v3313 = vrot.slane %v2910, %v3312
        %v3314 = vsel %vm3230, %v3313, %v3309
        %v3315 = vlaneseq
        %v3316 = vshrl.u32 %v3315, 7
        %v3317 = vsub.s32 %v3232, %v3316
        %v3318 = vrot.slane %v2911, %v3317
        %v3319 = vsel %vm3237, %v3318, %v3314
        %v3320 = vlaneseq
        %v3321 = vshrl.u32 %v3320, 7
        %v3322 = vsub.s32 %v3239, %v3321
        %v3323 = vrot.slane %v2912, %v3322
        %v3324 = vsel %vm3244, %v3323, %v3319
        %v3325 = vlaneseq
        %v3326 = vshrl.u32 %v3325, 7
        %v3327 = vsub.s32 %v204, %v3326
        %v3328 = vrot.slane %v2913, %v3327
        %v3329 = vlaneseq
        %v3330 = vshrl.u32 %v3329, 7
        %v3331 = vsub.s32 %v3141, %v3330
        %v3332 = vrot.slane %v2914, %v3331
        %v3333 = vsel %vm3146, %v3332, %v3328
        %v3334 = vlaneseq
        %v3335 = vshrl.u32 %v3334, 7
        %v3336 = vsub.s32 %v3148, %v3335
        %v3337 = vrot.slane %v2915, %v3336
        %v3338 = vsel %vm3153, %v3337, %v3333
        %v3339 = vlaneseq
        %v3340 = vshrl.u32 %v3339, 7
        %v3341 = vsub.s32 %v3155, %v3340
        %v3342 = vrot.slane %v2916, %v3341
        %v3343 = vsel %vm3160, %v3342, %v3338
        %v3344 = vlaneseq
        %v3345 = vshrl.u32 %v3344, 7
        %v3346 = vsub.s32 %v3162, %v3345
        %v3347 = vrot.slane %v2917, %v3346
        %v3348 = vsel %vm3167, %v3347, %v3343
        %v3349 = vlaneseq
        %v3350 = vshrl.u32 %v3349, 7
        %v3351 = vsub.s32 %v3169, %v3350
        %v3352 = vrot.slane %v2918, %v3351
        %v3353 = vsel %vm3174, %v3352, %v3348
        %v3354 = vlaneseq
        %v3355 = vshrl.u32 %v3354, 7
        %v3356 = vsub.s32 %v3176, %v3355
        %v3357 = vrot.slane %v2919, %v3356
        %v3358 = vsel %vm3181, %v3357, %v3353
        %v3359 = vlaneseq
        %v3360 = vshrl.u32 %v3359, 7
        %v3361 = vsub.s32 %v3183, %v3360
        %v3362 = vrot.slane %v2920, %v3361
        %v3363 = vsel %vm3188, %v3362, %v3358
        %v3364 = vlaneseq
        %v3365 = vshrl.u32 %v3364, 7
        %v3366 = vsub.s32 %v3190, %v3365
        %v3367 = vrot.slane %v2921, %v3366
        %v3368 = vsel %vm3195, %v3367, %v3363
        %v3369 = vlaneseq
        %v3370 = vshrl.u32 %v3369, 7
        %v3371 = vsub.s32 %v3197, %v3370
        %v3372 = vrot.slane %v2922, %v3371
        %v3373 = vsel %vm3202, %v3372, %v3368
        %v3374 = vlaneseq
        %v3375 = vshrl.u32 %v3374, 7
        %v3376 = vsub.s32 %v3204, %v3375
        %v3377 = vrot.slane %v2923, %v3376
        %v3378 = vsel %vm3209, %v3377, %v3373
        %v3379 = vlaneseq
        %v3380 = vshrl.u32 %v3379, 7
        %v3381 = vsub.s32 %v3211, %v3380
        %v3382 = vrot.slane %v2924, %v3381
        %v3383 = vsel %vm3216, %v3382, %v3378
        %v3384 = vlaneseq
        %v3385 = vshrl.u32 %v3384, 7
        %v3386 = vsub.s32 %v3218, %v3385
        %v3387 = vrot.slane %v2925, %v3386
        %v3388 = vsel %vm3223, %v3387, %v3383
        %v3389 = vlaneseq
        %v3390 = vshrl.u32 %v3389, 7
        %v3391 = vsub.s32 %v3225, %v3390
        %v3392 = vrot.slane %v2926, %v3391
        %v3393 = vsel %vm3230, %v3392, %v3388
        %v3394 = vlaneseq
        %v3395 = vshrl.u32 %v3394, 7
        %v3396 = vsub.s32 %v3232, %v3395
        %v3397 = vrot.slane %v2927, %v3396
        %v3398 = vsel %vm3237, %v3397, %v3393
        %v3399 = vlaneseq
        %v3400 = vshrl.u32 %v3399, 7
        %v3401 = vsub.s32 %v3239, %v3400
        %v3402 = vrot.slane %v2928, %v3401
        %v3403 = vsel %vm3244, %v3402, %v3398
        %v3404 = vlaneseq
        %v3405 = vshrl.u32 %v3404, 7
        %v3406 = vsub.s32 %v204, %v3405
        %v3407 = vrot.slane %v2929, %v3406
        %v3408 = vlaneseq
        %v3409 = vshrl.u32 %v3408, 7
        %v3410 = vsub.s32 %v3141, %v3409
        %v3411 = vrot.slane %v2930, %v3410
        %v3412 = vsel %vm3146, %v3411, %v3407
        %v3413 = vlaneseq
        %v3414 = vshrl.u32 %v3413, 7
        %v3415 = vsub.s32 %v3148, %v3414
        %v3416 = vrot.slane %v2931, %v3415
        %v3417 = vsel %vm3153, %v3416, %v3412
        %v3418 = vlaneseq
        %v3419 = vshrl.u32 %v3418, 7
        %v3420 = vsub.s32 %v3155, %v3419
        %v3421 = vrot.slane %v2932, %v3420
        %v3422 = vsel %vm3160, %v3421, %v3417
        %v3423 = vlaneseq
        %v3424 = vshrl.u32 %v3423, 7
        %v3425 = vsub.s32 %v3162, %v3424
        %v3426 = vrot.slane %v2933, %v3425
        %v3427 = vsel %vm3167, %v3426, %v3422
        %v3428 = vlaneseq
        %v3429 = vshrl.u32 %v3428, 7
        %v3430 = vsub.s32 %v3169, %v3429
        %v3431 = vrot.slane %v2934, %v3430
        %v3432 = vsel %vm3174, %v3431, %v3427
        %v3433 = vlaneseq
        %v3434 = vshrl.u32 %v3433, 7
        %v3435 = vsub.s32 %v3176, %v3434
        %v3436 = vrot.slane %v2935, %v3435
        %v3437 = vsel %vm3181, %v3436, %v3432
        %v3438 = vlaneseq
        %v3439 = vshrl.u32 %v3438, 7
        %v3440 = vsub.s32 %v3183, %v3439
        %v3441 = vrot.slane %v2936, %v3440
        %v3442 = vsel %vm3188, %v3441, %v3437
        %v3443 = vlaneseq
        %v3444 = vshrl.u32 %v3443, 7
        %v3445 = vsub.s32 %v3190, %v3444
        %v3446 = vrot.slane %v2937, %v3445
        %v3447 = vsel %vm3195, %v3446, %v3442
        %v3448 = vlaneseq
        %v3449 = vshrl.u32 %v3448, 7
        %v3450 = vsub.s32 %v3197, %v3449
        %v3451 = vrot.slane %v2938, %v3450
        %v3452 = vsel %vm3202, %v3451, %v3447
        %v3453 = vlaneseq
        %v3454 = vshrl.u32 %v3453, 7
        %v3455 = vsub.s32 %v3204, %v3454
        %v3456 = vrot.slane %v2939, %v3455
        %v3457 = vsel %vm3209, %v3456, %v3452
        %v3458 = vlaneseq
        %v3459 = vshrl.u32 %v3458, 7
        %v3460 = vsub.s32 %v3211, %v3459
        %v3461 = vrot.slane %v2940, %v3460
        %v3462 = vsel %vm3216, %v3461, %v3457
        %v3463 = vlaneseq
        %v3464 = vshrl.u32 %v3463, 7
        %v3465 = vsub.s32 %v3218, %v3464
        %v3466 = vrot.slane %v2941, %v3465
        %v3467 = vsel %vm3223, %v3466, %v3462
        %v3468 = vlaneseq
        %v3469 = vshrl.u32 %v3468, 7
        %v3470 = vsub.s32 %v3225, %v3469
        %v3471 = vrot.slane %v2942, %v3470
        %v3472 = vsel %vm3230, %v3471, %v3467
        %v3473 = vlaneseq
        %v3474 = vshrl.u32 %v3473, 7
        %v3475 = vsub.s32 %v3232, %v3474
        %v3476 = vrot.slane %v2943, %v3475
        %v3477 = vsel %vm3237, %v3476, %v3472
        %v3478 = vlaneseq
        %v3479 = vshrl.u32 %v3478, 7
        %v3480 = vsub.s32 %v3239, %v3479
        %v3481 = vrot.slane %v2944, %v3480
        %v3482 = vsel %vm3244, %v3481, %v3477
        %v3483 = vlaneseq
        %v3484 = vshrl.u32 %v3483, 7
        %v3485 = vsub.s32 %v204, %v3484
        %v3486 = vrot.slane %v2945, %v3485
        %v3487 = vlaneseq
        %v3488 = vshrl.u32 %v3487, 7
        %v3489 = vsub.s32 %v3141, %v3488
        %v3490 = vrot.slane %v2946, %v3489
        %v3491 = vsel %vm3146, %v3490, %v3486
        %v3492 = vlaneseq
        %v3493 = vshrl.u32 %v3492, 7
        %v3494 = vsub.s32 %v3148, %v3493
        %v3495 = vrot.slane %v2947, %v3494
        %v3496 = vsel %vm3153, %v3495, %v3491
        %v3497 = vlaneseq
        %v3498 = vshrl.u32 %v3497, 7
        %v3499 = vsub.s32 %v3155, %v3498
        %v3500 = vrot.slane %v2948, %v3499
        %v3501 = vsel %vm3160, %v3500, %v3496
        %v3502 = vlaneseq
        %v3503 = vshrl.u32 %v3502, 7
        %v3504 = vsub.s32 %v3162, %v3503
        %v3505 = vrot.slane %v2949, %v3504
        %v3506 = vsel %vm3167, %v3505, %v3501
        %v3507 = vlaneseq
        %v3508 = vshrl.u32 %v3507, 7
        %v3509 = vsub.s32 %v3169, %v3508
        %v3510 = vrot.slane %v2950, %v3509
        %v3511 = vsel %vm3174, %v3510, %v3506
        %v3512 = vlaneseq
        %v3513 = vshrl.u32 %v3512, 7
        %v3514 = vsub.s32 %v3176, %v3513
        %v3515 = vrot.slane %v2951, %v3514
        %v3516 = vsel %vm3181, %v3515, %v3511
        %v3517 = vlaneseq
        %v3518 = vshrl.u32 %v3517, 7
        %v3519 = vsub.s32 %v3183, %v3518
        %v3520 = vrot.slane %v2952, %v3519
        %v3521 = vsel %vm3188, %v3520, %v3516
        %v3522 = vlaneseq
        %v3523 = vshrl.u32 %v3522, 7
        %v3524 = vsub.s32 %v3190, %v3523
        %v3525 = vrot.slane %v2953, %v3524
        %v3526 = vsel %vm3195, %v3525, %v3521
        %v3527 = vlaneseq
        %v3528 = vshrl.u32 %v3527, 7
        %v3529 = vsub.s32 %v3197, %v3528
        %v3530 = vrot.slane %v2954, %v3529
        %v3531 = vsel %vm3202, %v3530, %v3526
        %v3532 = vlaneseq
        %v3533 = vshrl.u32 %v3532, 7
        %v3534 = vsub.s32 %v3204, %v3533
        %v3535 = vrot.slane %v2955, %v3534
        %v3536 = vsel %vm3209, %v3535, %v3531
        %v3537 = vlaneseq
        %v3538 = vshrl.u32 %v3537, 7
        %v3539 = vsub.s32 %v3211, %v3538
        %v3540 = vrot.slane %v2956, %v3539
        %v3541 = vsel %vm3216, %v3540, %v3536
        %v3542 = vlaneseq
        %v3543 = vshrl.u32 %v3542, 7
        %v3544 = vsub.s32 %v3218, %v3543
        %v3545 = vrot.slane %v2957, %v3544
        %v3546 = vsel %vm3223, %v3545, %v3541
        %v3547 = vlaneseq
        %v3548 = vshrl.u32 %v3547, 7
        %v3549 = vsub.s32 %v3225, %v3548
        %v3550 = vrot.slane %v2958, %v3549
        %v3551 = vsel %vm3230, %v3550, %v3546
        %v3552 = vlaneseq
        %v3553 = vshrl.u32 %v3552, 7
        %v3554 = vsub.s32 %v3232, %v3553
        %v3555 = vrot.slane %v2959, %v3554
        %v3556 = vsel %vm3237, %v3555, %v3551
        %v3557 = vlaneseq
        %v3558 = vshrl.u32 %v3557, 7
        %v3559 = vsub.s32 %v3239, %v3558
        %v3560 = vrot.slane %v2960, %v3559
        %v3561 = vsel %vm3244, %v3560, %v3556
        %v3562 = vlaneseq
        %v3563 = vshrl.u32 %v3562, 7
        %v3564 = vsub.s32 %v204, %v3563
        %v3565 = vrot.slane %v2961, %v3564
        %v3566 = vlaneseq
        %v3567 = vshrl.u32 %v3566, 7
        %v3568 = vsub.s32 %v3141, %v3567
        %v3569 = vrot.slane %v2962, %v3568
        %v3570 = vsel %vm3146, %v3569, %v3565
        %v3571 = vlaneseq
        %v3572 = vshrl.u32 %v3571, 7
        %v3573 = vsub.s32 %v3148, %v3572
        %v3574 = vrot.slane %v2963, %v3573
        %v3575 = vsel %vm3153, %v3574, %v3570
        %v3576 = vlaneseq
        %v3577 = vshrl.u32 %v3576, 7
        %v3578 = vsub.s32 %v3155, %v3577
        %v3579 = vrot.slane %v2964, %v3578
        %v3580 = vsel %vm3160, %v3579, %v3575
        %v3581 = vlaneseq
        %v3582 = vshrl.u32 %v3581, 7
        %v3583 = vsub.s32 %v3162, %v3582
        %v3584 = vrot.slane %v2965, %v3583
        %v3585 = vsel %vm3167, %v3584, %v3580
        %v3586 = vlaneseq
        %v3587 = vshrl.u32 %v3586, 7
        %v3588 = vsub.s32 %v3169, %v3587
        %v3589 = vrot.slane %v2966, %v3588
        %v3590 = vsel %vm3174, %v3589, %v3585
        %v3591 = vlaneseq
        %v3592 = vshrl.u32 %v3591, 7
        %v3593 = vsub.s32 %v3176, %v3592
        %v3594 = vrot.slane %v2967, %v3593
        %v3595 = vsel %vm3181, %v3594, %v3590
        %v3596 = vlaneseq
        %v3597 = vshrl.u32 %v3596, 7
        %v3598 = vsub.s32 %v3183, %v3597
        %v3599 = vrot.slane %v2968, %v3598
        %v3600 = vsel %vm3188, %v3599, %v3595
        %v3601 = vlaneseq
        %v3602 = vshrl.u32 %v3601, 7
        %v3603 = vsub.s32 %v3190, %v3602
        %v3604 = vrot.slane %v2969, %v3603
        %v3605 = vsel %vm3195, %v3604, %v3600
        %v3606 = vlaneseq
        %v3607 = vshrl.u32 %v3606, 7
        %v3608 = vsub.s32 %v3197, %v3607
        %v3609 = vrot.slane %v2970, %v3608
        %v3610 = vsel %vm3202, %v3609, %v3605
        %v3611 = vlaneseq
        %v3612 = vshrl.u32 %v3611, 7
        %v3613 = vsub.s32 %v3204, %v3612
        %v3614 = vrot.slane %v2971, %v3613
        %v3615 = vsel %vm3209, %v3614, %v3610
        %v3616 = vlaneseq
        %v3617 = vshrl.u32 %v3616, 7
        %v3618 = vsub.s32 %v3211, %v3617
        %v3619 = vrot.slane %v2972, %v3618
        %v3620 = vsel %vm3216, %v3619, %v3615
        %v3621 = vlaneseq
        %v3622 = vshrl.u32 %v3621, 7
        %v3623 = vsub.s32 %v3218, %v3622
        %v3624 = vrot.slane %v2973, %v3623
        %v3625 = vsel %vm3223, %v3624, %v3620
        %v3626 = vlaneseq
        %v3627 = vshrl.u32 %v3626, 7
        %v3628 = vsub.s32 %v3225, %v3627
        %v3629 = vrot.slane %v2974, %v3628
        %v3630 = vsel %vm3230, %v3629, %v3625
        %v3631 = vlaneseq
        %v3632 = vshrl.u32 %v3631, 7
        %v3633 = vsub.s32 %v3232, %v3632
        %v3634 = vrot.slane %v2975, %v3633
        %v3635 = vsel %vm3237, %v3634, %v3630
        %v3636 = vlaneseq
        %v3637 = vshrl.u32 %v3636, 7
        %v3638 = vsub.s32 %v3239, %v3637
        %v3639 = vrot.slane %v2976, %v3638
        %v3640 = vsel %vm3244, %v3639, %v3635
        %v3641 = vlaneseq
        %v3642 = vshrl.u32 %v3641, 7
        %v3643 = vsub.s32 %v204, %v3642
        %v3644 = vrot.slane %v2977, %v3643
        %v3645 = vlaneseq
        %v3646 = vshrl.u32 %v3645, 7
        %v3647 = vsub.s32 %v3141, %v3646
        %v3648 = vrot.slane %v2978, %v3647
        %v3649 = vsel %vm3146, %v3648, %v3644
        %v3650 = vlaneseq
        %v3651 = vshrl.u32 %v3650, 7
        %v3652 = vsub.s32 %v3148, %v3651
        %v3653 = vrot.slane %v2979, %v3652
        %v3654 = vsel %vm3153, %v3653, %v3649
        %v3655 = vlaneseq
        %v3656 = vshrl.u32 %v3655, 7
        %v3657 = vsub.s32 %v3155, %v3656
        %v3658 = vrot.slane %v2980, %v3657
        %v3659 = vsel %vm3160, %v3658, %v3654
        %v3660 = vlaneseq
        %v3661 = vshrl.u32 %v3660, 7
        %v3662 = vsub.s32 %v3162, %v3661
        %v3663 = vrot.slane %v2981, %v3662
        %v3664 = vsel %vm3167, %v3663, %v3659
        %v3665 = vlaneseq
        %v3666 = vshrl.u32 %v3665, 7
        %v3667 = vsub.s32 %v3169, %v3666
        %v3668 = vrot.slane %v2982, %v3667
        %v3669 = vsel %vm3174, %v3668, %v3664
        %v3670 = vlaneseq
        %v3671 = vshrl.u32 %v3670, 7
        %v3672 = vsub.s32 %v3176, %v3671
        %v3673 = vrot.slane %v2983, %v3672
        %v3674 = vsel %vm3181, %v3673, %v3669
        %v3675 = vlaneseq
        %v3676 = vshrl.u32 %v3675, 7
        %v3677 = vsub.s32 %v3183, %v3676
        %v3678 = vrot.slane %v2984, %v3677
        %v3679 = vsel %vm3188, %v3678, %v3674
        %v3680 = vlaneseq
        %v3681 = vshrl.u32 %v3680, 7
        %v3682 = vsub.s32 %v3190, %v3681
        %v3683 = vrot.slane %v2985, %v3682
        %v3684 = vsel %vm3195, %v3683, %v3679
        %v3685 = vlaneseq
        %v3686 = vshrl.u32 %v3685, 7
        %v3687 = vsub.s32 %v3197, %v3686
        %v3688 = vrot.slane %v2986, %v3687
        %v3689 = vsel %vm3202, %v3688, %v3684
        %v3690 = vlaneseq
        %v3691 = vshrl.u32 %v3690, 7
        %v3692 = vsub.s32 %v3204, %v3691
        %v3693 = vrot.slane %v2987, %v3692
        %v3694 = vsel %vm3209, %v3693, %v3689
        %v3695 = vlaneseq
        %v3696 = vshrl.u32 %v3695, 7
        %v3697 = vsub.s32 %v3211, %v3696
        %v3698 = vrot.slane %v2988, %v3697
        %v3699 = vsel %vm3216, %v3698, %v3694
        %v3700 = vlaneseq
        %v3701 = vshrl.u32 %v3700, 7
        %v3702 = vsub.s32 %v3218, %v3701
        %v3703 = vrot.slane %v2989, %v3702
        %v3704 = vsel %vm3223, %v3703, %v3699
        %v3705 = vlaneseq
        %v3706 = vshrl.u32 %v3705, 7
        %v3707 = vsub.s32 %v3225, %v3706
        %v3708 = vrot.slane %v2990, %v3707
        %v3709 = vsel %vm3230, %v3708, %v3704
        %v3710 = vlaneseq
        %v3711 = vshrl.u32 %v3710, 7
        %v3712 = vsub.s32 %v3232, %v3711
        %v3713 = vrot.slane %v2991, %v3712
        %v3714 = vsel %vm3237, %v3713, %v3709
        %v3715 = vlaneseq
        %v3716 = vshrl.u32 %v3715, 7
        %v3717 = vsub.s32 %v3239, %v3716
        %v3718 = vrot.slane %v2992, %v3717
        %v3719 = vsel %vm3244, %v3718, %v3714
        %v3720 = vlaneseq
        %v3721 = vshrl.u32 %v3720, 7
        %v3722 = vsub.s32 %v204, %v3721
        %v3723 = vrot.slane %v2993, %v3722
        %v3724 = vlaneseq
        %v3725 = vshrl.u32 %v3724, 7
        %v3726 = vsub.s32 %v3141, %v3725
        %v3727 = vrot.slane %v2994, %v3726
        %v3728 = vsel %vm3146, %v3727, %v3723
        %v3729 = vlaneseq
        %v3730 = vshrl.u32 %v3729, 7
        %v3731 = vsub.s32 %v3148, %v3730
        %v3732 = vrot.slane %v2995, %v3731
        %v3733 = vsel %vm3153, %v3732, %v3728
        %v3734 = vlaneseq
        %v3735 = vshrl.u32 %v3734, 7
        %v3736 = vsub.s32 %v3155, %v3735
        %v3737 = vrot.slane %v2996, %v3736
        %v3738 = vsel %vm3160, %v3737, %v3733
        %v3739 = vlaneseq
        %v3740 = vshrl.u32 %v3739, 7
        %v3741 = vsub.s32 %v3162, %v3740
        %v3742 = vrot.slane %v2997, %v3741
        %v3743 = vsel %vm3167, %v3742, %v3738
        %v3744 = vlaneseq
        %v3745 = vshrl.u32 %v3744, 7
        %v3746 = vsub.s32 %v3169, %v3745
        %v3747 = vrot.slane %v2998, %v3746
        %v3748 = vsel %vm3174, %v3747, %v3743
        %v3749 = vlaneseq
        %v3750 = vshrl.u32 %v3749, 7
        %v3751 = vsub.s32 %v3176, %v3750
        %v3752 = vrot.slane %v2999, %v3751
        %v3753 = vsel %vm3181, %v3752, %v3748
        %v3754 = vlaneseq
        %v3755 = vshrl.u32 %v3754, 7
        %v3756 = vsub.s32 %v3183, %v3755
        %v3757 = vrot.slane %v3000, %v3756
        %v3758 = vsel %vm3188, %v3757, %v3753
        %v3759 = vlaneseq
        %v3760 = vshrl.u32 %v3759, 7
        %v3761 = vsub.s32 %v3190, %v3760
        %v3762 = vrot.slane %v3001, %v3761
        %v3763 = vsel %vm3195, %v3762, %v3758
        %v3764 = vlaneseq
        %v3765 = vshrl.u32 %v3764, 7
        %v3766 = vsub.s32 %v3197, %v3765
        %v3767 = vrot.slane %v3002, %v3766
        %v3768 = vsel %vm3202, %v3767, %v3763
        %v3769 = vlaneseq
        %v3770 = vshrl.u32 %v3769, 7
        %v3771 = vsub.s32 %v3204, %v3770
        %v3772 = vrot.slane %v3003, %v3771
        %v3773 = vsel %vm3209, %v3772, %v3768
        %v3774 = vlaneseq
        %v3775 = vshrl.u32 %v3774, 7
        %v3776 = vsub.s32 %v3211, %v3775
        %v3777 = vrot.slane %v3004, %v3776
        %v3778 = vsel %vm3216, %v3777, %v3773
        %v3779 = vlaneseq
        %v3780 = vshrl.u32 %v3779, 7
        %v3781 = vsub.s32 %v3218, %v3780
        %v3782 = vrot.slane %v3005, %v3781
        %v3783 = vsel %vm3223, %v3782, %v3778
        %v3784 = vlaneseq
        %v3785 = vshrl.u32 %v3784, 7
        %v3786 = vsub.s32 %v3225, %v3785
        %v3787 = vrot.slane %v3006, %v3786
        %v3788 = vsel %vm3230, %v3787, %v3783
        %v3789 = vlaneseq
        %v3790 = vshrl.u32 %v3789, 7
        %v3791 = vsub.s32 %v3232, %v3790
        %v3792 = vrot.slane %v3007, %v3791
        %v3793 = vsel %vm3237, %v3792, %v3788
        %v3794 = vlaneseq
        %v3795 = vshrl.u32 %v3794, 7
        %v3796 = vsub.s32 %v3239, %v3795
        %v3797 = vrot.slane %v3008, %v3796
        %v3798 = vsel %vm3244, %v3797, %v3793
        %vm3799 = vcmask 1041409
        %v3800 = vsel %vm3799, %v3324, %v3245
        %vm3801 = vcmask 1042434
        %v3802 = vsel %vm3801, %v3403, %v3800
        %vm3803 = vcmask 1043459
        %v3804 = vsel %vm3803, %v3482, %v3802
        %vm3805 = vcmask 1044484
        %v3806 = vsel %vm3805, %v3561, %v3804
        %vm3807 = vcmask 1045509
        %v3808 = vsel %vm3807, %v3640, %v3806
        %vm3809 = vcmask 1046534
        %v3810 = vsel %vm3809, %v3719, %v3808
        %vm3811 = vcmask 1047559
        %v3812 = vsel %vm3811, %v3798, %v3810
        %v3814 = vmul.f32 %v213, %v3812
        %3815 = vadd.xlane.f32.xlu0 %v3814
        %v3816 = vpop.xlane.xlu0 %3815
        %v3817 = vmax.f32 %v3816, 1e-06
        %v3818 = vrcp.pop %v3817
        %v3819 = vmul.f32 %v3814, %v3818
        %v3820 = vmul.f32 %v199, %v213
        %3821 = vadd.xlane.f32.xlu0 %v3820
        %v3822 = vpop.xlane.xlu0 %3821
        %v3823 = vmul.f32 %v3822, %v217
        %v3824 = vmul.f32 %v201, %v213
        %3825 = vadd.xlane.f32.xlu0 %v3824
        %v3826 = vpop.xlane.xlu0 %3825
        %v3827 = vmul.f32 %v3826, %v217
        %v3828 = vsub.f32 %v199, %v3823
        %v3829 = vsub.f32 %v201, %v3827
        %v3830 = vmul.f32 %v3828, %v3829
        %v3831 = vmul.f32 %v3830, %v213
        %3832 = vadd.xlane.f32.xlu0 %v3831
        %v3833 = vpop.xlane.xlu0 %3832
        %v3834 = vmul.f32 %v3833, %v217
        %v3835 = vmul.f32 %v3828, %v3828
        %v3836 = vmul.f32 %v3835, %v213
        %3837 = vadd.xlane.f32.xlu0 %v3836
        %v3838 = vpop.xlane.xlu0 %3837
        %v3839 = vmul.f32 %v3838, %v217
        %v3840 = vadd.f32 %v3839, 1e-06
        %v3841 = vrcp.pop %v3840
        %v3842 = vmul.f32 %v3834, %v3841
        %v3843 = vmul.f32 %v3842, %v3842
        %v3844 = vadd.f32 %v3843, 1.0
        %v3845 = vrsqrt.pop %v3844
        %v3846 = vmul.f32 %v3842, %v3845
        %v3847 = vrcp.pop %v202
        %3848 = vrot.lane.b32.xlu0 %v202, 126
        %v3849 = vpop.permute.xlu0 %3848
        %v3851 = vadd.f32 %v202, %v3849
        %v3852 = vmul.f32 %v3851, 0.5
        %3853 = vrot.lane.b32.xlu0 %v202, 123
        %v3854 = vpop.permute.xlu0 %3853
        %v3856 = vadd.f32 %v3852, %v3854
        %3857 = vrot.lane.b32.xlu0 %v202, 124
        %v3858 = vpop.permute.xlu0 %3857
        %v3860 = vmul.f32 %v3856, %v3858
        %3861 = vrot.lane.b32.xlu0 %v202, 9
        %v3862 = vpop.permute.xlu0 %3861
        %v3864 = vmul.f32 %v202, %v3862
        %3866 = vrot.lane.b32.xlu0 %v3864, 115
        %v3867 = vpop.permute.xlu0 %3866
        %v3869 = vsub.f32 %v3860, %v3867
        %3870 = vrot.lane.b32.xlu0 %v202, 114
        %v3871 = vpop.permute.xlu0 %3870
        %v3873 = vsub.f32 %v3869, %v3871
        %3875 = vrot.lane.b32.xlu0 %v3847, 116
        %v3876 = vpop.permute.xlu0 %3875
        %v3878 = vmul.f32 %v3873, %v3876
        %v3879 = vmul.f32 %v202, 0.5
        %3881 = vset.pattern.permute.xlu0 0
        %3882 = vperm.xlu0 %3881, %v3878
        %v3883 = vpop.permute.xlu0 %3882
        %v3885 = vsub.f32 %v199, %v3883
        %3886 = vset.pattern.permute.xlu0 4
        %3887 = vperm.xlu0 %3886, %v202
        %v3888 = vpop.permute.xlu0 %3887
        %v3890 = vsub.f32 %v201, %v3888
        %v3891 = vmul.f32 %v3845, %v3885
        %v3892 = vmul.f32 %v3846, %v3890
        %v3893 = vadd.f32 %v3891, %v3892
        %v3894 = vmul.f32 %v3845, %v3890
        %v3895 = vmul.f32 %v3846, %v3885
        %v3896 = vsub.f32 %v3894, %v3895
        %v3897 = vand.u32 2147483647, %v3893
        %3899 = vset.pattern.permute.xlu0 9
        %3900 = vperm.xlu0 %3899, %v3879
        %v3901 = vpop.permute.xlu0 %3900
        %v3903 = vsub.f32 %v3897, %v3901
        %v3904 = vand.u32 2147483647, %v3896
        %3905 = vset.pattern.permute.xlu0 7
        %3906 = vperm.xlu0 %3905, %v3879
        %v3907 = vpop.permute.xlu0 %3906
        %v3909 = vsub.f32 %v3904, %v3907
        %v3910 = vmax.f32 %v3903, 0.0
        %v3911 = vmul.f32 %v3910, %v3910
        %v3912 = vmax.f32 %v3909, 0.0
        %v3913 = vmul.f32 %v3912, %v3912
        %v3914 = vadd.f32 %v3911, %v3913
        %v3915 = vadd.f32 %v3914, 1e-12
        %v3916 = vrsqrt.pop %v3915
        %v3917 = vmul.f32 %v3915, %v3916
        %vm3918 = vcmp.eq.f32.partialorder %v3915, inf
        %v3919 = vsel %vm3918, %v3915, %v3917
        %vm3920 = vcmp.eq.f32.partialorder %v3915, 0.0
        %v3921 = vand.u32 %v3915, 2147483648
        %v3922 = vsel %vm3920, %v3921, %v3919
        %v3923 = vmax.f32 %v3903, %v3909
        %v3924 = vmin.f32 %v3923, 0.0
        %v3925 = vadd.f32 %v3922, %v3924
        %v3926 = vand.u32 2147483647, %v3925
        %v3927 = vmul.f32 %v3819, %v3926
        %v3928 = vmul.f32 %v3927, %v213
        %3929 = vadd.xlane.f32.xlu0 %v3928
        %v3930 = vpop.xlane.xlu0 %3929
        %v3931 = vmul.f32 %v3819, %v199
        %3932 = vadd.xlane.f32.xlu0 %v3931
        %v3933 = vpop.xlane.xlu0 %3932
        %v3934 = vmul.f32 %v3819, %v201
        %3935 = vadd.xlane.f32.xlu0 %v3934
        %v3936 = vpop.xlane.xlu0 %3935
        %v3937 = vsub.f32 %v3933, %v3878
        %v3938 = vand.u32 2147483647, %v3937
        %v3939 = vsub.f32 %v3936, %v202
        %v3940 = vand.u32 2147483647, %v3939
        %3942 = vrot.lane.b32.xlu0 %v3940, 124
        %v3943 = vpop.permute.xlu0 %3942
        %v3945 = vadd.f32 %v3938, %v3943
        %v3946 = vadd.f32 %v3930, %v3945
        %3947 = vrot.lane.b32.xlu0 %v202, 118
        %v3948 = vpop.permute.xlu0 %3947
        %v3950 = vmul.f32 %v3946, %v3948
        %vm3951 = vcmask 89168
        %v3952 = vsel %vm3951, %v202, 0.0
        %v3953 = vrot.slane %v3952, 4
        %v3954 = vadd.f32 %v3952, %v3953
        %v3955 = vrot.slane %v3954, 2
        %v3956 = vadd.f32 %v3954, %v3955
        %v3957 = vrot.slane %v3956, 1
        %v3958 = vadd.f32 %v3956, %v3957
        %v3959 = vmax.f32 %v3958, 1.0
        %v3960 = vrcp.pop %v3959
        %vm3961 = vcmask 7168
        %v3962 = vsel %vm3961, %v3950, 0.0
        %v3963 = vrot.slane %v3962, 4
        %v3964 = vadd.f32 %v3962, %v3963
        %v3965 = vrot.slane %v3964, 2
        %v3966 = vadd.f32 %v3964, %v3965
        %v3967 = vrot.slane %v3966, 1
        %v3968 = vadd.f32 %v3966, %v3967
        %3970 = vrot.lane.b32.xlu0 %v3960, 118
        %v3971 = vpop.permute.xlu0 %3970
        %v3973 = vmul.f32 %v3968, %v3971
        %s3975 = vtos %v3973
        %v3976 = vstv %s3975
        %3978 = vst [vmem:[%s198] sm:$0xff] %v3976
        %p3979 = scmp.lt.s32.totalorder %s19, 1
        %s3980 = scalar_select %p3979, %s19, 1
        %s3981 = smul.addr %s3980, 8
        %s3982 = scalar_lea.vmem %s2, %s3981
        // Predicated region
        $region37: #{_batched_loss_jit.1} parent=27 // pred_check
          %p3983 = pneg %p89
        $region38: #{_batched_loss_jit.1} parent=27 // pred_check_branch
          %3985 = sbr.rel (%p3983) target = $region40
        $region39: #{_batched_loss_jit.1} parent=27 // pred_region
          _
        $region40: #{_batched_loss_jit.1} parent=27 // pred_fallthru
          _
      $region28: #{_batched_loss_jit.1} parent=5 // pred_fallthru
        _
      %p3986 = scmp.le.s32.totalorder 2, %s14
      // Predicated region
      $region41: #{_batched_loss_jit.1} parent=5 // pred_check
        %p3987 = pneg %p3986
      $region42: #{_batched_loss_jit.1} parent=5 // pred_check_branch
        %3989 = sbr.rel (%p3987) target = $region44
      $region43: #{_batched_loss_jit.1} parent=5 // pred_region
        %s3990 = ssub.s32 %s14, 2
        // Predicated region
        $region45: #{_batched_loss_jit.1} parent=43 // pred_check
          %p3991 = pneg %p95
        $region46: #{_batched_loss_jit.1} parent=43 // pred_check_branch
          %3993 = sbr.rel (%p3991) target = $region48
        $region47: #{_batched_loss_jit.1} parent=43 // pred_region
          %p3994 = scmp.lt.s32.totalorder %s20, 1
          %s3995 = scalar_select %p3994, %s20, 1
          %s3996 = smul.addr %s3995, 8
          %s3997 = scalar_lea.vmem %s2, %s3996
        $region48: #{_batched_loss_jit.1} parent=43 // pred_fallthru
          _
      $region44: #{_batched_loss_jit.1} parent=5 // pred_fallthru
        _
    $region6: #{_batched_loss_jit.1} parent=1 // loop_footer
      %s18 = sadd.s32 1, %s14
    $region7: #{_batched_loss_jit.1} parent=1 // loop_footer_branch
      %13 = sbr.rel target = $region3
    $region8: #{_batched_loss_jit.1} parent=1 // loop_exit
      _
    %3998 = vsyncpa [#allocation3], 1
    %s3999 = scalar_lea.sflag [#allocation3], 1
    %4000 = vsyncpa %s3999, 1
    %4001 = vsyncpa [#allocation5], 1
    %s4002 = scalar_lea.sflag [#allocation5], 1
    %4003 = vsyncpa %s4002, 1

</llo_original>
